<compile_context>
chip_gen: v7x
topology: tpu7x:2x2x1
jax: 0.10.0
libtpu: 0.0.40
codegen_flags: <defaults>
</compile_context>

<pallas_src>
import functools

import jax
import jax.numpy as jnp
from jax.experimental import pallas as pl
from jax.experimental.pallas import tpu as pltpu

# ---------------------------------------------------------------------------
# Config (small synthetic stand-in for BertConfig)
# ---------------------------------------------------------------------------
VOCAB = 100
HIDDEN = 128
N_HEADS = 2
HEAD_DIM = HIDDEN // N_HEADS
N_LAYERS = 2
INTERMEDIATE = 512
MAX_POS = 16
TYPE_VOCAB = 2
NUM_L1, NUM_L2, NUM_L3 = 12, 75, 341
HEADS_TOTAL = NUM_L1 + NUM_L2 + NUM_L3          # 428
HEADS_PAD = 512                                 # lane-dense multiple of 128
LN_EPS = 1e-12
NEG = -1e9

LANE = 128                                      # lane group per head (>= HEAD_DIM)
QKV_W = 3 * N_HEADS * LANE                      # 768: Qh0|Qh1|Kh0|Kh1|Vh0|Vh1
VEC_W = QKV_W                                   # width of the packed vector slab

# rows per layer inside the vector slab
ROWS_PER_LAYER = 8
(R_BQKV, R_BO, R_LN1G, R_LN1B, R_BFF1, R_BFF2, R_LN2G, R_LN2B) = range(ROWS_PER_LAYER)


# ---------------------------------------------------------------------------
# One fused Pallas kernel for the entire forward pass (per batch chunk)
# ---------------------------------------------------------------------------
def _fused_forward_kernel(
    emb_ref, mask_ref, vec_ref,
    wqkv_ref, wo_ref, wff1_ref, wff2_ref, wh_ref,
    logits_ref, probs_ref,
    ctx_ref,
    *, n_layers,
):
    gbase = n_layers * ROWS_PER_LAYER
    R_EMB_G, R_EMB_B, R_BH = gbase, gbase + 1, gbase + 2

    def vec(row, width):
        # [1, width] f32 slice of the packed vector slab (lane-aligned widths)
        return vec_ref[row:row + 1, :width]

    def layernorm(x, g, b):
        mean = jnp.mean(x, axis=-1, keepdims=True)
        var = jnp.mean((x - mean) ** 2, axis=-1, keepdims=True)
        return (x - mean) * jax.lax.rsqrt(var + LN_EPS) * g + b

    def matmul(x, w):
        # bf16 MXU operands, f32 accumulation; surrounding math stays f32.
        return jnp.dot(x.astype(jnp.bfloat16), w, preferred_element_type=jnp.float32)

    # --- embedding LayerNorm (no zero residual) ---
    h = layernorm(emb_ref[...], vec(R_EMB_G, HIDDEN), vec(R_EMB_B, HIDDEN))   # [BM, H]
    bias = mask_ref[0]                                                        # [BM, BM]

    for l in range(n_layers):
        base = l * ROWS_PER_LAYER

        # fused, head-padded Q|K|V projection (scale pre-folded into Q)
        qkv = matmul(h, wqkv_ref[l]) + vec(base + R_BQKV, QKV_W)              # [BM, 768]

        # --- self attention, flattened over the chunk; 128-lane-aligned slices
        for hh in range(N_HEADS):
            q_h = qkv[:, hh * LANE:(hh + 1) * LANE].astype(jnp.bfloat16)
            k_h = qkv[:, (N_HEADS + hh) * LANE:(N_HEADS + hh + 1) * LANE].astype(jnp.bfloat16)
            v_h = qkv[:, (2 * N_HEADS + hh) * LANE:(2 * N_HEADS + hh + 1) * LANE].astype(jnp.bfloat16)

            scores = jax.lax.dot_general(                                     # q @ k^T
                q_h, k_h, (((1,), (1,)), ((), ())),
                preferred_element_type=jnp.float32) + bias                    # [BM, BM]
            m = jnp.max(scores, axis=-1, keepdims=True)
            p = jnp.exp(scores - m)
            p = p * pl.reciprocal(jnp.sum(p, axis=-1, keepdims=True), approx=True)

            # store per-head context at an aligned 128-lane offset (no concat)
            ctx_ref[:, hh * LANE:(hh + 1) * LANE] = jnp.dot(
                p.astype(jnp.bfloat16), v_h, preferred_element_type=jnp.float32)

        attn_out = matmul(ctx_ref[...], wo_ref[l]) + vec(base + R_BO, HIDDEN)
        h = layernorm(attn_out + h, vec(base + R_LN1G, HIDDEN), vec(base + R_LN1B, HIDDEN))

        # --- feed-forward ---
        inter = matmul(h, wff1_ref[l]) + vec(base + R_BFF1, INTERMEDIATE)
        # TODO(synk): HF BERT "gelu" is erf-based; tanh approximation used here.
        inter = jax.nn.gelu(inter, approximate=True)
        ff_out = matmul(inter, wff2_ref[l]) + vec(base + R_BFF2, HIDDEN)
        h = layernorm(ff_out + h, vec(base + R_LN2G, HIDDEN), vec(base + R_LN2B, HIDDEN))

    # --- fused, lane-padded classification heads + sigmoid on ALL rows -------
    # (identical MXU cost at this size; CLS rows are selected host-side, so no
    #  in-kernel strided row gather is needed)
    logits = matmul(h, wh_ref[...]) + vec(R_BH, HEADS_PAD)                    # [BM, 512]
    logits_ref[...] = logits
    probs_ref[...] = jax.nn.sigmoid(logits)


# ---------------------------------------------------------------------------
# One-time parameter packing (fused head-padded QKV, packed vector slab,
# bf16 MXU weights, scale folded into Q)
# ---------------------------------------------------------------------------
def pack_params(params):
    scale = 1.0 / (HEAD_DIM ** 0.5)

    def pad_row(v):
        v = jnp.asarray(v, jnp.float32).reshape(-1)
        return jnp.pad(v, (0, VEC_W - v.shape[0]))

    wqkv_l, wo_l, wff1_l, wff2_l, rows = [], [], [], [], []
    for lp in params["layers"]:
        w_pad = jnp.zeros((HIDDEN, QKV_W), jnp.float32)
        b_pad = jnp.zeros((QKV_W,), jnp.float32)
        for s_idx, (wn, bn, sc) in enumerate((("wq", "bq", scale),
                                              ("wk", "bk", 1.0),
                                              ("wv", "bv", 1.0))):
            for hh in range(N_HEADS):
                col = (s_idx * N_HEADS + hh) * LANE
                src = hh * HEAD_DIM
                w_pad = w_pad.at[:, col:col + HEAD_DIM].set(lp[wn][:, src:src + HEAD_DIM] * sc)
                b_pad = b_pad.at[col:col + HEAD_DIM].set(lp[bn][src:src + HEAD_DIM] * sc)
        wqkv_l.append(w_pad)

        wo_pad = jnp.zeros((N_HEADS * LANE, HIDDEN), jnp.float32)
        for hh in range(N_HEADS):
            wo_pad = wo_pad.at[hh * LANE:hh * LANE + HEAD_DIM, :].set(
                lp["wo"][hh * HEAD_DIM:(hh + 1) * HEAD_DIM, :])
        wo_l.append(wo_pad)
        wff1_l.append(lp["w_ff1"])
        wff2_l.append(lp["w_ff2"])

        rows += [b_pad, pad_row(lp["bo"]),
                 pad_row(lp["attn_ln_g"]), pad_row(lp["attn_ln_b"]),
                 pad_row(lp["b_ff1"]), pad_row(lp["b_ff2"]),
                 pad_row(lp["ffn_ln_g"]), pad_row(lp["ffn_ln_b"])]

    # fused + lane-padded classification heads
    w_heads = jnp.concatenate([params["w_l1"], params["w_l2"], params["w_l3"]], axis=1)
    b_heads = jnp.concatenate([params["b_l1"], params["b_l2"], params["b_l3"]], axis=0)
    w_heads = jnp.pad(w_heads, ((0, 0), (0, HEADS_PAD - HEADS_TOTAL)))
    b_heads = jnp.pad(b_heads, (0, HEADS_PAD - HEADS_TOTAL))

    rows += [pad_row(params["emb_ln_g"]), pad_row(params["emb_ln_b"]), pad_row(b_heads)]

    return {
        "word_emb": params["word_emb"],
        "pos_emb": params["pos_emb"],
        "type_emb": params["type_emb"],
        "vec": jnp.stack(rows, axis=0),                       # [L*8+3, 768] f32
        "wqkv": jnp.stack(wqkv_l).astype(jnp.bfloat16),       # [L, H, 768]
        "wo": jnp.stack(wo_l).astype(jnp.bfloat16),           # [L, 2*128, H]
        "wff1": jnp.stack(wff1_l).astype(jnp.bfloat16),       # [L, H, 512]
        "wff2": jnp.stack(wff2_l).astype(jnp.bfloat16),       # [L, 512, H]
        "wh": w_heads.astype(jnp.bfloat16),                   # [H, 512]
    }


# ---------------------------------------------------------------------------
# Parameter init (deterministic, synthetic)
# ---------------------------------------------------------------------------
def _dense(key, fan_in, fan_out):
    return jax.random.normal(key, (fan_in, fan_out), jnp.float32) * 0.02


def init_params(key):
    keys = iter(jax.random.split(key, 64))
    p = {
        "word_emb": jax.random.normal(next(keys), (VOCAB, HIDDEN), jnp.float32) * 0.02,
        "pos_emb": jax.random.normal(next(keys), (MAX_POS, HIDDEN), jnp.float32) * 0.02,
        "type_emb": jax.random.normal(next(keys), (TYPE_VOCAB, HIDDEN), jnp.float32) * 0.02,
        "emb_ln_g": jnp.ones((HIDDEN,), jnp.float32),
        "emb_ln_b": jnp.zeros((HIDDEN,), jnp.float32),
        "layers": [],
    }
    for _ in range(N_LAYERS):
        p["layers"].append({
            "wq": _dense(next(keys), HIDDEN, HIDDEN), "bq": jnp.zeros((HIDDEN,), jnp.float32),
            "wk": _dense(next(keys), HIDDEN, HIDDEN), "bk": jnp.zeros((HIDDEN,), jnp.float32),
            "wv": _dense(next(keys), HIDDEN, HIDDEN), "bv": jnp.zeros((HIDDEN,), jnp.float32),
            "wo": _dense(next(keys), HIDDEN, HIDDEN), "bo": jnp.zeros((HIDDEN,), jnp.float32),
            "attn_ln_g": jnp.ones((HIDDEN,), jnp.float32),
            "attn_ln_b": jnp.zeros((HIDDEN,), jnp.float32),
            "w_ff1": _dense(next(keys), HIDDEN, INTERMEDIATE),
            "b_ff1": jnp.zeros((INTERMEDIATE,), jnp.float32),
            "w_ff2": _dense(next(keys), INTERMEDIATE, HIDDEN),
            "b_ff2": jnp.zeros((HIDDEN,), jnp.float32),
            "ffn_ln_g": jnp.ones((HIDDEN,), jnp.float32),
            "ffn_ln_b": jnp.zeros((HIDDEN,), jnp.float32),
        })
    p["w_l1"] = _dense(next(keys), HIDDEN, NUM_L1)
    p["b_l1"] = jnp.zeros((NUM_L1,), jnp.float32)
    p["w_l2"] = _dense(next(keys), HIDDEN, NUM_L2)
    p["b_l2"] = jnp.zeros((NUM_L2,), jnp.float32)
    p["w_l3"] = _dense(next(keys), HIDDEN, NUM_L3)
    p["b_l3"] = jnp.zeros((NUM_L3,), jnp.float32)
    return p


# ---------------------------------------------------------------------------
# Forward: embedding gather (XLA glue) -> one fused Pallas kernel -> slicing
# ---------------------------------------------------------------------------
def baseline_classifier_forward(packed, input_ids, attention_mask):
    B, S = input_ids.shape

    # TODO(synk): embedding gather kept as XLA glue (could be fused via scalar
    # prefetch + per-row DMA for a real-size vocab); token_type_ids fixed to 0.
    emb = (
        packed["word_emb"][input_ids]
        + packed["pos_emb"][:S][None, :, :]
        + packed["type_emb"][0][None, None, :]
    ).reshape(B * S, HIDDEN)

    # batch-parallel grid: 2 chunks when divisible (feeds both v7x TensorCores)
    GB = 2 if (B % 2 == 0 and ((B // 2) * S) % 8 == 0) else 1
    B_blk = B // GB
    BM = B_blk * S                                            # rows per grid step

    # additive attention bias per chunk: key padding + within-chunk cross-seq
    key_bias = ((1.0 - attention_mask.astype(jnp.float32)) * NEG).reshape(GB, BM)
    bid = jnp.arange(BM) // S
    cross = jnp.where(bid[:, None] == bid[None, :], 0.0, NEG)                 # [BM, BM]
    mask_blocks = cross[None, :, :] + key_bias[:, None, :]                    # [GB, BM, BM]

    n_layers = packed["wqkv"].shape[0]
    kernel = functools.partial(_fused_forward_kernel, n_layers=n_layers)

    full = lambda shape: pl.BlockSpec(shape, (lambda i: (0,) * len(shape)))   # replicated weights

    logits_pad, probs_pad = pl.pallas_call(
        kernel,
        out_shape=(jax.ShapeDtypeStruct((B * S, HEADS_PAD), jnp.float32),
                   jax.ShapeDtypeStruct((B * S, HEADS_PAD), jnp.float32)),
        grid=(GB,),
        in_specs=[
            pl.BlockSpec((BM, HIDDEN), lambda i: (i, 0)),        # embeddings chunk
            pl.BlockSpec((1, BM, BM), lambda i: (i, 0, 0)),      # attention bias chunk
            full(packed["vec"].shape),                           # packed bias/LN slab
            full(packed["wqkv"].shape),
            full(packed["wo"].shape),
            full(packed["wff1"].shape),
            full(packed["wff2"].shape),
            full(packed["wh"].shape),
        ],
        out_specs=(pl.BlockSpec((BM, HEADS_PAD), lambda i: (i, 0)),
                   pl.BlockSpec((BM, HEADS_PAD), lambda i: (i, 0))),
        scratch_shapes=[pltpu.VMEM((BM, N_HEADS * LANE), jnp.float32)],
        compiler_params=pltpu.CompilerParams(dimension_semantics=("parallel",)),
    )(emb, mask_blocks, packed["vec"], packed["wqkv"], packed["wo"],
      packed["wff1"], packed["wff2"], packed["wh"])

    # CLS pooling + slicing of the fused padded heads (host-side, tiny)
    cls_logits = logits_pad.reshape(B, S, HEADS_PAD)[:, 0, :]
    cls_probs = probs_pad.reshape(B, S, HEADS_PAD)[:, 0, :]
    c1, c2, c3 = NUM_L1, NUM_L1 + NUM_L2, HEADS_TOTAL
    return {
        "l1_logits": cls_logits[:, :c1],
        "l2_logits": cls_logits[:, c1:c2],
        "l3_logits": cls_logits[:, c2:c3],
        "l1_probs": cls_probs[:, :c1],
        "l2_probs": cls_probs[:, c1:c2],
        "l3_probs": cls_probs[:, c2:c3],
    }


# ---------------------------------------------------------------------------
# Pure-JAX reference (f32) for a correctness cross-check
# ---------------------------------------------------------------------------
def _reference_forward(params, input_ids, attention_mask):
    B, S = input_ids.shape

    def ln(h, g, b):
        mean = jnp.mean(h, -1, keepdims=True)
        var = jnp.mean((h - mean) ** 2, -1, keepdims=True)
        return (h - mean) * jax.lax.rsqrt(var + LN_EPS) * g + b

    h = (params["word_emb"][input_ids] + params["pos_emb"][:S][None]
         + params["type_emb"][0][None, None])
    h = ln(h, params["emb_ln_g"], params["emb_ln_b"])
    bias = (1.0 - attention_mask.astype(jnp.float32))[:, None, None, :] * NEG
    scale = 1.0 / (HEAD_DIM ** 0.5)
    for lp in params["layers"]:
        q = (h @ lp["wq"] + lp["bq"]).reshape(B, S, N_HEADS, HEAD_DIM).transpose(0, 2, 1, 3)
        k = (h @ lp["wk"] + lp["bk"]).reshape(B, S, N_HEADS, HEAD_DIM).transpose(0, 2, 1, 3)
        v = (h @ lp["wv"] + lp["bv"]).reshape(B, S, N_HEADS, HEAD_DIM).transpose(0, 2, 1, 3)
        s = jnp.einsum("bhqd,bhkd->bhqk", q, k) * scale + bias
        p = jax.nn.softmax(s, axis=-1)
        ctx = jnp.einsum("bhqk,bhkd->bhqd", p, v).transpose(0, 2, 1, 3).reshape(B, S, HIDDEN)
        h = ln(ctx @ lp["wo"] + lp["bo"] + h, lp["attn_ln_g"], lp["attn_ln_b"])
        inter = jax.nn.gelu(h @ lp["w_ff1"] + lp["b_ff1"], approximate=True)
        h = ln(inter @ lp["w_ff2"] + lp["b_ff2"] + h, lp["ffn_ln_g"], lp["ffn_ln_b"])
    pooled = h[:, 0]
    out = {}
    for name, w, b in (("l1", params["w_l1"], params["b_l1"]),
                       ("l2", params["w_l2"], params["b_l2"]),
                       ("l3", params["w_l3"], params["b_l3"])):
        logits = pooled @ w + b
        out[f"{name}_logits"] = logits
        out[f"{name}_probs"] = jax.nn.sigmoid(logits)
    return out


# ---------------------------------------------------------------------------
if __name__ == "__main__":
    key = jax.random.PRNGKey(0)
    k_ids, k_params = jax.random.split(key)

    B, S = 2, 8
    input_ids = jax.random.randint(k_ids, (B, S), 0, VOCAB, dtype=jnp.int32)
    attention_mask = jnp.ones((B, S), jnp.int32).at[1, 6:].set(0)   # some padding in batch 1

    params = init_params(k_params)
    packed = pack_params(params)           # one-time host-side packing

    fwd = jax.jit(baseline_classifier_forward)
    out = fwd(packed, input_ids, attention_mask)
    jax.block_until_ready(out)

    assert out["l1_logits"].shape == (B, NUM_L1)
    assert out["l2_logits"].shape == (B, NUM_L2)
    assert out["l3_logits"].shape == (B, NUM_L3)
    assert out["l1_probs"].shape == (B, NUM_L1)
    assert bool(jnp.all((out["l3_probs"] >= 0) & (out["l3_probs"] <= 1)))

    # cross-check against pure-JAX f32 reference (bf16 MXU + approx recip => loose tol)
    ref = _reference_forward(params, input_ids, attention_mask)
    for name in ("l1_logits", "l2_logits", "l3_logits", "l1_probs", "l2_probs", "l3_probs"):
        err = float(jnp.max(jnp.abs(out[name] - ref[name])))
        assert err < 0.1, (name, err)

    print("KERNEL_OK")
</pallas_src>

<mosaic_0001>
module attributes {stable_mosaic.version = 11 : i64} {
  func.func @_fused_forward_kernel(%arg0: i32, %arg1: memref<8x128xf32, #tpu.memory_space<vmem>>, %arg2: memref<1x8x8xf32, #tpu.memory_space<vmem>>, %arg3: memref<19x768xf32, #tpu.memory_space<vmem>>, %arg4: memref<2x128x768xbf16, #tpu.memory_space<vmem>>, %arg5: memref<2x256x128xbf16, #tpu.memory_space<vmem>>, %arg6: memref<2x128x512xbf16, #tpu.memory_space<vmem>>, %arg7: memref<2x512x128xbf16, #tpu.memory_space<vmem>>, %arg8: memref<128x512xbf16, #tpu.memory_space<vmem>>, %arg9: memref<8x512xf32, #tpu.memory_space<vmem>>, %arg10: memref<8x512xf32, #tpu.memory_space<vmem>>, %arg11: memref<8x256xf32, #tpu.memory_space<vmem>>) attributes {dimension_semantics = [#tpu.dimension_semantics<parallel>], iteration_bounds = array<i64: 2>, scalar_prefetch = 0 : i64, scratch_operands = 1 : i64, tpu.core_type = #tpu.core_type<tc>, window_params = [{transform_indices = @transform_0, window_bounds = array<i64: 8, 128>}, {transform_indices = @transform_1, window_bounds = array<i64: 1, 8, 8>}, {pipeline_mode = #tpu.pipeline_mode<synchronous>, transform_indices = @transform_2, window_bounds = array<i64: 19, 768>}, {pipeline_mode = #tpu.pipeline_mode<synchronous>, transform_indices = @transform_3, window_bounds = array<i64: 2, 128, 768>}, {pipeline_mode = #tpu.pipeline_mode<synchronous>, transform_indices = @transform_4, window_bounds = array<i64: 2, 256, 128>}, {pipeline_mode = #tpu.pipeline_mode<synchronous>, transform_indices = @transform_5, window_bounds = array<i64: 2, 128, 512>}, {pipeline_mode = #tpu.pipeline_mode<synchronous>, transform_indices = @transform_6, window_bounds = array<i64: 2, 512, 128>}, {pipeline_mode = #tpu.pipeline_mode<synchronous>, transform_indices = @transform_7, window_bounds = array<i64: 128, 512>}, {transform_indices = @transform_8, window_bounds = array<i64: 8, 512>}, {transform_indices = @transform_9, window_bounds = array<i64: 8, 512>}]} {
    %c0 = arith.constant 0 : index
    %c0_0 = arith.constant 0 : index
    %0 = vector.load %arg1[%c0, %c0_0] : memref<8x128xf32, #tpu.memory_space<vmem>>, vector<8x128xf32>
    %c16 = arith.constant 16 : index
    %c0_1 = arith.constant 0 : index
    %1 = vector.load %arg3[%c16, %c0_1] : memref<19x768xf32, #tpu.memory_space<vmem>>, vector<1x128xf32>
    %c17 = arith.constant 17 : index
    %c0_2 = arith.constant 0 : index
    %2 = vector.load %arg3[%c17, %c0_2] : memref<19x768xf32, #tpu.memory_space<vmem>>, vector<1x128xf32>
    %cst = arith.constant dense<0.000000e+00> : vector<8xf32>
    %3 = vector.multi_reduction <add>, %0, %cst [1] : vector<8x128xf32> to vector<8xf32>
    %4 = vector.shape_cast %3 : vector<8xf32> to vector<8x1xf32>
    %cst_3 = arith.constant 1.280000e+02 : f32
    %5 = vector.broadcast %cst_3 : f32 to vector<8x1xf32>
    %6 = arith.divf %4, %5 : vector<8x1xf32>
    %7 = vector.broadcast %6 : vector<8x1xf32> to vector<8x128xf32>
    %8 = arith.subf %0, %7 : vector<8x128xf32>
    %9 = arith.mulf %8, %8 : vector<8x128xf32>
    %cst_4 = arith.constant dense<0.000000e+00> : vector<8xf32>
    %10 = vector.multi_reduction <add>, %9, %cst_4 [1] : vector<8x128xf32> to vector<8xf32>
    %11 = vector.shape_cast %10 : vector<8xf32> to vector<8x1xf32>
    %cst_5 = arith.constant 1.280000e+02 : f32
    %12 = vector.broadcast %cst_5 : f32 to vector<8x1xf32>
    %13 = arith.divf %11, %12 : vector<8x1xf32>
    %14 = vector.broadcast %6 : vector<8x1xf32> to vector<8x128xf32>
    %15 = arith.subf %0, %14 : vector<8x128xf32>
    %cst_6 = arith.constant 9.99999996E-13 : f32
    %16 = vector.broadcast %cst_6 : f32 to vector<8x1xf32>
    %17 = arith.addf %13, %16 : vector<8x1xf32>
    %18 = math.rsqrt %17 : vector<8x1xf32>
    %19 = vector.broadcast %18 : vector<8x1xf32> to vector<8x128xf32>
    %20 = arith.mulf %15, %19 : vector<8x128xf32>
    %21 = vector.broadcast %1 : vector<1x128xf32> to vector<8x128xf32>
    %22 = arith.mulf %20, %21 : vector<8x128xf32>
    %23 = vector.broadcast %2 : vector<1x128xf32> to vector<8x128xf32>
    %24 = arith.addf %22, %23 : vector<8x128xf32>
    %c0_7 = arith.constant 0 : index
    %c0_8 = arith.constant 0 : index
    %c0_9 = arith.constant 0 : index
    %25 = vector.load %arg2[%c0_7, %c0_8, %c0_9] : memref<1x8x8xf32, #tpu.memory_space<vmem>>, vector<1x8x8xf32>
    %26 = vector.shape_cast %25 : vector<1x8x8xf32> to vector<8x8xf32>
    %c0_10 = arith.constant 0 : index
    %c0_11 = arith.constant 0 : index
    %c0_12 = arith.constant 0 : index
    %27 = vector.load %arg4[%c0_10, %c0_11, %c0_12] : memref<2x128x768xbf16, #tpu.memory_space<vmem>>, vector<1x128x768xbf16>
    %28 = vector.shape_cast %27 : vector<1x128x768xbf16> to vector<128x768xbf16>
    %29 = arith.truncf %24 : vector<8x128xf32> to vector<8x128xbf16>
    %cst_13 = arith.constant dense<0.000000e+00> : vector<8x768xf32>
    %30 = tpu.matmul %29, %28, %cst_13 {dimension_numbers = #tpu.dot_dimension_numbers<[1], [0], [0], [1], [0, 0, 1, 1], [], []>} : vector<8x128xbf16>, vector<128x768xbf16>, vector<8x768xf32> -> vector<8x768xf32>
    %c0_14 = arith.constant 0 : index
    %c0_15 = arith.constant 0 : index
    %31 = vector.load %arg3[%c0_14, %c0_15] : memref<19x768xf32, #tpu.memory_space<vmem>>, vector<1x768xf32>
    %32 = vector.broadcast %31 : vector<1x768xf32> to vector<8x768xf32>
    %33 = arith.addf %30, %32 : vector<8x768xf32>
    %34 = vector.extract_strided_slice %33 {offsets = [0, 0], sizes = [8, 128], strides = [1, 1]} : vector<8x768xf32> to vector<8x128xf32>
    %35 = arith.truncf %34 : vector<8x128xf32> to vector<8x128xbf16>
    %36 = vector.extract_strided_slice %33 {offsets = [0, 256], sizes = [8, 128], strides = [1, 1]} : vector<8x768xf32> to vector<8x128xf32>
    %37 = arith.truncf %36 : vector<8x128xf32> to vector<8x128xbf16>
    %38 = vector.extract_strided_slice %33 {offsets = [0, 512], sizes = [8, 128], strides = [1, 1]} : vector<8x768xf32> to vector<8x128xf32>
    %39 = arith.truncf %38 : vector<8x128xf32> to vector<8x128xbf16>
    %cst_16 = arith.constant dense<0.000000e+00> : vector<8x8xf32>
    %40 = tpu.matmul %35, %37, %cst_16 {dimension_numbers = #tpu.dot_dimension_numbers<[1], [1], [0], [0], [0, 0, 1, 0], [], []>} : vector<8x128xbf16>, vector<8x128xbf16>, vector<8x8xf32> -> vector<8x8xf32>
    %41 = arith.addf %40, %26 : vector<8x8xf32>
    %cst_17 = arith.constant dense<0xFF800000> : vector<8xf32>
    %42 = vector.multi_reduction <maximumf>, %41, %cst_17 [1] : vector<8x8xf32> to vector<8xf32>
    %43 = vector.shape_cast %42 : vector<8xf32> to vector<8x1xf32>
    %44 = vector.broadcast %43 : vector<8x1xf32> to vector<8x8xf32>
    %45 = arith.subf %41, %44 : vector<8x8xf32>
    %46 = math.exp %45 : vector<8x8xf32>
    %cst_18 = arith.constant dense<0.000000e+00> : vector<8xf32>
    %47 = vector.multi_reduction <add>, %46, %cst_18 [1] : vector<8x8xf32> to vector<8xf32>
    %48 = vector.shape_cast %47 : vector<8xf32> to vector<8x1xf32>
    %49 = tpu.reciprocal %48 {approx = true} : vector<8x1xf32> -> vector<8x1xf32>
    %50 = vector.broadcast %49 : vector<8x1xf32> to vector<8x8xf32>
    %51 = arith.mulf %46, %50 : vector<8x8xf32>
    %52 = arith.truncf %51 : vector<8x8xf32> to vector<8x8xbf16>
    %cst_19 = arith.constant dense<0.000000e+00> : vector<8x128xf32>
    %53 = tpu.matmul %52, %39, %cst_19 {dimension_numbers = #tpu.dot_dimension_numbers<[1], [0], [0], [1], [0, 0, 1, 1], [], []>} : vector<8x8xbf16>, vector<8x128xbf16>, vector<8x128xf32> -> vector<8x128xf32>
    %c0_20 = arith.constant 0 : index
    %c0_21 = arith.constant 0 : index
    %54 = vector.load %arg11[%c0_20, %c0_21] : memref<8x256xf32, #tpu.memory_space<vmem>>, vector<8x128xf32>
    tpu.vector_store %arg11[%c0_20, %c0_21], %53 {strides = array<i32>} : memref<8x256xf32, #tpu.memory_space<vmem>>, vector<8x128xf32>,
    %55 = vector.extract_strided_slice %33 {offsets = [0, 128], sizes = [8, 128], strides = [1, 1]} : vector<8x768xf32> to vector<8x128xf32>
    %56 = arith.truncf %55 : vector<8x128xf32> to vector<8x128xbf16>
    %57 = vector.extract_strided_slice %33 {offsets = [0, 384], sizes = [8, 128], strides = [1, 1]} : vector<8x768xf32> to vector<8x128xf32>
    %58 = arith.truncf %57 : vector<8x128xf32> to vector<8x128xbf16>
    %59 = vector.extract_strided_slice %33 {offsets = [0, 640], sizes = [8, 128], strides = [1, 1]} : vector<8x768xf32> to vector<8x128xf32>
    %60 = arith.truncf %59 : vector<8x128xf32> to vector<8x128xbf16>
    %cst_22 = arith.constant dense<0.000000e+00> : vector<8x8xf32>
    %61 = tpu.matmul %56, %58, %cst_22 {dimension_numbers = #tpu.dot_dimension_numbers<[1], [1], [0], [0], [0, 0, 1, 0], [], []>} : vector<8x128xbf16>, vector<8x128xbf16>, vector<8x8xf32> -> vector<8x8xf32>
    %62 = arith.addf %61, %26 : vector<8x8xf32>
    %cst_23 = arith.constant dense<0xFF800000> : vector<8xf32>
    %63 = vector.multi_reduction <maximumf>, %62, %cst_23 [1] : vector<8x8xf32> to vector<8xf32>
    %64 = vector.shape_cast %63 : vector<8xf32> to vector<8x1xf32>
    %65 = vector.broadcast %64 : vector<8x1xf32> to vector<8x8xf32>
    %66 = arith.subf %62, %65 : vector<8x8xf32>
    %67 = math.exp %66 : vector<8x8xf32>
    %cst_24 = arith.constant dense<0.000000e+00> : vector<8xf32>
    %68 = vector.multi_reduction <add>, %67, %cst_24 [1] : vector<8x8xf32> to vector<8xf32>
    %69 = vector.shape_cast %68 : vector<8xf32> to vector<8x1xf32>
    %70 = tpu.reciprocal %69 {approx = true} : vector<8x1xf32> -> vector<8x1xf32>
    %71 = vector.broadcast %70 : vector<8x1xf32> to vector<8x8xf32>
    %72 = arith.mulf %67, %71 : vector<8x8xf32>
    %73 = arith.truncf %72 : vector<8x8xf32> to vector<8x8xbf16>
    %cst_25 = arith.constant dense<0.000000e+00> : vector<8x128xf32>
    %74 = tpu.matmul %73, %60, %cst_25 {dimension_numbers = #tpu.dot_dimension_numbers<[1], [0], [0], [1], [0, 0, 1, 1], [], []>} : vector<8x8xbf16>, vector<8x128xbf16>, vector<8x128xf32> -> vector<8x128xf32>
    %c0_26 = arith.constant 0 : index
    %c128 = arith.constant 128 : index
    %75 = vector.load %arg11[%c0_26, %c128] : memref<8x256xf32, #tpu.memory_space<vmem>>, vector<8x128xf32>
    tpu.vector_store %arg11[%c0_26, %c128], %74 {strides = array<i32>} : memref<8x256xf32, #tpu.memory_space<vmem>>, vector<8x128xf32>,
    %c0_27 = arith.constant 0 : index
    %c0_28 = arith.constant 0 : index
    %76 = vector.load %arg11[%c0_27, %c0_28] : memref<8x256xf32, #tpu.memory_space<vmem>>, vector<8x256xf32>
    %c0_29 = arith.constant 0 : index
    %c0_30 = arith.constant 0 : index
    %c0_31 = arith.constant 0 : index
    %77 = vector.load %arg5[%c0_29, %c0_30, %c0_31] : memref<2x256x128xbf16, #tpu.memory_space<vmem>>, vector<1x256x128xbf16>
    %78 = vector.shape_cast %77 : vector<1x256x128xbf16> to vector<256x128xbf16>
    %79 = arith.truncf %76 : vector<8x256xf32> to vector<8x256xbf16>
    %cst_32 = arith.constant dense<0.000000e+00> : vector<8x128xf32>
    %80 = tpu.matmul %79, %78, %cst_32 {dimension_numbers = #tpu.dot_dimension_numbers<[1], [0], [0], [1], [0, 0, 1, 1], [], []>} : vector<8x256xbf16>, vector<256x128xbf16>, vector<8x128xf32> -> vector<8x128xf32>
    %c1 = arith.constant 1 : index
    %c0_33 = arith.constant 0 : index
    %81 = vector.load %arg3[%c1, %c0_33] : memref<19x768xf32, #tpu.memory_space<vmem>>, vector<1x128xf32>
    %82 = vector.broadcast %81 : vector<1x128xf32> to vector<8x128xf32>
    %83 = arith.addf %80, %82 : vector<8x128xf32>
    %84 = arith.addf %83, %24 : vector<8x128xf32>
    %c2 = arith.constant 2 : index
    %c0_34 = arith.constant 0 : index
    %85 = vector.load %arg3[%c2, %c0_34] : memref<19x768xf32, #tpu.memory_space<vmem>>, vector<1x128xf32>
    %c3 = arith.constant 3 : index
    %c0_35 = arith.constant 0 : index
    %86 = vector.load %arg3[%c3, %c0_35] : memref<19x768xf32, #tpu.memory_space<vmem>>, vector<1x128xf32>
    %cst_36 = arith.constant dense<0.000000e+00> : vector<8xf32>
    %87 = vector.multi_reduction <add>, %84, %cst_36 [1] : vector<8x128xf32> to vector<8xf32>
    %88 = vector.shape_cast %87 : vector<8xf32> to vector<8x1xf32>
    %cst_37 = arith.constant 1.280000e+02 : f32
    %89 = vector.broadcast %cst_37 : f32 to vector<8x1xf32>
    %90 = arith.divf %88, %89 : vector<8x1xf32>
    %91 = vector.broadcast %90 : vector<8x1xf32> to vector<8x128xf32>
    %92 = arith.subf %84, %91 : vector<8x128xf32>
    %93 = arith.mulf %92, %92 : vector<8x128xf32>
    %cst_38 = arith.constant dense<0.000000e+00> : vector<8xf32>
    %94 = vector.multi_reduction <add>, %93, %cst_38 [1] : vector<8x128xf32> to vector<8xf32>
    %95 = vector.shape_cast %94 : vector<8xf32> to vector<8x1xf32>
    %cst_39 = arith.constant 1.280000e+02 : f32
    %96 = vector.broadcast %cst_39 : f32 to vector<8x1xf32>
    %97 = arith.divf %95, %96 : vector<8x1xf32>
    %98 = vector.broadcast %90 : vector<8x1xf32> to vector<8x128xf32>
    %99 = arith.subf %84, %98 : vector<8x128xf32>
    %cst_40 = arith.constant 9.99999996E-13 : f32
    %100 = vector.broadcast %cst_40 : f32 to vector<8x1xf32>
    %101 = arith.addf %97, %100 : vector<8x1xf32>
    %102 = math.rsqrt %101 : vector<8x1xf32>
    %103 = vector.broadcast %102 : vector<8x1xf32> to vector<8x128xf32>
    %104 = arith.mulf %99, %103 : vector<8x128xf32>
    %105 = vector.broadcast %85 : vector<1x128xf32> to vector<8x128xf32>
    %106 = arith.mulf %104, %105 : vector<8x128xf32>
    %107 = vector.broadcast %86 : vector<1x128xf32> to vector<8x128xf32>
    %108 = arith.addf %106, %107 : vector<8x128xf32>
    %c0_41 = arith.constant 0 : index
    %c0_42 = arith.constant 0 : index
    %c0_43 = arith.constant 0 : index
    %109 = vector.load %arg6[%c0_41, %c0_42, %c0_43] : memref<2x128x512xbf16, #tpu.memory_space<vmem>>, vector<1x128x512xbf16>
    %110 = vector.shape_cast %109 : vector<1x128x512xbf16> to vector<128x512xbf16>
    %111 = arith.truncf %108 : vector<8x128xf32> to vector<8x128xbf16>
    %cst_44 = arith.constant dense<0.000000e+00> : vector<8x512xf32>
    %112 = tpu.matmul %111, %110, %cst_44 {dimension_numbers = #tpu.dot_dimension_numbers<[1], [0], [0], [1], [0, 0, 1, 1], [], []>} : vector<8x128xbf16>, vector<128x512xbf16>, vector<8x512xf32> -> vector<8x512xf32>
    %c4 = arith.constant 4 : index
    %c0_45 = arith.constant 0 : index
    %113 = vector.load %arg3[%c4, %c0_45] : memref<19x768xf32, #tpu.memory_space<vmem>>, vector<1x512xf32>
    %114 = vector.broadcast %113 : vector<1x512xf32> to vector<8x512xf32>
    %115 = arith.addf %112, %114 : vector<8x512xf32>
    %116 = arith.mulf %115, %115 : vector<8x512xf32>
    %117 = arith.mulf %115, %116 : vector<8x512xf32>
    %cst_46 = arith.constant 4.471500e-02 : f32
    %118 = vector.broadcast %cst_46 : f32 to vector<8x512xf32>
    %119 = arith.mulf %118, %117 : vector<8x512xf32>
    %120 = arith.addf %115, %119 : vector<8x512xf32>
    %cst_47 = arith.constant 0.797884583 : f32
    %121 = vector.broadcast %cst_47 : f32 to vector<8x512xf32>
    %122 = arith.mulf %121, %120 : vector<8x512xf32>
    %123 = math.tanh %122 : vector<8x512xf32>
    %cst_48 = arith.constant 1.000000e+00 : f32
    %124 = vector.broadcast %cst_48 : f32 to vector<8x512xf32>
    %125 = arith.addf %124, %123 : vector<8x512xf32>
    %cst_49 = arith.constant 5.000000e-01 : f32
    %126 = vector.broadcast %cst_49 : f32 to vector<8x512xf32>
    %127 = arith.mulf %126, %125 : vector<8x512xf32>
    %128 = arith.mulf %115, %127 : vector<8x512xf32>
    %c0_50 = arith.constant 0 : index
    %c0_51 = arith.constant 0 : index
    %c0_52 = arith.constant 0 : index
    %129 = vector.load %arg7[%c0_50, %c0_51, %c0_52] : memref<2x512x128xbf16, #tpu.memory_space<vmem>>, vector<1x512x128xbf16>
    %130 = vector.shape_cast %129 : vector<1x512x128xbf16> to vector<512x128xbf16>
    %131 = arith.truncf %128 : vector<8x512xf32> to vector<8x512xbf16>
    %cst_53 = arith.constant dense<0.000000e+00> : vector<8x128xf32>
    %132 = tpu.matmul %131, %130, %cst_53 {dimension_numbers = #tpu.dot_dimension_numbers<[1], [0], [0], [1], [0, 0, 1, 1], [], []>} : vector<8x512xbf16>, vector<512x128xbf16>, vector<8x128xf32> -> vector<8x128xf32>
    %c5 = arith.constant 5 : index
    %c0_54 = arith.constant 0 : index
    %133 = vector.load %arg3[%c5, %c0_54] : memref<19x768xf32, #tpu.memory_space<vmem>>, vector<1x128xf32>
    %134 = vector.broadcast %133 : vector<1x128xf32> to vector<8x128xf32>
    %135 = arith.addf %132, %134 : vector<8x128xf32>
    %136 = arith.addf %135, %108 : vector<8x128xf32>
    %c6 = arith.constant 6 : index
    %c0_55 = arith.constant 0 : index
    %137 = vector.load %arg3[%c6, %c0_55] : memref<19x768xf32, #tpu.memory_space<vmem>>, vector<1x128xf32>
    %c7 = arith.constant 7 : index
    %c0_56 = arith.constant 0 : index
    %138 = vector.load %arg3[%c7, %c0_56] : memref<19x768xf32, #tpu.memory_space<vmem>>, vector<1x128xf32>
    %cst_57 = arith.constant dense<0.000000e+00> : vector<8xf32>
    %139 = vector.multi_reduction <add>, %136, %cst_57 [1] : vector<8x128xf32> to vector<8xf32>
    %140 = vector.shape_cast %139 : vector<8xf32> to vector<8x1xf32>
    %cst_58 = arith.constant 1.280000e+02 : f32
    %141 = vector.broadcast %cst_58 : f32 to vector<8x1xf32>
    %142 = arith.divf %140, %141 : vector<8x1xf32>
    %143 = vector.broadcast %142 : vector<8x1xf32> to vector<8x128xf32>
    %144 = arith.subf %136, %143 : vector<8x128xf32>
    %145 = arith.mulf %144, %144 : vector<8x128xf32>
    %cst_59 = arith.constant dense<0.000000e+00> : vector<8xf32>
    %146 = vector.multi_reduction <add>, %145, %cst_59 [1] : vector<8x128xf32> to vector<8xf32>
    %147 = vector.shape_cast %146 : vector<8xf32> to vector<8x1xf32>
    %cst_60 = arith.constant 1.280000e+02 : f32
    %148 = vector.broadcast %cst_60 : f32 to vector<8x1xf32>
    %149 = arith.divf %147, %148 : vector<8x1xf32>
    %150 = vector.broadcast %142 : vector<8x1xf32> to vector<8x128xf32>
    %151 = arith.subf %136, %150 : vector<8x128xf32>
    %cst_61 = arith.constant 9.99999996E-13 : f32
    %152 = vector.broadcast %cst_61 : f32 to vector<8x1xf32>
    %153 = arith.addf %149, %152 : vector<8x1xf32>
    %154 = math.rsqrt %153 : vector<8x1xf32>
    %155 = vector.broadcast %154 : vector<8x1xf32> to vector<8x128xf32>
    %156 = arith.mulf %151, %155 : vector<8x128xf32>
    %157 = vector.broadcast %137 : vector<1x128xf32> to vector<8x128xf32>
    %158 = arith.mulf %156, %157 : vector<8x128xf32>
    %159 = vector.broadcast %138 : vector<1x128xf32> to vector<8x128xf32>
    %160 = arith.addf %158, %159 : vector<8x128xf32>
    %c1_62 = arith.constant 1 : index
    %c0_63 = arith.constant 0 : index
    %c0_64 = arith.constant 0 : index
    %161 = vector.load %arg4[%c1_62, %c0_63, %c0_64] : memref<2x128x768xbf16, #tpu.memory_space<vmem>>, vector<1x128x768xbf16>
    %162 = vector.shape_cast %161 : vector<1x128x768xbf16> to vector<128x768xbf16>
    %163 = arith.truncf %160 : vector<8x128xf32> to vector<8x128xbf16>
    %cst_65 = arith.constant dense<0.000000e+00> : vector<8x768xf32>
    %164 = tpu.matmul %163, %162, %cst_65 {dimension_numbers = #tpu.dot_dimension_numbers<[1], [0], [0], [1], [0, 0, 1, 1], [], []>} : vector<8x128xbf16>, vector<128x768xbf16>, vector<8x768xf32> -> vector<8x768xf32>
    %c8 = arith.constant 8 : index
    %c0_66 = arith.constant 0 : index
    %165 = vector.load %arg3[%c8, %c0_66] : memref<19x768xf32, #tpu.memory_space<vmem>>, vector<1x768xf32>
    %166 = vector.broadcast %165 : vector<1x768xf32> to vector<8x768xf32>
    %167 = arith.addf %164, %166 : vector<8x768xf32>
    %168 = vector.extract_strided_slice %167 {offsets = [0, 0], sizes = [8, 128], strides = [1, 1]} : vector<8x768xf32> to vector<8x128xf32>
    %169 = arith.truncf %168 : vector<8x128xf32> to vector<8x128xbf16>
    %170 = vector.extract_strided_slice %167 {offsets = [0, 256], sizes = [8, 128], strides = [1, 1]} : vector<8x768xf32> to vector<8x128xf32>
    %171 = arith.truncf %170 : vector<8x128xf32> to vector<8x128xbf16>
    %172 = vector.extract_strided_slice %167 {offsets = [0, 512], sizes = [8, 128], strides = [1, 1]} : vector<8x768xf32> to vector<8x128xf32>
    %173 = arith.truncf %172 : vector<8x128xf32> to vector<8x128xbf16>
    %cst_67 = arith.constant dense<0.000000e+00> : vector<8x8xf32>
    %174 = tpu.matmul %169, %171, %cst_67 {dimension_numbers = #tpu.dot_dimension_numbers<[1], [1], [0], [0], [0, 0, 1, 0], [], []>} : vector<8x128xbf16>, vector<8x128xbf16>, vector<8x8xf32> -> vector<8x8xf32>
    %175 = arith.addf %174, %26 : vector<8x8xf32>
    %cst_68 = arith.constant dense<0xFF800000> : vector<8xf32>
    %176 = vector.multi_reduction <maximumf>, %175, %cst_68 [1] : vector<8x8xf32> to vector<8xf32>
    %177 = vector.shape_cast %176 : vector<8xf32> to vector<8x1xf32>
    %178 = vector.broadcast %177 : vector<8x1xf32> to vector<8x8xf32>
    %179 = arith.subf %175, %178 : vector<8x8xf32>
    %180 = math.exp %179 : vector<8x8xf32>
    %cst_69 = arith.constant dense<0.000000e+00> : vector<8xf32>
    %181 = vector.multi_reduction <add>, %180, %cst_69 [1] : vector<8x8xf32> to vector<8xf32>
    %182 = vector.shape_cast %181 : vector<8xf32> to vector<8x1xf32>
    %183 = tpu.reciprocal %182 {approx = true} : vector<8x1xf32> -> vector<8x1xf32>
    %184 = vector.broadcast %183 : vector<8x1xf32> to vector<8x8xf32>
    %185 = arith.mulf %180, %184 : vector<8x8xf32>
    %186 = arith.truncf %185 : vector<8x8xf32> to vector<8x8xbf16>
    %cst_70 = arith.constant dense<0.000000e+00> : vector<8x128xf32>
    %187 = tpu.matmul %186, %173, %cst_70 {dimension_numbers = #tpu.dot_dimension_numbers<[1], [0], [0], [1], [0, 0, 1, 1], [], []>} : vector<8x8xbf16>, vector<8x128xbf16>, vector<8x128xf32> -> vector<8x128xf32>
    %c0_71 = arith.constant 0 : index
    %c0_72 = arith.constant 0 : index
    %188 = vector.load %arg11[%c0_71, %c0_72] : memref<8x256xf32, #tpu.memory_space<vmem>>, vector<8x128xf32>
    tpu.vector_store %arg11[%c0_71, %c0_72], %187 {strides = array<i32>} : memref<8x256xf32, #tpu.memory_space<vmem>>, vector<8x128xf32>,
    %189 = vector.extract_strided_slice %167 {offsets = [0, 128], sizes = [8, 128], strides = [1, 1]} : vector<8x768xf32> to vector<8x128xf32>
    %190 = arith.truncf %189 : vector<8x128xf32> to vector<8x128xbf16>
    %191 = vector.extract_strided_slice %167 {offsets = [0, 384], sizes = [8, 128], strides = [1, 1]} : vector<8x768xf32> to vector<8x128xf32>
    %192 = arith.truncf %191 : vector<8x128xf32> to vector<8x128xbf16>
    %193 = vector.extract_strided_slice %167 {offsets = [0, 640], sizes = [8, 128], strides = [1, 1]} : vector<8x768xf32> to vector<8x128xf32>
    %194 = arith.truncf %193 : vector<8x128xf32> to vector<8x128xbf16>
    %cst_73 = arith.constant dense<0.000000e+00> : vector<8x8xf32>
    %195 = tpu.matmul %190, %192, %cst_73 {dimension_numbers = #tpu.dot_dimension_numbers<[1], [1], [0], [0], [0, 0, 1, 0], [], []>} : vector<8x128xbf16>, vector<8x128xbf16>, vector<8x8xf32> -> vector<8x8xf32>
    %196 = arith.addf %195, %26 : vector<8x8xf32>
    %cst_74 = arith.constant dense<0xFF800000> : vector<8xf32>
    %197 = vector.multi_reduction <maximumf>, %196, %cst_74 [1] : vector<8x8xf32> to vector<8xf32>
    %198 = vector.shape_cast %197 : vector<8xf32> to vector<8x1xf32>
    %199 = vector.broadcast %198 : vector<8x1xf32> to vector<8x8xf32>
    %200 = arith.subf %196, %199 : vector<8x8xf32>
    %201 = math.exp %200 : vector<8x8xf32>
    %cst_75 = arith.constant dense<0.000000e+00> : vector<8xf32>
    %202 = vector.multi_reduction <add>, %201, %cst_75 [1] : vector<8x8xf32> to vector<8xf32>
    %203 = vector.shape_cast %202 : vector<8xf32> to vector<8x1xf32>
    %204 = tpu.reciprocal %203 {approx = true} : vector<8x1xf32> -> vector<8x1xf32>
    %205 = vector.broadcast %204 : vector<8x1xf32> to vector<8x8xf32>
    %206 = arith.mulf %201, %205 : vector<8x8xf32>
    %207 = arith.truncf %206 : vector<8x8xf32> to vector<8x8xbf16>
    %cst_76 = arith.constant dense<0.000000e+00> : vector<8x128xf32>
    %208 = tpu.matmul %207, %194, %cst_76 {dimension_numbers = #tpu.dot_dimension_numbers<[1], [0], [0], [1], [0, 0, 1, 1], [], []>} : vector<8x8xbf16>, vector<8x128xbf16>, vector<8x128xf32> -> vector<8x128xf32>
    %c0_77 = arith.constant 0 : index
    %c128_78 = arith.constant 128 : index
    %209 = vector.load %arg11[%c0_77, %c128_78] : memref<8x256xf32, #tpu.memory_space<vmem>>, vector<8x128xf32>
    tpu.vector_store %arg11[%c0_77, %c128_78], %208 {strides = array<i32>} : memref<8x256xf32, #tpu.memory_space<vmem>>, vector<8x128xf32>,
    %c0_79 = arith.constant 0 : index
    %c0_80 = arith.constant 0 : index
    %210 = vector.load %arg11[%c0_79, %c0_80] : memref<8x256xf32, #tpu.memory_space<vmem>>, vector<8x256xf32>
    %c1_81 = arith.constant 1 : index
    %c0_82 = arith.constant 0 : index
    %c0_83 = arith.constant 0 : index
    %211 = vector.load %arg5[%c1_81, %c0_82, %c0_83] : memref<2x256x128xbf16, #tpu.memory_space<vmem>>, vector<1x256x128xbf16>
    %212 = vector.shape_cast %211 : vector<1x256x128xbf16> to vector<256x128xbf16>
    %213 = arith.truncf %210 : vector<8x256xf32> to vector<8x256xbf16>
    %cst_84 = arith.constant dense<0.000000e+00> : vector<8x128xf32>
    %214 = tpu.matmul %213, %212, %cst_84 {dimension_numbers = #tpu.dot_dimension_numbers<[1], [0], [0], [1], [0, 0, 1, 1], [], []>} : vector<8x256xbf16>, vector<256x128xbf16>, vector<8x128xf32> -> vector<8x128xf32>
    %c9 = arith.constant 9 : index
    %c0_85 = arith.constant 0 : index
    %215 = vector.load %arg3[%c9, %c0_85] : memref<19x768xf32, #tpu.memory_space<vmem>>, vector<1x128xf32>
    %216 = vector.broadcast %215 : vector<1x128xf32> to vector<8x128xf32>
    %217 = arith.addf %214, %216 : vector<8x128xf32>
    %218 = arith.addf %217, %160 : vector<8x128xf32>
    %c10 = arith.constant 10 : index
    %c0_86 = arith.constant 0 : index
    %219 = vector.load %arg3[%c10, %c0_86] : memref<19x768xf32, #tpu.memory_space<vmem>>, vector<1x128xf32>
    %c11 = arith.constant 11 : index
    %c0_87 = arith.constant 0 : index
    %220 = vector.load %arg3[%c11, %c0_87] : memref<19x768xf32, #tpu.memory_space<vmem>>, vector<1x128xf32>
    %cst_88 = arith.constant dense<0.000000e+00> : vector<8xf32>
    %221 = vector.multi_reduction <add>, %218, %cst_88 [1] : vector<8x128xf32> to vector<8xf32>
    %222 = vector.shape_cast %221 : vector<8xf32> to vector<8x1xf32>
    %cst_89 = arith.constant 1.280000e+02 : f32
    %223 = vector.broadcast %cst_89 : f32 to vector<8x1xf32>
    %224 = arith.divf %222, %223 : vector<8x1xf32>
    %225 = vector.broadcast %224 : vector<8x1xf32> to vector<8x128xf32>
    %226 = arith.subf %218, %225 : vector<8x128xf32>
    %227 = arith.mulf %226, %226 : vector<8x128xf32>
    %cst_90 = arith.constant dense<0.000000e+00> : vector<8xf32>
    %228 = vector.multi_reduction <add>, %227, %cst_90 [1] : vector<8x128xf32> to vector<8xf32>
    %229 = vector.shape_cast %228 : vector<8xf32> to vector<8x1xf32>
    %cst_91 = arith.constant 1.280000e+02 : f32
    %230 = vector.broadcast %cst_91 : f32 to vector<8x1xf32>
    %231 = arith.divf %229, %230 : vector<8x1xf32>
    %232 = vector.broadcast %224 : vector<8x1xf32> to vector<8x128xf32>
    %233 = arith.subf %218, %232 : vector<8x128xf32>
    %cst_92 = arith.constant 9.99999996E-13 : f32
    %234 = vector.broadcast %cst_92 : f32 to vector<8x1xf32>
    %235 = arith.addf %231, %234 : vector<8x1xf32>
    %236 = math.rsqrt %235 : vector<8x1xf32>
    %237 = vector.broadcast %236 : vector<8x1xf32> to vector<8x128xf32>
    %238 = arith.mulf %233, %237 : vector<8x128xf32>
    %239 = vector.broadcast %219 : vector<1x128xf32> to vector<8x128xf32>
    %240 = arith.mulf %238, %239 : vector<8x128xf32>
    %241 = vector.broadcast %220 : vector<1x128xf32> to vector<8x128xf32>
    %242 = arith.addf %240, %241 : vector<8x128xf32>
    %c1_93 = arith.constant 1 : index
    %c0_94 = arith.constant 0 : index
    %c0_95 = arith.constant 0 : index
    %243 = vector.load %arg6[%c1_93, %c0_94, %c0_95] : memref<2x128x512xbf16, #tpu.memory_space<vmem>>, vector<1x128x512xbf16>
    %244 = vector.shape_cast %243 : vector<1x128x512xbf16> to vector<128x512xbf16>
    %245 = arith.truncf %242 : vector<8x128xf32> to vector<8x128xbf16>
    %cst_96 = arith.constant dense<0.000000e+00> : vector<8x512xf32>
    %246 = tpu.matmul %245, %244, %cst_96 {dimension_numbers = #tpu.dot_dimension_numbers<[1], [0], [0], [1], [0, 0, 1, 1], [], []>} : vector<8x128xbf16>, vector<128x512xbf16>, vector<8x512xf32> -> vector<8x512xf32>
    %c12 = arith.constant 12 : index
    %c0_97 = arith.constant 0 : index
    %247 = vector.load %arg3[%c12, %c0_97] : memref<19x768xf32, #tpu.memory_space<vmem>>, vector<1x512xf32>
    %248 = vector.broadcast %247 : vector<1x512xf32> to vector<8x512xf32>
    %249 = arith.addf %246, %248 : vector<8x512xf32>
    %250 = arith.mulf %249, %249 : vector<8x512xf32>
    %251 = arith.mulf %249, %250 : vector<8x512xf32>
    %cst_98 = arith.constant 4.471500e-02 : f32
    %252 = vector.broadcast %cst_98 : f32 to vector<8x512xf32>
    %253 = arith.mulf %252, %251 : vector<8x512xf32>
    %254 = arith.addf %249, %253 : vector<8x512xf32>
    %cst_99 = arith.constant 0.797884583 : f32
    %255 = vector.broadcast %cst_99 : f32 to vector<8x512xf32>
    %256 = arith.mulf %255, %254 : vector<8x512xf32>
    %257 = math.tanh %256 : vector<8x512xf32>
    %cst_100 = arith.constant 1.000000e+00 : f32
    %258 = vector.broadcast %cst_100 : f32 to vector<8x512xf32>
    %259 = arith.addf %258, %257 : vector<8x512xf32>
    %cst_101 = arith.constant 5.000000e-01 : f32
    %260 = vector.broadcast %cst_101 : f32 to vector<8x512xf32>
    %261 = arith.mulf %260, %259 : vector<8x512xf32>
    %262 = arith.mulf %249, %261 : vector<8x512xf32>
    %c1_102 = arith.constant 1 : index
    %c0_103 = arith.constant 0 : index
    %c0_104 = arith.constant 0 : index
    %263 = vector.load %arg7[%c1_102, %c0_103, %c0_104] : memref<2x512x128xbf16, #tpu.memory_space<vmem>>, vector<1x512x128xbf16>
    %264 = vector.shape_cast %263 : vector<1x512x128xbf16> to vector<512x128xbf16>
    %265 = arith.truncf %262 : vector<8x512xf32> to vector<8x512xbf16>
    %cst_105 = arith.constant dense<0.000000e+00> : vector<8x128xf32>
    %266 = tpu.matmul %265, %264, %cst_105 {dimension_numbers = #tpu.dot_dimension_numbers<[1], [0], [0], [1], [0, 0, 1, 1], [], []>} : vector<8x512xbf16>, vector<512x128xbf16>, vector<8x128xf32> -> vector<8x128xf32>
    %c13 = arith.constant 13 : index
    %c0_106 = arith.constant 0 : index
    %267 = vector.load %arg3[%c13, %c0_106] : memref<19x768xf32, #tpu.memory_space<vmem>>, vector<1x128xf32>
    %268 = vector.broadcast %267 : vector<1x128xf32> to vector<8x128xf32>
    %269 = arith.addf %266, %268 : vector<8x128xf32>
    %270 = arith.addf %269, %242 : vector<8x128xf32>
    %c14 = arith.constant 14 : index
    %c0_107 = arith.constant 0 : index
    %271 = vector.load %arg3[%c14, %c0_107] : memref<19x768xf32, #tpu.memory_space<vmem>>, vector<1x128xf32>
    %c15 = arith.constant 15 : index
    %c0_108 = arith.constant 0 : index
    %272 = vector.load %arg3[%c15, %c0_108] : memref<19x768xf32, #tpu.memory_space<vmem>>, vector<1x128xf32>
    %cst_109 = arith.constant dense<0.000000e+00> : vector<8xf32>
    %273 = vector.multi_reduction <add>, %270, %cst_109 [1] : vector<8x128xf32> to vector<8xf32>
    %274 = vector.shape_cast %273 : vector<8xf32> to vector<8x1xf32>
    %cst_110 = arith.constant 1.280000e+02 : f32
    %275 = vector.broadcast %cst_110 : f32 to vector<8x1xf32>
    %276 = arith.divf %274, %275 : vector<8x1xf32>
    %277 = vector.broadcast %276 : vector<8x1xf32> to vector<8x128xf32>
    %278 = arith.subf %270, %277 : vector<8x128xf32>
    %279 = arith.mulf %278, %278 : vector<8x128xf32>
    %cst_111 = arith.constant dense<0.000000e+00> : vector<8xf32>
    %280 = vector.multi_reduction <add>, %279, %cst_111 [1] : vector<8x128xf32> to vector<8xf32>
    %281 = vector.shape_cast %280 : vector<8xf32> to vector<8x1xf32>
    %cst_112 = arith.constant 1.280000e+02 : f32
    %282 = vector.broadcast %cst_112 : f32 to vector<8x1xf32>
    %283 = arith.divf %281, %282 : vector<8x1xf32>
    %284 = vector.broadcast %276 : vector<8x1xf32> to vector<8x128xf32>
    %285 = arith.subf %270, %284 : vector<8x128xf32>
    %cst_113 = arith.constant 9.99999996E-13 : f32
    %286 = vector.broadcast %cst_113 : f32 to vector<8x1xf32>
    %287 = arith.addf %283, %286 : vector<8x1xf32>
    %288 = math.rsqrt %287 : vector<8x1xf32>
    %289 = vector.broadcast %288 : vector<8x1xf32> to vector<8x128xf32>
    %290 = arith.mulf %285, %289 : vector<8x128xf32>
    %291 = vector.broadcast %271 : vector<1x128xf32> to vector<8x128xf32>
    %292 = arith.mulf %290, %291 : vector<8x128xf32>
    %293 = vector.broadcast %272 : vector<1x128xf32> to vector<8x128xf32>
    %294 = arith.addf %292, %293 : vector<8x128xf32>
    %c0_114 = arith.constant 0 : index
    %c0_115 = arith.constant 0 : index
    %295 = vector.load %arg8[%c0_114, %c0_115] : memref<128x512xbf16, #tpu.memory_space<vmem>>, vector<128x512xbf16>
    %296 = arith.truncf %294 : vector<8x128xf32> to vector<8x128xbf16>
    %cst_116 = arith.constant dense<0.000000e+00> : vector<8x512xf32>
    %297 = tpu.matmul %296, %295, %cst_116 {dimension_numbers = #tpu.dot_dimension_numbers<[1], [0], [0], [1], [0, 0, 1, 1], [], []>} : vector<8x128xbf16>, vector<128x512xbf16>, vector<8x512xf32> -> vector<8x512xf32>
    %c18 = arith.constant 18 : index
    %c0_117 = arith.constant 0 : index
    %298 = vector.load %arg3[%c18, %c0_117] : memref<19x768xf32, #tpu.memory_space<vmem>>, vector<1x512xf32>
    %299 = vector.broadcast %298 : vector<1x512xf32> to vector<8x512xf32>
    %300 = arith.addf %297, %299 : vector<8x512xf32>
    %c0_118 = arith.constant 0 : index
    %c0_119 = arith.constant 0 : index
    %301 = vector.load %arg9[%c0_118, %c0_119] : memref<8x512xf32, #tpu.memory_space<vmem>>, vector<8x512xf32>
    tpu.vector_store %arg9[%c0_118, %c0_119], %300 {strides = array<i32>} : memref<8x512xf32, #tpu.memory_space<vmem>>, vector<8x512xf32>,
    %302 = arith.negf %300 : vector<8x512xf32>
    %303 = math.exp %302 : vector<8x512xf32>
    %cst_120 = arith.constant 1.000000e+00 : f32
    %304 = vector.broadcast %cst_120 : f32 to vector<8x512xf32>
    %305 = arith.addf %304, %303 : vector<8x512xf32>
    %306 = arith.divf %304, %305 : vector<8x512xf32>
    %c0_121 = arith.constant 0 : index
    %c0_122 = arith.constant 0 : index
    %307 = vector.load %arg10[%c0_121, %c0_122] : memref<8x512xf32, #tpu.memory_space<vmem>>, vector<8x512xf32>
    tpu.vector_store %arg10[%c0_121, %c0_122], %306 {strides = array<i32>} : memref<8x512xf32, #tpu.memory_space<vmem>>, vector<8x512xf32>,
    return
  }
  func.func @transform_0(%arg0: i32) -> (i32, i32) {
    %c0_i32 = arith.constant 0 : i32
    %c0_i32_0 = arith.constant 0 : i32
    return %arg0, %c0_i32 : i32, i32
  }
  func.func @transform_1(%arg0: i32) -> (i32, i32, i32) {
    %c0_i32 = arith.constant 0 : i32
    %c0_i32_0 = arith.constant 0 : i32
    %c0_i32_1 = arith.constant 0 : i32
    return %arg0, %c0_i32, %c0_i32_0 : i32, i32, i32
  }
  func.func @transform_2(%arg0: i32) -> (i32, i32) {
    %c0_i32 = arith.constant 0 : i32
    %c0_i32_0 = arith.constant 0 : i32
    %c0_i32_1 = arith.constant 0 : i32
    return %c0_i32, %c0_i32_0 : i32, i32
  }
  func.func @transform_3(%arg0: i32) -> (i32, i32, i32) {
    %c0_i32 = arith.constant 0 : i32
    %c0_i32_0 = arith.constant 0 : i32
    %c0_i32_1 = arith.constant 0 : i32
    %c0_i32_2 = arith.constant 0 : i32
    return %c0_i32, %c0_i32_0, %c0_i32_1 : i32, i32, i32
  }
  func.func @transform_4(%arg0: i32) -> (i32, i32, i32) {
    %c0_i32 = arith.constant 0 : i32
    %c0_i32_0 = arith.constant 0 : i32
    %c0_i32_1 = arith.constant 0 : i32
    %c0_i32_2 = arith.constant 0 : i32
    return %c0_i32, %c0_i32_0, %c0_i32_1 : i32, i32, i32
  }
  func.func @transform_5(%arg0: i32) -> (i32, i32, i32) {
    %c0_i32 = arith.constant 0 : i32
    %c0_i32_0 = arith.constant 0 : i32
    %c0_i32_1 = arith.constant 0 : i32
    %c0_i32_2 = arith.constant 0 : i32
    return %c0_i32, %c0_i32_0, %c0_i32_1 : i32, i32, i32
  }
  func.func @transform_6(%arg0: i32) -> (i32, i32, i32) {
    %c0_i32 = arith.constant 0 : i32
    %c0_i32_0 = arith.constant 0 : i32
    %c0_i32_1 = arith.constant 0 : i32
    %c0_i32_2 = arith.constant 0 : i32
    return %c0_i32, %c0_i32_0, %c0_i32_1 : i32, i32, i32
  }
  func.func @transform_7(%arg0: i32) -> (i32, i32) {
    %c0_i32 = arith.constant 0 : i32
    %c0_i32_0 = arith.constant 0 : i32
    %c0_i32_1 = arith.constant 0 : i32
    return %c0_i32, %c0_i32_0 : i32, i32
  }
  func.func @transform_8(%arg0: i32) -> (i32, i32) {
    %c0_i32 = arith.constant 0 : i32
    %c0_i32_0 = arith.constant 0 : i32
    return %arg0, %c0_i32 : i32, i32
  }
  func.func @transform_9(%arg0: i32) -> (i32, i32) {
    %c0_i32 = arith.constant 0 : i32
    %c0_i32_0 = arith.constant 0 : i32
    return %arg0, %c0_i32 : i32, i32
  }
}

</mosaic_0001>

<llo_original>
// kernel: baseline_classifier_forward.1
$region0: #{baseline_classifier_forward.1}
  #allocation0 [shape = 'u32[]', space=smem, size = 0x4, offset = 0x4, fixed_abs, tag = 'smem constant byte address 0x4 - core index']
  #allocation1 [shape = 'u32[144,128]{1,0:T(1,128)}', space=vmem, size = 0x12000, scoped, tag = 'internal scratch']
  #allocation2 [shape = 'f32[8,256]{1,0:T(8,128)}', space=vmem, size = 0x2000, scoped, tag = 'scratch operand']
  %s0 = inlined_call_operand.vmem [shape: f32[16,128], index: 0, kind: input, shape index: {}]
  %s1 = inlined_call_operand.vmem [shape: f32[2,8,8], index: 1, kind: input, shape index: {}]
  %s2 = inlined_call_operand.hbm [shape: f32[19,768], index: 2, kind: input, shape index: {}]
  %s3 = inlined_call_operand.hbm [shape: bf16[2,128,768], index: 3, kind: input, shape index: {}]
  %s4 = inlined_call_operand.vmem [shape: bf16[2,256,128], index: 4, kind: input, shape index: {}]
  %s5 = inlined_call_operand.hbm [shape: bf16[2,128,512], index: 5, kind: input, shape index: {}]
  %s6 = inlined_call_operand.hbm [shape: bf16[2,512,128], index: 6, kind: input, shape index: {}]
  %s7 = inlined_call_operand.hbm [shape: bf16[128,512], index: 7, kind: input, shape index: {}]
  %s8 = inlined_call_operand.vmem [shape: f32[16,512], index: 8, kind: output, shape index: {0}]
  %s9 = inlined_call_operand.vmem [shape: f32[16,512], index: 9, kind: output, shape index: {1}]
  %10 = xla_tuple %s8, %s9
  %s11 = sld [smem:[#allocation0]]
  $region93: #{baseline_classifier_forward.1} parent=0
    _
  %s13 = ssub.s32 1, %s11
  %s14 = scalar_select 0, %s13, %s11
  $region1: #{baseline_classifier_forward.1} parent=0
    #allocation3 [shape = 'u8[73728]{0}', space=vmem, size = 0x12000, scoped, tag = 'input window, operand 2, single buffered']
    #allocation4 [shape = 's32[2]{0}', space=sflag, size = 0x8, scoped, tag = 'scoped memory for baseline_classifier_forward.1']
    #allocation5 [shape = 'u8[393216]{0}', space=vmem, size = 0x60000, scoped, tag = 'input window, operand 3, single buffered']
    #allocation6 [shape = 's32[1]{0}', space=sflag, size = 0x4, scoped, tag = 'scoped memory for baseline_classifier_forward.1']
    #allocation7 [shape = 'u8[262144]{0}', space=vmem, size = 0x40000, scoped, tag = 'input window, operand 5, single buffered']
    #allocation8 [shape = 'u8[262144]{0}', space=vmem, size = 0x40000, scoped, tag = 'input window, operand 6, single buffered']
    #allocation9 [shape = 's32[1]{0}', space=sflag, size = 0x4, scoped, tag = 'scoped memory for baseline_classifier_forward.1']
    #allocation10 [shape = 'u8[131072]{0}', space=vmem, size = 0x20000, scoped, tag = 'input window, operand 7, single buffered']
    %15 = vsyncpa [#allocation4], 0
    %16 = vsyncpa [#allocation6], 0
    %17 = vsyncpa [#allocation9], 0
    loop: start=0, step=1, limit=4
    $region2: #{baseline_classifier_forward.1} parent=1 // loop_pre_header
      _
    $region3: #{baseline_classifier_forward.1} parent=1 // loop_header
      %s19 = sphi 0, %s23
      %p20 = scmp.ge.s32.totalorder %s19, 4
      %s29 = sphi 0, %s31
      %s32 = sphi 0, %s29
      %s33 = sphi 0, %s32
      %s49 = sphi 0, %s33
      %s55 = sphi 0, %s57
      %s58 = sphi 0, %s55
      %s59 = sphi 0, %s58
      %s75 = sphi 0, %s59
      %s79 = sphi 0, %s79
      %s81 = sphi 0, %s79
      %s82 = sphi 0, %s81
      %s96 = sphi 0, %s82
      %s100 = sphi 0, %s100
      %s102 = sphi 0, %s100
      %s103 = sphi 0, %s102
      %s117 = sphi 0, %s103
      %s121 = sphi 0, %s121
      %s123 = sphi 0, %s121
      %s124 = sphi 0, %s123
      %s138 = sphi 0, %s124
      %s142 = sphi 0, %s142
      %s144 = sphi 0, %s142
      %s145 = sphi 0, %s144
      %s159 = sphi 0, %s145
      %s163 = sphi 0, %s163
      %s165 = sphi 0, %s163
      %s166 = sphi 0, %s165
      %s180 = sphi 0, %s166
      %s184 = sphi 0, %s184
      %s186 = sphi 0, %s184
      %s187 = sphi 0, %s186
      %s201 = sphi 0, %s187
      %s207 = sphi 0, %s209
      %s210 = sphi 0, %s207
      %s211 = sphi 0, %s210
      %s227 = sphi 0, %s211
      %s233 = sphi 0, %s235
      %s236 = sphi 0, %s233
      %s237 = sphi 0, %s236
      %s253 = sphi 0, %s237
    $region4: #{baseline_classifier_forward.1} parent=1 // loop_header_branch
      %22 = sbr.rel (%p20) target = $region8
    $region5: #{baseline_classifier_forward.1} parent=1 // loop_body
      %s24 = ssub.s32 %s19, 1
      %s25 = ssub.s32 %s19, 2
      %s26 = sadd.s32 %s19, 1
      %s27 = ssub.s32 %s19, %s26
      %p28 = scmp.eq.s32.totalorder %s27, 0
      %s30 = sadd.s32 %s29, 1
      %s31 = scalar_select %p28, %s29, %s30
      %p34 = pneg %p28
      %p35 = scmp.eq.s32.totalorder %s19, 1
      %p36 = por %p34, %p35
      %p37 = scmp.ne.s32.totalorder %s29, %s32
      %p38 = scmp.eq.s32.totalorder %s19, 0
      %p39 = por %p37, %p38
      %p40 = scmp.ne.s32.totalorder %s29, %s32
      %p41 = scmp.eq.s32.totalorder %s24, 1
      %p42 = por %p40, %p41
      %p43 = scmp.ne.s32.totalorder %s32, %s33
      %p44 = scmp.eq.s32.totalorder %s24, 0
      %p45 = por %p43, %p44
      %p46 = scmp.ne.s32.totalorder %s32, %s33
      %p47 = scmp.eq.s32.totalorder %s25, 1
      %p48 = por %p46, %p47
      %p50 = scmp.ne.s32.totalorder %s33, %s49
      %p51 = scmp.eq.s32.totalorder %s25, 0
      %p52 = por %p50, %p51
      %s53 = ssub.s32 %s19, %s26
      %p54 = scmp.eq.s32.totalorder %s53, 0
      %s56 = sadd.s32 %s55, 1
      %s57 = scalar_select %p54, %s55, %s56
      %p60 = pneg %p54
      %p61 = scmp.eq.s32.totalorder %s19, 1
      %p62 = por %p60, %p61
      %p63 = scmp.ne.s32.totalorder %s55, %s58
      %p64 = scmp.eq.s32.totalorder %s19, 0
      %p65 = por %p63, %p64
      %p66 = scmp.ne.s32.totalorder %s55, %s58
      %p67 = scmp.eq.s32.totalorder %s24, 1
      %p68 = por %p66, %p67
      %p69 = scmp.ne.s32.totalorder %s58, %s59
      %p70 = scmp.eq.s32.totalorder %s24, 0
      %p71 = por %p69, %p70
      %p72 = scmp.ne.s32.totalorder %s58, %s59
      %p73 = scmp.eq.s32.totalorder %s25, 1
      %p74 = por %p72, %p73
      %p76 = scmp.ne.s32.totalorder %s59, %s75
      %p77 = scmp.eq.s32.totalorder %s25, 0
      %p78 = por %p76, %p77
      %s80 = sadd.s32 %s79, 1
      %p83 = scmp.eq.s32.totalorder %s19, 1
      %p84 = scmp.ne.s32.totalorder %s79, %s81
      %p85 = scmp.eq.s32.totalorder %s19, 0
      %p86 = por %p84, %p85
      %p87 = scmp.ne.s32.totalorder %s79, %s81
      %p88 = scmp.eq.s32.totalorder %s24, 1
      %p89 = por %p87, %p88
      %p90 = scmp.ne.s32.totalorder %s81, %s82
      %p91 = scmp.eq.s32.totalorder %s24, 0
      %p92 = por %p90, %p91
      %p93 = scmp.ne.s32.totalorder %s81, %s82
      %p94 = scmp.eq.s32.totalorder %s25, 1
      %p95 = por %p93, %p94
      %p97 = scmp.ne.s32.totalorder %s82, %s96
      %p98 = scmp.eq.s32.totalorder %s25, 0
      %p99 = por %p97, %p98
      %s101 = sadd.s32 %s100, 1
      %p104 = scmp.eq.s32.totalorder %s19, 1
      %p105 = scmp.ne.s32.totalorder %s100, %s102
      %p106 = scmp.eq.s32.totalorder %s19, 0
      %p107 = por %p105, %p106
      %p108 = scmp.ne.s32.totalorder %s100, %s102
      %p109 = scmp.eq.s32.totalorder %s24, 1
      %p110 = por %p108, %p109
      %p111 = scmp.ne.s32.totalorder %s102, %s103
      %p112 = scmp.eq.s32.totalorder %s24, 0
      %p113 = por %p111, %p112
      %p114 = scmp.ne.s32.totalorder %s102, %s103
      %p115 = scmp.eq.s32.totalorder %s25, 1
      %p116 = por %p114, %p115
      %p118 = scmp.ne.s32.totalorder %s103, %s117
      %p119 = scmp.eq.s32.totalorder %s25, 0
      %p120 = por %p118, %p119
      %s122 = sadd.s32 %s121, 1
      %p125 = scmp.eq.s32.totalorder %s19, 1
      %p126 = scmp.ne.s32.totalorder %s121, %s123
      %p127 = scmp.eq.s32.totalorder %s19, 0
      %p128 = por %p126, %p127
      %p129 = scmp.ne.s32.totalorder %s121, %s123
      %p130 = scmp.eq.s32.totalorder %s24, 1
      %p131 = por %p129, %p130
      %p132 = scmp.ne.s32.totalorder %s123, %s124
      %p133 = scmp.eq.s32.totalorder %s24, 0
      %p134 = por %p132, %p133
      %p135 = scmp.ne.s32.totalorder %s123, %s124
      %p136 = scmp.eq.s32.totalorder %s25, 1
      %p137 = por %p135, %p136
      %p139 = scmp.ne.s32.totalorder %s124, %s138
      %p140 = scmp.eq.s32.totalorder %s25, 0
      %p141 = por %p139, %p140
      %s143 = sadd.s32 %s142, 1
      %p146 = scmp.eq.s32.totalorder %s19, 1
      %p147 = scmp.ne.s32.totalorder %s142, %s144
      %p148 = scmp.eq.s32.totalorder %s19, 0
      %p149 = por %p147, %p148
      %p150 = scmp.ne.s32.totalorder %s142, %s144
      %p151 = scmp.eq.s32.totalorder %s24, 1
      %p152 = por %p150, %p151
      %p153 = scmp.ne.s32.totalorder %s144, %s145
      %p154 = scmp.eq.s32.totalorder %s24, 0
      %p155 = por %p153, %p154
      %p156 = scmp.ne.s32.totalorder %s144, %s145
      %p157 = scmp.eq.s32.totalorder %s25, 1
      %p158 = por %p156, %p157
      %p160 = scmp.ne.s32.totalorder %s145, %s159
      %p161 = scmp.eq.s32.totalorder %s25, 0
      %p162 = por %p160, %p161
      %s164 = sadd.s32 %s163, 1
      %p167 = scmp.eq.s32.totalorder %s19, 1
      %p168 = scmp.ne.s32.totalorder %s163, %s165
      %p169 = scmp.eq.s32.totalorder %s19, 0
      %p170 = por %p168, %p169
      %p171 = scmp.ne.s32.totalorder %s163, %s165
      %p172 = scmp.eq.s32.totalorder %s24, 1
      %p173 = por %p171, %p172
      %p174 = scmp.ne.s32.totalorder %s165, %s166
      %p175 = scmp.eq.s32.totalorder %s24, 0
      %p176 = por %p174, %p175
      %p177 = scmp.ne.s32.totalorder %s165, %s166
      %p178 = scmp.eq.s32.totalorder %s25, 1
      %p179 = por %p177, %p178
      %p181 = scmp.ne.s32.totalorder %s166, %s180
      %p182 = scmp.eq.s32.totalorder %s25, 0
      %p183 = por %p181, %p182
      %s185 = sadd.s32 %s184, 1
      %p188 = scmp.eq.s32.totalorder %s19, 1
      %p189 = scmp.ne.s32.totalorder %s184, %s186
      %p190 = scmp.eq.s32.totalorder %s19, 0
      %p191 = por %p189, %p190
      %p192 = scmp.ne.s32.totalorder %s184, %s186
      %p193 = scmp.eq.s32.totalorder %s24, 1
      %p194 = por %p192, %p193
      %p195 = scmp.ne.s32.totalorder %s186, %s187
      %p196 = scmp.eq.s32.totalorder %s24, 0
      %p197 = por %p195, %p196
      %p198 = scmp.ne.s32.totalorder %s186, %s187
      %p199 = scmp.eq.s32.totalorder %s25, 1
      %p200 = por %p198, %p199
      %p202 = scmp.ne.s32.totalorder %s187, %s201
      %p203 = scmp.eq.s32.totalorder %s25, 0
      %p204 = por %p202, %p203
      %s205 = ssub.s32 %s19, %s26
      %p206 = scmp.eq.s32.totalorder %s205, 0
      %s208 = sadd.s32 %s207, 1
      %s209 = scalar_select %p206, %s207, %s208
      %p212 = pneg %p206
      %p213 = scmp.eq.s32.totalorder %s19, 1
      %p214 = por %p212, %p213
      %p215 = scmp.ne.s32.totalorder %s207, %s210
      %p216 = scmp.eq.s32.totalorder %s19, 0
      %p217 = por %p215, %p216
      %p218 = scmp.ne.s32.totalorder %s207, %s210
      %p219 = scmp.eq.s32.totalorder %s24, 1
      %p220 = por %p218, %p219
      %p221 = scmp.ne.s32.totalorder %s210, %s211
      %p222 = scmp.eq.s32.totalorder %s24, 0
      %p223 = por %p221, %p222
      %p224 = scmp.ne.s32.totalorder %s210, %s211
      %p225 = scmp.eq.s32.totalorder %s25, 1
      %p226 = por %p224, %p225
      %p228 = scmp.ne.s32.totalorder %s211, %s227
      %p229 = scmp.eq.s32.totalorder %s25, 0
      %p230 = por %p228, %p229
      %s231 = ssub.s32 %s19, %s26
      %p232 = scmp.eq.s32.totalorder %s231, 0
      %s234 = sadd.s32 %s233, 1
      %s235 = scalar_select %p232, %s233, %s234
      %p238 = pneg %p232
      %p239 = scmp.eq.s32.totalorder %s19, 1
      %p240 = por %p238, %p239
      %p241 = scmp.ne.s32.totalorder %s233, %s236
      %p242 = scmp.eq.s32.totalorder %s19, 0
      %p243 = por %p241, %p242
      %p244 = scmp.ne.s32.totalorder %s233, %s236
      %p245 = scmp.eq.s32.totalorder %s24, 1
      %p246 = por %p244, %p245
      %p247 = scmp.ne.s32.totalorder %s236, %s237
      %p248 = scmp.eq.s32.totalorder %s24, 0
      %p249 = por %p247, %p248
      %p250 = scmp.ne.s32.totalorder %s236, %s237
      %p251 = scmp.eq.s32.totalorder %s25, 1
      %p252 = por %p250, %p251
      %p254 = scmp.ne.s32.totalorder %s237, %s253
      %p255 = scmp.eq.s32.totalorder %s25, 0
      %p256 = por %p254, %p255
      %p257 = scmp.le.s32.totalorder 1, %s19
      %p258 = scmp.lt.s32.totalorder %s19, 3
      %p259 = pnand %p257, %p258
      %p260 = pneg %p259
      // Predicated region
      $region9: #{baseline_classifier_forward.1} parent=5 // pred_check
        _
      $region10: #{baseline_classifier_forward.1} parent=5 // pred_check_branch
        %262 = sbr.rel (%p259) target = $region12
      $region11: #{baseline_classifier_forward.1} parent=5 // pred_region
        %s263 = ssub.s32 %s19, 1
        // Predicated region
        $region13: #{baseline_classifier_forward.1} parent=11 // pred_check
          %p264 = pneg %p92
        $region14: #{baseline_classifier_forward.1} parent=11 // pred_check_branch
          %266 = sbr.rel (%p264) target = $region16
        $region15: #{baseline_classifier_forward.1} parent=11 // pred_region
          %s268 = ssub.s32 2304, 2304
          %269 = vsyncadd [#allocation4], %s268
          %s270 = sshll.u32 [#allocation3], 4
          %s271 = int_to_ptr.vmem [resolvable:$true] %s270
          %276 = dma.hbm_to_vmem [thread:$0]  %s2, 2304, %s271, [#allocation4], 768, 768, 48
        $region16: #{baseline_classifier_forward.1} parent=11 // pred_fallthru
          _
        // Predicated region
        $region17: #{baseline_classifier_forward.1} parent=11 // pred_check
          %p277 = pneg %p113
        $region18: #{baseline_classifier_forward.1} parent=11 // pred_check_branch
          %279 = sbr.rel (%p277) target = $region20
        $region19: #{baseline_classifier_forward.1} parent=11 // pred_region
          %s281 = ssub.s32 12288, 12288
          %282 = vsyncadd [#allocation6], %s281
          %s283 = sshll.u32 [#allocation5], 4
          %s284 = int_to_ptr.vmem [resolvable:$true] %s283
          %289 = dma.hbm_to_vmem [thread:$0]  %s3, 12288, %s284, [#allocation6], 384, 384, 24
        $region20: #{baseline_classifier_forward.1} parent=11 // pred_fallthru
          _
        // Predicated region
        $region21: #{baseline_classifier_forward.1} parent=11 // pred_check
          %p290 = pneg %p134
        $region22: #{baseline_classifier_forward.1} parent=11 // pred_check_branch
          %292 = sbr.rel (%p290) target = $region24
        $region23: #{baseline_classifier_forward.1} parent=11 // pred_region
          _
        $region24: #{baseline_classifier_forward.1} parent=11 // pred_fallthru
          _
        // Predicated region
        $region25: #{baseline_classifier_forward.1} parent=11 // pred_check
          %p293 = pneg %p155
        $region26: #{baseline_classifier_forward.1} parent=11 // pred_check_branch
          %295 = sbr.rel (%p293) target = $region28
        $region27: #{baseline_classifier_forward.1} parent=11 // pred_region
          %s297 = ssub.s32 8192, 8192
          %298 = vsyncadd [#allocation6], %s297
          %s299 = sshll.u32 [#allocation7], 4
          %s300 = int_to_ptr.vmem [resolvable:$true] %s299
          %305 = dma.hbm_to_vmem [thread:$0]  %s5, 8192, %s300, [#allocation6], 256, 256, 16
        $region28: #{baseline_classifier_forward.1} parent=11 // pred_fallthru
          _
        // Predicated region
        $region29: #{baseline_classifier_forward.1} parent=11 // pred_check
          %p306 = pneg %p176
        $region30: #{baseline_classifier_forward.1} parent=11 // pred_check_branch
          %308 = sbr.rel (%p306) target = $region32
        $region31: #{baseline_classifier_forward.1} parent=11 // pred_region
          %s310 = ssub.s32 8192, 8192
          %311 = vsyncadd [#allocation9], %s310
          %s312 = sshll.u32 [#allocation8], 4
          %s313 = int_to_ptr.vmem [resolvable:$true] %s312
          %318 = dma.hbm_to_vmem [thread:$0]  %s6, 8192, %s313, [#allocation9], 64, 64, 4
        $region32: #{baseline_classifier_forward.1} parent=11 // pred_fallthru
          _
        // Predicated region
        $region33: #{baseline_classifier_forward.1} parent=11 // pred_check
          %p319 = pneg %p197
        $region34: #{baseline_classifier_forward.1} parent=11 // pred_check_branch
          %321 = sbr.rel (%p319) target = $region36
        $region35: #{baseline_classifier_forward.1} parent=11 // pred_region
          %s323 = ssub.s32 4096, 4096
          %324 = vsyncadd [#allocation9], %s323
          %s325 = sshll.u32 [#allocation10], 4
          %s326 = int_to_ptr.vmem [resolvable:$true] %s325
          %331 = dma.hbm_to_vmem [thread:$0]  %s7, 4096, %s326, [#allocation9], 256, 256, 16
        $region36: #{baseline_classifier_forward.1} parent=11 // pred_fallthru
          _
      $region12: #{baseline_classifier_forward.1} parent=5 // pred_fallthru
        _
      %p332 = scmp.lt.s32.totalorder %s19, 2
      // Predicated region
      $region37: #{baseline_classifier_forward.1} parent=5 // pred_check
        %p333 = pneg %p332
      $region38: #{baseline_classifier_forward.1} parent=5 // pred_check_branch
        %335 = sbr.rel (%p333) target = $region40
      $region39: #{baseline_classifier_forward.1} parent=5 // pred_region
        // Predicated region
        $region41: #{baseline_classifier_forward.1} parent=39 // pred_check
          %p336 = pneg %p39
        $region42: #{baseline_classifier_forward.1} parent=39 // pred_check_branch
          %338 = sbr.rel (%p336) target = $region44
        $region43: #{baseline_classifier_forward.1} parent=39 // pred_region
          %p339 = scmp.lt.s32.totalorder %s19, 1
          %s340 = scalar_select %p339, %s19, 1
          %s341 = smul.addr %s340, 8
          %s342 = scalar_lea.vmem %s0, %s341
        $region44: #{baseline_classifier_forward.1} parent=39 // pred_fallthru
          _
        // Predicated region
        $region45: #{baseline_classifier_forward.1} parent=39 // pred_check
          %p343 = pneg %p65
        $region46: #{baseline_classifier_forward.1} parent=39 // pred_check_branch
          %345 = sbr.rel (%p343) target = $region48
        $region47: #{baseline_classifier_forward.1} parent=39 // pred_region
          %p346 = scmp.lt.s32.totalorder %s19, 1
          %s347 = scalar_select %p346, %s19, 1
          %s348 = smul.addr %s347, 8
          %s349 = scalar_lea.vmem %s1, %s348
        $region48: #{baseline_classifier_forward.1} parent=39 // pred_fallthru
          _
      $region40: #{baseline_classifier_forward.1} parent=5 // pred_fallthru
        _
      %p350 = scmp.le.s32.totalorder 1, %s19
      %p351 = scmp.lt.s32.totalorder %s19, 3
      %p352 = pnand %p350, %p351
      %p353 = pneg %p352
      // Predicated region
      $region49: #{baseline_classifier_forward.1} parent=5 // pred_check
        _
      $region50: #{baseline_classifier_forward.1} parent=5 // pred_check_branch
        %355 = sbr.rel (%p352) target = $region52
      $region51: #{baseline_classifier_forward.1} parent=5 // pred_region
        %s356 = ssub.s32 %s19, 1
        // Predicated region
        $region53: #{baseline_classifier_forward.1} parent=51 // pred_check
          %p357 = pneg %p92
        $region54: #{baseline_classifier_forward.1} parent=51 // pred_check_branch
          %359 = sbr.rel (%p357) target = $region56
        $region55: #{baseline_classifier_forward.1} parent=51 // pred_region
          %360 = dma.done [#allocation4], 2304
        $region56: #{baseline_classifier_forward.1} parent=51 // pred_fallthru
          _
        // Predicated region
        $region57: #{baseline_classifier_forward.1} parent=51 // pred_check
          %p361 = pneg %p113
        $region58: #{baseline_classifier_forward.1} parent=51 // pred_check_branch
          %363 = sbr.rel (%p361) target = $region60
        $region59: #{baseline_classifier_forward.1} parent=51 // pred_region
          %364 = dma.done [#allocation6], 12288
        $region60: #{baseline_classifier_forward.1} parent=51 // pred_fallthru
          _
        // Predicated region
        $region61: #{baseline_classifier_forward.1} parent=51 // pred_check
          %p365 = pneg %p155
        $region62: #{baseline_classifier_forward.1} parent=51 // pred_check_branch
          %367 = sbr.rel (%p365) target = $region64
        $region63: #{baseline_classifier_forward.1} parent=51 // pred_region
          %368 = dma.done [#allocation6], 8192
        $region64: #{baseline_classifier_forward.1} parent=51 // pred_fallthru
          _
        // Predicated region
        $region65: #{baseline_classifier_forward.1} parent=51 // pred_check
          %p369 = pneg %p176
        $region66: #{baseline_classifier_forward.1} parent=51 // pred_check_branch
          %371 = sbr.rel (%p369) target = $region68
        $region67: #{baseline_classifier_forward.1} parent=51 // pred_region
          %372 = dma.done [#allocation9], 8192
        $region68: #{baseline_classifier_forward.1} parent=51 // pred_fallthru
          _
        // Predicated region
        $region69: #{baseline_classifier_forward.1} parent=51 // pred_check
          %p373 = pneg %p197
        $region70: #{baseline_classifier_forward.1} parent=51 // pred_check_branch
          %375 = sbr.rel (%p373) target = $region72
        $region71: #{baseline_classifier_forward.1} parent=51 // pred_region
          %376 = dma.done [#allocation9], 4096
        $region72: #{baseline_classifier_forward.1} parent=51 // pred_fallthru
          _
        %p377 = scmp.lt.s32.totalorder %s24, 1
        %s378 = scalar_select %p377, %s24, 1
        %s379 = smul.addr %s378, 8
        %s380 = scalar_lea.vmem %s0, %s379
        %p381 = pneg %p45
        %p382 = pneg %p42
        %p383 = scmp.lt.s32.totalorder %s24, 1
        %s384 = scalar_select %p383, %s24, 1
        %s385 = smul.addr %s384, 8
        %s386 = scalar_lea.vmem %s1, %s385
        %p387 = pneg %p71
        %p388 = pneg %p68
        %p389 = pneg %p92
        %p390 = pneg %p89
        %p391 = pneg %p113
        %p392 = pneg %p110
        %p393 = pneg %p134
        %p394 = pneg %p131
        %p395 = pneg %p155
        %p396 = pneg %p152
        %p397 = pneg %p176
        %p398 = pneg %p173
        %p399 = pneg %p197
        %p400 = pneg %p194
        %p401 = pneg %p223
        %p402 = pneg %p220
        %p403 = scmp.lt.s32.totalorder %s24, 1
        %s404 = scalar_select %p403, %s24, 1
        %s405 = smul.addr %s404, 4
        %s406 = smul.addr %s405, 8
        %s407 = scalar_lea.vmem %s8, %s406
        %p408 = pneg %p249
        %p409 = pneg %p246
        %p410 = scmp.lt.s32.totalorder %s24, 1
        %s411 = scalar_select %p410, %s24, 1
        %s412 = smul.addr %s411, 4
        %s413 = smul.addr %s412, 8
        %s414 = scalar_lea.vmem %s9, %s413
        %p415 = scmp.lt.s32.totalorder %s24, 1
        %s416 = scalar_select %p415, %s24, 1
        %s417 = smul.addr %s416, 8
        %s418 = scalar_lea.vmem %s0, %s417
        %p419 = scmp.lt.s32.totalorder %s24, 1
        %s420 = scalar_select %p419, %s24, 1
        %s421 = smul.addr %s420, 8
        %s422 = scalar_lea.vmem %s1, %s421
        %p423 = scmp.lt.s32.totalorder %s24, 1
        %s424 = scalar_select %p423, %s24, 1
        %s425 = smul.addr %s424, 4
        %s426 = smul.addr %s425, 8
        %s427 = scalar_lea.vmem %s8, %s426
        %p428 = scmp.lt.s32.totalorder %s24, 1
        %s429 = scalar_select %p428, %s24, 1
        %s430 = smul.addr %s429, 4
        %s431 = smul.addr %s430, 8
        %s432 = scalar_lea.vmem %s9, %s431
        %v434 = vld [vmem:[%s418] sm:$0xff]
        %v435 = vld [vmem:[#allocation3 + $0x60] ss:$0 sm:$0xff]
        %v436 = vld [vmem:[#allocation3 + $0x61] ss:$0 sm:$0xff]
        %437 = vadd.xlane.f32.xlu0 %v434
        %v438 = vpop.xlane.xlu0 %437
        %v439 = vrcp.pop 128.0
        %v440 = vmul.f32 %v438, %v439
        %v441 = vsub.f32 %v434, %v440
        %v442 = vmul.f32 %v441, %v441
        %443 = vadd.xlane.f32.xlu0 %v442
        %v444 = vpop.xlane.xlu0 %443
        %v445 = vmul.f32 %v444, %v439
        %v446 = vadd.f32 %v445, 1e-12
        %v447 = vrsqrt.pop %v446
        %v448 = vmul.f32 %v441, %v447
        %v449 = vmul.f32 %v448, %v435
        %v450 = vadd.f32 %v449, %v436
        %v451 = vld [vmem:[%s422] sm:$0xff]
        %v452 = vld [vmem:[#allocation5] sm:$0xff]
        %v453 = vld [vmem:[#allocation5 + $0x8] sm:$0xff]
        %v454 = vld [vmem:[#allocation5 + $0x10] sm:$0xff]
        %v455 = vld [vmem:[#allocation5 + $0x18] sm:$0xff]
        %v456 = vld [vmem:[#allocation5 + $0x20] sm:$0xff]
        %v457 = vld [vmem:[#allocation5 + $0x28] sm:$0xff]
        %v458 = vld [vmem:[#allocation5 + $0x30] sm:$0xff]
        %v459 = vld [vmem:[#allocation5 + $0x38] sm:$0xff]
        %v460 = vld [vmem:[#allocation5 + $0x40] sm:$0xff]
        %v461 = vld [vmem:[#allocation5 + $0x48] sm:$0xff]
        %v462 = vld [vmem:[#allocation5 + $0x50] sm:$0xff]
        %v463 = vld [vmem:[#allocation5 + $0x58] sm:$0xff]
        %v464 = vld [vmem:[#allocation5 + $0x60] sm:$0xff]
        %v465 = vld [vmem:[#allocation5 + $0x68] sm:$0xff]
        %v466 = vld [vmem:[#allocation5 + $0x70] sm:$0xff]
        %v467 = vld [vmem:[#allocation5 + $0x78] sm:$0xff]
        %v468 = vld [vmem:[#allocation5 + $0x80] sm:$0xff]
        %v469 = vld [vmem:[#allocation5 + $0x88] sm:$0xff]
        %v470 = vld [vmem:[#allocation5 + $0x90] sm:$0xff]
        %v471 = vld [vmem:[#allocation5 + $0x98] sm:$0xff]
        %v472 = vld [vmem:[#allocation5 + $0xa0] sm:$0xff]
        %v473 = vld [vmem:[#allocation5 + $0xa8] sm:$0xff]
        %v474 = vld [vmem:[#allocation5 + $0xb0] sm:$0xff]
        %v475 = vld [vmem:[#allocation5 + $0xb8] sm:$0xff]
        %v476 = vld [vmem:[#allocation5 + $0xc0] sm:$0xff]
        %v477 = vld [vmem:[#allocation5 + $0xc8] sm:$0xff]
        %v478 = vld [vmem:[#allocation5 + $0xd0] sm:$0xff]
        %v479 = vld [vmem:[#allocation5 + $0xd8] sm:$0xff]
        %v480 = vld [vmem:[#allocation5 + $0xe0] sm:$0xff]
        %v481 = vld [vmem:[#allocation5 + $0xe8] sm:$0xff]
        %v482 = vld [vmem:[#allocation5 + $0xf0] sm:$0xff]
        %v483 = vld [vmem:[#allocation5 + $0xf8] sm:$0xff]
        %v484 = vld [vmem:[#allocation5 + $0x100] sm:$0xff]
        %v485 = vld [vmem:[#allocation5 + $0x108] sm:$0xff]
        %v486 = vld [vmem:[#allocation5 + $0x110] sm:$0xff]
        %v487 = vld [vmem:[#allocation5 + $0x118] sm:$0xff]
        %v488 = vld [vmem:[#allocation5 + $0x120] sm:$0xff]
        %v489 = vld [vmem:[#allocation5 + $0x128] sm:$0xff]
        %v490 = vld [vmem:[#allocation5 + $0x130] sm:$0xff]
        %v491 = vld [vmem:[#allocation5 + $0x138] sm:$0xff]
        %v492 = vld [vmem:[#allocation5 + $0x140] sm:$0xff]
        %v493 = vld [vmem:[#allocation5 + $0x148] sm:$0xff]
        %v494 = vld [vmem:[#allocation5 + $0x150] sm:$0xff]
        %v495 = vld [vmem:[#allocation5 + $0x158] sm:$0xff]
        %v496 = vld [vmem:[#allocation5 + $0x160] sm:$0xff]
        %v497 = vld [vmem:[#allocation5 + $0x168] sm:$0xff]
        %v498 = vld [vmem:[#allocation5 + $0x170] sm:$0xff]
        %v499 = vld [vmem:[#allocation5 + $0x178] sm:$0xff]
        %v500 = vpack.c.bf16 %v450, %v450
        %v501 = vld [vmem:[#allocation3] ss:$8 sm:$0xf]
        %v502 = vld [vmem:[#allocation3] ss:$8 sm:$0x30]
        %v503 = vor.u32 %v501, %v502
        %v505 = vlaneseq
        %v506 = vshrl.u32 %v505, 7
        %v507 = vsub.s32 0, %v506
        %v508 = vrot.slane %v503, %v507
        %v509 = vlaneseq
        %v510 = vshrl.u32 %v509, 7
        %v511 = vsub.s32 1, %v510
        %v512 = vrot.slane %v503, %v511
        %v513 = vlaneseq
        %v514 = vshrl.u32 %v513, 7
        %v515 = vsub.s32 2, %v514
        %v516 = vrot.slane %v503, %v515
        %v517 = vlaneseq
        %v518 = vshrl.u32 %v517, 7
        %v519 = vsub.s32 3, %v518
        %v520 = vrot.slane %v503, %v519
        %v521 = vlaneseq
        %v522 = vshrl.u32 %v521, 7
        %v523 = vsub.s32 4, %v522
        %v524 = vrot.slane %v503, %v523
        %v525 = vlaneseq
        %v526 = vshrl.u32 %v525, 7
        %v527 = vsub.s32 5, %v526
        %v528 = vrot.slane %v503, %v527
        %v583 = vunpack.c.l.b16 %v452
        %v584 = vunpack.c.h.b16 %v452
        %v585 = vunpack.c.l.b16 %v453
        %v586 = vunpack.c.h.b16 %v453
        %v587 = vunpack.c.l.b16 %v454
        %v588 = vunpack.c.h.b16 %v454
        %v589 = vunpack.c.l.b16 %v455
        %v590 = vunpack.c.h.b16 %v455
        %v591 = vunpack.c.l.b16 %v456
        %v592 = vunpack.c.h.b16 %v456
        %v593 = vunpack.c.l.b16 %v457
        %v594 = vunpack.c.h.b16 %v457
        %v595 = vunpack.c.l.b16 %v458
        %v596 = vunpack.c.h.b16 %v458
        %v597 = vunpack.c.l.b16 %v459
        %v598 = vunpack.c.h.b16 %v459
        %v599 = vunpack.c.l.b16 %v460
        %v600 = vunpack.c.h.b16 %v460
        %v601 = vunpack.c.l.b16 %v461
        %v602 = vunpack.c.h.b16 %v461
        %v603 = vunpack.c.l.b16 %v462
        %v604 = vunpack.c.h.b16 %v462
        %v605 = vunpack.c.l.b16 %v463
        %v606 = vunpack.c.h.b16 %v463
        %v607 = vunpack.c.l.b16 %v464
        %v608 = vunpack.c.h.b16 %v464
        %v609 = vunpack.c.l.b16 %v465
        %v610 = vunpack.c.h.b16 %v465
        %v611 = vunpack.c.l.b16 %v466
        %v612 = vunpack.c.h.b16 %v466
        %v613 = vunpack.c.l.b16 %v467
        %v614 = vunpack.c.h.b16 %v467
        %v615 = vunpack.c.l.b16 %v468
        %v616 = vunpack.c.h.b16 %v468
        %v617 = vunpack.c.l.b16 %v469
        %v618 = vunpack.c.h.b16 %v469
        %v619 = vunpack.c.l.b16 %v470
        %v620 = vunpack.c.h.b16 %v470
        %v621 = vunpack.c.l.b16 %v471
        %v622 = vunpack.c.h.b16 %v471
        %v623 = vunpack.c.l.b16 %v472
        %v624 = vunpack.c.h.b16 %v472
        %v625 = vunpack.c.l.b16 %v473
        %v626 = vunpack.c.h.b16 %v473
        %v627 = vunpack.c.l.b16 %v474
        %v628 = vunpack.c.h.b16 %v474
        %v629 = vunpack.c.l.b16 %v475
        %v630 = vunpack.c.h.b16 %v475
        %v631 = vunpack.c.l.b16 %v476
        %v632 = vunpack.c.h.b16 %v476
        %v633 = vunpack.c.l.b16 %v477
        %v634 = vunpack.c.h.b16 %v477
        %v635 = vunpack.c.l.b16 %v478
        %v636 = vunpack.c.h.b16 %v478
        %v637 = vunpack.c.l.b16 %v479
        %v638 = vunpack.c.h.b16 %v479
        %v639 = vunpack.c.l.b16 %v480
        %v640 = vunpack.c.h.b16 %v480
        %v641 = vunpack.c.l.b16 %v481
        %v642 = vunpack.c.h.b16 %v481
        %v643 = vunpack.c.l.b16 %v482
        %v644 = vunpack.c.h.b16 %v482
        %v645 = vunpack.c.l.b16 %v483
        %v646 = vunpack.c.h.b16 %v483
        %v647 = vunpack.c.l.b16 %v484
        %v648 = vunpack.c.h.b16 %v484
        %v649 = vunpack.c.l.b16 %v485
        %v650 = vunpack.c.h.b16 %v485
        %v651 = vunpack.c.l.b16 %v486
        %v652 = vunpack.c.h.b16 %v486
        %v653 = vunpack.c.l.b16 %v487
        %v654 = vunpack.c.h.b16 %v487
        %v655 = vunpack.c.l.b16 %v488
        %v656 = vunpack.c.h.b16 %v488
        %v657 = vunpack.c.l.b16 %v489
        %v658 = vunpack.c.h.b16 %v489
        %v659 = vunpack.c.l.b16 %v490
        %v660 = vunpack.c.h.b16 %v490
        %v661 = vunpack.c.l.b16 %v491
        %v662 = vunpack.c.h.b16 %v491
        %v663 = vunpack.c.l.b16 %v492
        %v664 = vunpack.c.h.b16 %v492
        %v665 = vunpack.c.l.b16 %v493
        %v666 = vunpack.c.h.b16 %v493
        %v667 = vunpack.c.l.b16 %v494
        %v668 = vunpack.c.h.b16 %v494
        %v669 = vunpack.c.l.b16 %v495
        %v670 = vunpack.c.h.b16 %v495
        %v671 = vunpack.c.l.b16 %v496
        %v672 = vunpack.c.h.b16 %v496
        %v673 = vunpack.c.l.b16 %v497
        %v674 = vunpack.c.h.b16 %v497
        %v675 = vunpack.c.l.b16 %v498
        %v676 = vunpack.c.h.b16 %v498
        %v677 = vunpack.c.l.b16 %v499
        %v678 = vunpack.c.h.b16 %v499
        %v679 = vpack.c.b16 %v589, %v583
        %v680 = vpack.c.b16 %v590, %v584
        %v681 = vpack.c.b16 %v591, %v585
        %v682 = vpack.c.b16 %v592, %v586
        %v683 = vpack.c.b16 %v593, %v587
        %v684 = vpack.c.b16 %v594, %v588
        %v685 = vpack.c.b16 %v601, %v595
        %v686 = vpack.c.b16 %v602, %v596
        %v687 = vpack.c.b16 %v603, %v597
        %v688 = vpack.c.b16 %v604, %v598
        %v689 = vpack.c.b16 %v605, %v599
        %v690 = vpack.c.b16 %v606, %v600
        %v691 = vpack.c.b16 %v613, %v607
        %v692 = vpack.c.b16 %v614, %v608
        %v693 = vpack.c.b16 %v615, %v609
        %v694 = vpack.c.b16 %v616, %v610
        %v695 = vpack.c.b16 %v617, %v611
        %v696 = vpack.c.b16 %v618, %v612
        %v697 = vpack.c.b16 %v625, %v619
        %v698 = vpack.c.b16 %v626, %v620
        %v699 = vpack.c.b16 %v627, %v621
        %v700 = vpack.c.b16 %v628, %v622
        %v701 = vpack.c.b16 %v629, %v623
        %v702 = vpack.c.b16 %v630, %v624
        %v703 = vpack.c.b16 %v637, %v631
        %v704 = vpack.c.b16 %v638, %v632
        %v705 = vpack.c.b16 %v639, %v633
        %v706 = vpack.c.b16 %v640, %v634
        %v707 = vpack.c.b16 %v641, %v635
        %v708 = vpack.c.b16 %v642, %v636
        %v709 = vpack.c.b16 %v649, %v643
        %v710 = vpack.c.b16 %v650, %v644
        %v711 = vpack.c.b16 %v651, %v645
        %v712 = vpack.c.b16 %v652, %v646
        %v713 = vpack.c.b16 %v653, %v647
        %v714 = vpack.c.b16 %v654, %v648
        %v715 = vpack.c.b16 %v661, %v655
        %v716 = vpack.c.b16 %v662, %v656
        %v717 = vpack.c.b16 %v663, %v657
        %v718 = vpack.c.b16 %v664, %v658
        %v719 = vpack.c.b16 %v665, %v659
        %v720 = vpack.c.b16 %v666, %v660
        %v721 = vpack.c.b16 %v673, %v667
        %v722 = vpack.c.b16 %v674, %v668
        %v723 = vpack.c.b16 %v675, %v669
        %v724 = vpack.c.b16 %v676, %v670
        %v725 = vpack.c.b16 %v677, %v671
        %v726 = vpack.c.b16 %v678, %v672
        %775 = vmatprep.subr.bf16.mxu0 %v680
        %776 = vmatpush1.bf16.msra.mxu0 %v679
        %777 = vmatprep.subr.bf16.mxu0 %v686
        %778 = vmatpush1.bf16.msra.mxu0 %v685
        %779 = vmatprep.subr.bf16.mxu0 %v692
        %780 = vmatpush1.bf16.msra.mxu0 %v691
        %781 = vmatprep.subr.bf16.mxu0 %v698
        %782 = vmatpush1.bf16.msra.mxu0 %v697
        %783 = vmatprep.subr.bf16.mxu0 %v704
        %784 = vmatpush1.bf16.msra.mxu0 %v703
        %785 = vmatprep.subr.bf16.mxu0 %v710
        %786 = vmatpush1.bf16.msra.mxu0 %v709
        %787 = vmatprep.subr.bf16.mxu0 %v716
        %788 = vmatpush1.bf16.msra.mxu0 %v715
        %789 = vmatprep.subr.bf16.mxu0 %v722
        %790 = vmatpush1.bf16.msra.mxu0 %v721
        %791 = vmatprep.subr.bf16.mxu0 0
        %792 = vmatpush1.bf16.msra.mxu0 0
        %793 = vmatprep.subr.bf16.mxu0 0
        %794 = vmatpush1.bf16.msra.mxu0 0
        %795 = vmatprep.subr.bf16.mxu0 0
        %796 = vmatpush1.bf16.msra.mxu0 0
        %797 = vmatprep.subr.bf16.mxu0 0
        %798 = vmatpush1.bf16.msra.mxu0 0
        %799 = vmatprep.subr.bf16.mxu0 0
        %800 = vmatpush1.bf16.msra.mxu0 0
        %801 = vmatprep.subr.bf16.mxu0 0
        %802 = vmatpush1.bf16.msra.mxu0 0
        %803 = vmatprep.subr.bf16.mxu0 0
        %804 = vmatpush1.bf16.msra.mxu0 0
        %805 = vmatprep.subr.bf16.mxu0 0
        %806 = vmatpush1.bf16.msra.mxu0 0
        %807 = vmatprep.mubr.bf16.mxu0 0
        %808 = vmatmul.mubr.bf16.gmra.mrb[0].mxu0 %v500
        %v809 = vpop.f32.mrb[0].mxu0
        %v810 = vadd.f32 %v508, %v809
        %v811 = vpop.f32.mrb[0].mxu0
        %v812 = vadd.f32 %v512, %v811
        %v813 = vpop.f32.mrb[0].mxu0
        %v814 = vpop.f32.mrb[0].mxu0
        %815 = vdwg.mxu0
        %816 = vmatprep.subr.bf16.mxu0 %v682
        %817 = vmatpush1.bf16.msra.mxu0 %v681
        %818 = vmatprep.subr.bf16.mxu0 %v688
        %819 = vmatpush1.bf16.msra.mxu0 %v687
        %820 = vmatprep.subr.bf16.mxu0 %v694
        %821 = vmatpush1.bf16.msra.mxu0 %v693
        %822 = vmatprep.subr.bf16.mxu0 %v700
        %823 = vmatpush1.bf16.msra.mxu0 %v699
        %824 = vmatprep.subr.bf16.mxu0 %v706
        %825 = vmatpush1.bf16.msra.mxu0 %v705
        %826 = vmatprep.subr.bf16.mxu0 %v712
        %827 = vmatpush1.bf16.msra.mxu0 %v711
        %828 = vmatprep.subr.bf16.mxu0 %v718
        %829 = vmatpush1.bf16.msra.mxu0 %v717
        %830 = vmatprep.subr.bf16.mxu0 %v724
        %831 = vmatpush1.bf16.msra.mxu0 %v723
        %832 = vmatprep.subr.bf16.mxu0 0
        %833 = vmatpush1.bf16.msra.mxu0 0
        %834 = vmatprep.subr.bf16.mxu0 0
        %835 = vmatpush1.bf16.msra.mxu0 0
        %836 = vmatprep.subr.bf16.mxu0 0
        %837 = vmatpush1.bf16.msra.mxu0 0
        %838 = vmatprep.subr.bf16.mxu0 0
        %839 = vmatpush1.bf16.msra.mxu0 0
        %840 = vmatprep.subr.bf16.mxu0 0
        %841 = vmatpush1.bf16.msra.mxu0 0
        %842 = vmatprep.subr.bf16.mxu0 0
        %843 = vmatpush1.bf16.msra.mxu0 0
        %844 = vmatprep.subr.bf16.mxu0 0
        %845 = vmatpush1.bf16.msra.mxu0 0
        %846 = vmatprep.subr.bf16.mxu0 0
        %847 = vmatpush1.bf16.msra.mxu0 0
        %848 = vmatprep.mubr.bf16.mxu0 0
        %849 = vmatmul.mubr.bf16.gmra.mrb[0].mxu0 %v500
        %v850 = vpop.f32.mrb[0].mxu0
        %v851 = vadd.f32 %v516, %v850
        %v852 = vpop.f32.mrb[0].mxu0
        %v853 = vadd.f32 %v520, %v852
        %v854 = vpop.f32.mrb[0].mxu0
        %v855 = vpop.f32.mrb[0].mxu0
        %856 = vdwg.mxu0
        %857 = vmatprep.subr.bf16.mxu0 %v684
        %858 = vmatpush1.bf16.msra.mxu0 %v683
        %859 = vmatprep.subr.bf16.mxu0 %v690
        %860 = vmatpush1.bf16.msra.mxu0 %v689
        %861 = vmatprep.subr.bf16.mxu0 %v696
        %862 = vmatpush1.bf16.msra.mxu0 %v695
        %863 = vmatprep.subr.bf16.mxu0 %v702
        %864 = vmatpush1.bf16.msra.mxu0 %v701
        %865 = vmatprep.subr.bf16.mxu0 %v708
        %866 = vmatpush1.bf16.msra.mxu0 %v707
        %867 = vmatprep.subr.bf16.mxu0 %v714
        %868 = vmatpush1.bf16.msra.mxu0 %v713
        %869 = vmatprep.subr.bf16.mxu0 %v720
        %870 = vmatpush1.bf16.msra.mxu0 %v719
        %871 = vmatprep.subr.bf16.mxu0 %v726
        %872 = vmatpush1.bf16.msra.mxu0 %v725
        %873 = vmatprep.subr.bf16.mxu0 0
        %874 = vmatpush1.bf16.msra.mxu0 0
        %875 = vmatprep.subr.bf16.mxu0 0
        %876 = vmatpush1.bf16.msra.mxu0 0
        %877 = vmatprep.subr.bf16.mxu0 0
        %878 = vmatpush1.bf16.msra.mxu0 0
        %879 = vmatprep.subr.bf16.mxu0 0
        %880 = vmatpush1.bf16.msra.mxu0 0
        %881 = vmatprep.subr.bf16.mxu0 0
        %882 = vmatpush1.bf16.msra.mxu0 0
        %883 = vmatprep.subr.bf16.mxu0 0
        %884 = vmatpush1.bf16.msra.mxu0 0
        %885 = vmatprep.subr.bf16.mxu0 0
        %886 = vmatpush1.bf16.msra.mxu0 0
        %887 = vmatprep.subr.bf16.mxu0 0
        %888 = vmatpush1.bf16.msra.mxu0 0
        %889 = vmatprep.mubr.bf16.mxu0 0
        %890 = vmatmul.mubr.bf16.gmra.mrb[0].mxu0 %v500
        %v891 = vpop.f32.mrb[0].mxu0
        %v892 = vadd.f32 %v524, %v891
        %v893 = vpop.f32.mrb[0].mxu0
        %v894 = vadd.f32 %v528, %v893
        %v895 = vpop.f32.mrb[0].mxu0
        %v896 = vpop.f32.mrb[0].mxu0
        %897 = vdwg.mxu0
        %v898 = vpack.c.bf16 %v810, %v810
        %v899 = vpack.c.bf16 %v851, %v851
        %v900 = vpack.c.bf16 %v892, %v892
        %901 = vmatprep.subr.bf16.mxu0 0
        %902 = vmatpush1.bf16.xpose.msra.mxu0 %v899
        %903 = vmatprep.subr.bf16.mxu0 0
        %904 = vmatpush1.bf16.xpose.msra.mxu0 0
        %905 = vmatprep.subr.bf16.mxu0 0
        %906 = vmatpush1.bf16.xpose.msra.mxu0 0
        %907 = vmatprep.subr.bf16.mxu0 0
        %908 = vmatpush1.bf16.xpose.msra.mxu0 0
        %909 = vmatprep.subr.bf16.mxu0 0
        %910 = vmatpush1.bf16.xpose.msra.mxu0 0
        %911 = vmatprep.subr.bf16.mxu0 0
        %912 = vmatpush1.bf16.xpose.msra.mxu0 0
        %913 = vmatprep.subr.bf16.mxu0 0
        %914 = vmatpush1.bf16.xpose.msra.mxu0 0
        %915 = vmatprep.subr.bf16.mxu0 0
        %916 = vmatpush1.bf16.xpose.msra.mxu0 0
        %917 = vmatprep.subr.bf16.mxu0 0
        %918 = vmatpush1.bf16.xpose.msra.mxu0 0
        %919 = vmatprep.subr.bf16.mxu0 0
        %920 = vmatpush1.bf16.xpose.msra.mxu0 0
        %921 = vmatprep.subr.bf16.mxu0 0
        %922 = vmatpush1.bf16.xpose.msra.mxu0 0
        %923 = vmatprep.subr.bf16.mxu0 0
        %924 = vmatpush1.bf16.xpose.msra.mxu0 0
        %925 = vmatprep.subr.bf16.mxu0 0
        %926 = vmatpush1.bf16.xpose.msra.mxu0 0
        %927 = vmatprep.subr.bf16.mxu0 0
        %928 = vmatpush1.bf16.xpose.msra.mxu0 0
        %929 = vmatprep.subr.bf16.mxu0 0
        %930 = vmatpush1.bf16.xpose.msra.mxu0 0
        %931 = vmatprep.subr.bf16.mxu0 0
        %932 = vmatpush1.bf16.xpose.msra.mxu0 0
        %933 = vmatprep.mubr.bf16.mxu0 0
        %934 = vmatmul.mubr.bf16.gmra.mrb[0].mxu0 %v898
        %v935 = vpop.f32.mrb[0].mxu0
        %v936 = vadd.f32 %v451, %v935
        %v937 = vpop.f32.mrb[0].mxu0
        %v938 = vpop.f32.mrb[0].mxu0
        %v939 = vpop.f32.mrb[0].mxu0
        %940 = vdwg.mxu0
        %vm941 = vcmask 64512
        %v942 = vsel %vm941, %v936, -inf
        %943 = vmax.xlane.f32.xlu0 %v942
        %v944 = vpop.xlane.xlu0 %943
        %v945 = vsub.f32 %v936, %v944
        %v946 = vmul.f32 %v945, 1.442695
        %v947 = vpow.pop %v946
        %v948 = vsel %vm941, %v947, 0.0
        %949 = vadd.xlane.f32.xlu0 %v948
        %v950 = vpop.xlane.xlu0 %949
        %v951 = vrcp.pop %v950
        %v952 = vmul.f32 %v947, %v951
        %v953 = vpack.c.bf16 %v952, %v952
        %v955 = vsel %vm941, %v953, 0
        %vm957 = vcmask 1043456
        %v959 = vsel %vm957, %v900, 0
        %961 = vmatprep.subr.bf16.mxu0 0
        %962 = vmatpush1.bf16.msra.mxu0 %v959
        %963 = vmatprep.subr.bf16.mxu0 0
        %964 = vmatpush1.bf16.msra.mxu0 0
        %965 = vmatprep.subr.bf16.mxu0 0
        %966 = vmatpush1.bf16.msra.mxu0 0
        %967 = vmatprep.subr.bf16.mxu0 0
        %968 = vmatpush1.bf16.msra.mxu0 0
        %969 = vmatprep.subr.bf16.mxu0 0
        %970 = vmatpush1.bf16.msra.mxu0 0
        %971 = vmatprep.subr.bf16.mxu0 0
        %972 = vmatpush1.bf16.msra.mxu0 0
        %973 = vmatprep.subr.bf16.mxu0 0
        %974 = vmatpush1.bf16.msra.mxu0 0
        %975 = vmatprep.subr.bf16.mxu0 0
        %976 = vmatpush1.bf16.msra.mxu0 0
        %977 = vmatprep.subr.bf16.mxu0 0
        %978 = vmatpush1.bf16.msra.mxu0 0
        %979 = vmatprep.subr.bf16.mxu0 0
        %980 = vmatpush1.bf16.msra.mxu0 0
        %981 = vmatprep.subr.bf16.mxu0 0
        %982 = vmatpush1.bf16.msra.mxu0 0
        %983 = vmatprep.subr.bf16.mxu0 0
        %984 = vmatpush1.bf16.msra.mxu0 0
        %985 = vmatprep.subr.bf16.mxu0 0
        %986 = vmatpush1.bf16.msra.mxu0 0
        %987 = vmatprep.subr.bf16.mxu0 0
        %988 = vmatpush1.bf16.msra.mxu0 0
        %989 = vmatprep.subr.bf16.mxu0 0
        %990 = vmatpush1.bf16.msra.mxu0 0
        %991 = vmatprep.subr.bf16.mxu0 0
        %992 = vmatpush1.bf16.msra.mxu0 0
        %993 = vmatprep.mubr.bf16.mxu0 0
        %994 = vmatmul.mubr.bf16.gmra.mrb[0].mxu0 %v955
        %v995 = vpop.f32.mrb[0].mxu0
        %v996 = vadd.f32 0.0, %v995
        %v997 = vpop.f32.mrb[0].mxu0
        %v998 = vpop.f32.mrb[0].mxu0
        %v999 = vpop.f32.mrb[0].mxu0
        %1000 = vdwg.mxu0
        %1001 = vst [vmem:[#allocation2] sm:$0xff] %v996
        %v1002 = vpack.c.bf16 %v812, %v812
        %v1003 = vpack.c.bf16 %v853, %v853
        %v1004 = vpack.c.bf16 %v894, %v894
        %1005 = vmatprep.subr.bf16.mxu0 0
        %1006 = vmatpush1.bf16.xpose.msra.mxu0 %v1003
        %1007 = vmatprep.subr.bf16.mxu0 0
        %1008 = vmatpush1.bf16.xpose.msra.mxu0 0
        %1009 = vmatprep.subr.bf16.mxu0 0
        %1010 = vmatpush1.bf16.xpose.msra.mxu0 0
        %1011 = vmatprep.subr.bf16.mxu0 0
        %1012 = vmatpush1.bf16.xpose.msra.mxu0 0
        %1013 = vmatprep.subr.bf16.mxu0 0
        %1014 = vmatpush1.bf16.xpose.msra.mxu0 0
        %1015 = vmatprep.subr.bf16.mxu0 0
        %1016 = vmatpush1.bf16.xpose.msra.mxu0 0
        %1017 = vmatprep.subr.bf16.mxu0 0
        %1018 = vmatpush1.bf16.xpose.msra.mxu0 0
        %1019 = vmatprep.subr.bf16.mxu0 0
        %1020 = vmatpush1.bf16.xpose.msra.mxu0 0
        %1021 = vmatprep.subr.bf16.mxu0 0
        %1022 = vmatpush1.bf16.xpose.msra.mxu0 0
        %1023 = vmatprep.subr.bf16.mxu0 0
        %1024 = vmatpush1.bf16.xpose.msra.mxu0 0
        %1025 = vmatprep.subr.bf16.mxu0 0
        %1026 = vmatpush1.bf16.xpose.msra.mxu0 0
        %1027 = vmatprep.subr.bf16.mxu0 0
        %1028 = vmatpush1.bf16.xpose.msra.mxu0 0
        %1029 = vmatprep.subr.bf16.mxu0 0
        %1030 = vmatpush1.bf16.xpose.msra.mxu0 0
        %1031 = vmatprep.subr.bf16.mxu0 0
        %1032 = vmatpush1.bf16.xpose.msra.mxu0 0
        %1033 = vmatprep.subr.bf16.mxu0 0
        %1034 = vmatpush1.bf16.xpose.msra.mxu0 0
        %1035 = vmatprep.subr.bf16.mxu0 0
        %1036 = vmatpush1.bf16.xpose.msra.mxu0 0
        %1037 = vmatprep.mubr.bf16.mxu0 0
        %1038 = vmatmul.mubr.bf16.gmra.mrb[0].mxu0 %v1002
        %v1039 = vpop.f32.mrb[0].mxu0
        %v1040 = vadd.f32 %v451, %v1039
        %v1041 = vpop.f32.mrb[0].mxu0
        %v1042 = vpop.f32.mrb[0].mxu0
        %v1043 = vpop.f32.mrb[0].mxu0
        %1044 = vdwg.mxu0
        %v1045 = vsel %vm941, %v1040, -inf
        %1046 = vmax.xlane.f32.xlu0 %v1045
        %v1047 = vpop.xlane.xlu0 %1046
        %v1048 = vsub.f32 %v1040, %v1047
        %v1049 = vmul.f32 %v1048, 1.442695
        %v1050 = vpow.pop %v1049
        %v1051 = vsel %vm941, %v1050, 0.0
        %1052 = vadd.xlane.f32.xlu0 %v1051
        %v1053 = vpop.xlane.xlu0 %1052
        %v1054 = vrcp.pop %v1053
        %v1055 = vmul.f32 %v1050, %v1054
        %v1056 = vpack.c.bf16 %v1055, %v1055
        %v1058 = vsel %vm941, %v1056, 0
        %v1061 = vsel %vm957, %v1004, 0
        %1063 = vmatprep.subr.bf16.mxu0 0
        %1064 = vmatpush1.bf16.msra.mxu0 %v1061
        %1065 = vmatprep.subr.bf16.mxu0 0
        %1066 = vmatpush1.bf16.msra.mxu0 0
        %1067 = vmatprep.subr.bf16.mxu0 0
        %1068 = vmatpush1.bf16.msra.mxu0 0
        %1069 = vmatprep.subr.bf16.mxu0 0
        %1070 = vmatpush1.bf16.msra.mxu0 0
        %1071 = vmatprep.subr.bf16.mxu0 0
        %1072 = vmatpush1.bf16.msra.mxu0 0
        %1073 = vmatprep.subr.bf16.mxu0 0
        %1074 = vmatpush1.bf16.msra.mxu0 0
        %1075 = vmatprep.subr.bf16.mxu0 0
        %1076 = vmatpush1.bf16.msra.mxu0 0
        %1077 = vmatprep.subr.bf16.mxu0 0
        %1078 = vmatpush1.bf16.msra.mxu0 0
        %1079 = vmatprep.subr.bf16.mxu0 0
        %1080 = vmatpush1.bf16.msra.mxu0 0
        %1081 = vmatprep.subr.bf16.mxu0 0
        %1082 = vmatpush1.bf16.msra.mxu0 0
        %1083 = vmatprep.subr.bf16.mxu0 0
        %1084 = vmatpush1.bf16.msra.mxu0 0
        %1085 = vmatprep.subr.bf16.mxu0 0
        %1086 = vmatpush1.bf16.msra.mxu0 0
        %1087 = vmatprep.subr.bf16.mxu0 0
        %1088 = vmatpush1.bf16.msra.mxu0 0
        %1089 = vmatprep.subr.bf16.mxu0 0
        %1090 = vmatpush1.bf16.msra.mxu0 0
        %1091 = vmatprep.subr.bf16.mxu0 0
        %1092 = vmatpush1.bf16.msra.mxu0 0
        %1093 = vmatprep.subr.bf16.mxu0 0
        %1094 = vmatpush1.bf16.msra.mxu0 0
        %1095 = vmatprep.mubr.bf16.mxu0 0
        %1096 = vmatmul.mubr.bf16.gmra.mrb[0].mxu0 %v1058
        %v1097 = vpop.f32.mrb[0].mxu0
        %v1098 = vadd.f32 0.0, %v1097
        %v1099 = vpop.f32.mrb[0].mxu0
        %v1100 = vpop.f32.mrb[0].mxu0
        %v1101 = vpop.f32.mrb[0].mxu0
        %1102 = vdwg.mxu0
        %1103 = vst [vmem:[#allocation2 + $0x8] sm:$0xff] %v1098
        %v1104 = vld [vmem:[#allocation2] sm:$0xff]
        %v1105 = vld [vmem:[#allocation2 + $0x8] sm:$0xff]
        %v1106 = vld [vmem:[%s4] sm:$0xf]
        %v1107 = vld [vmem:[%s4 + $0x4] sm:$0xf]
        %v1108 = vld [vmem:[%s4 + $0x8] sm:$0xf]
        %v1109 = vld [vmem:[%s4 + $0xc] sm:$0xf]
        %v1110 = vld [vmem:[%s4 + $0x10] sm:$0xf]
        %v1111 = vld [vmem:[%s4 + $0x14] sm:$0xf]
        %v1112 = vld [vmem:[%s4 + $0x18] sm:$0xf]
        %v1113 = vld [vmem:[%s4 + $0x1c] sm:$0xf]
        %v1114 = vld [vmem:[%s4 + $0x20] sm:$0xf]
        %v1115 = vld [vmem:[%s4 + $0x24] sm:$0xf]
        %v1116 = vld [vmem:[%s4 + $0x28] sm:$0xf]
        %v1117 = vld [vmem:[%s4 + $0x2c] sm:$0xf]
        %v1118 = vld [vmem:[%s4 + $0x30] sm:$0xf]
        %v1119 = vld [vmem:[%s4 + $0x34] sm:$0xf]
        %v1120 = vld [vmem:[%s4 + $0x38] sm:$0xf]
        %v1121 = vld [vmem:[%s4 + $0x3c] sm:$0xf]
        %v1122 = vld [vmem:[%s4 + $0x40] sm:$0xf]
        %v1123 = vld [vmem:[%s4 + $0x44] sm:$0xf]
        %v1124 = vld [vmem:[%s4 + $0x48] sm:$0xf]
        %v1125 = vld [vmem:[%s4 + $0x4c] sm:$0xf]
        %v1126 = vld [vmem:[%s4 + $0x50] sm:$0xf]
        %v1127 = vld [vmem:[%s4 + $0x54] sm:$0xf]
        %v1128 = vld [vmem:[%s4 + $0x58] sm:$0xf]
        %v1129 = vld [vmem:[%s4 + $0x5c] sm:$0xf]
        %v1130 = vld [vmem:[%s4 + $0x60] sm:$0xf]
        %v1131 = vld [vmem:[%s4 + $0x64] sm:$0xf]
        %v1132 = vld [vmem:[%s4 + $0x68] sm:$0xf]
        %v1133 = vld [vmem:[%s4 + $0x6c] sm:$0xf]
        %v1134 = vld [vmem:[%s4 + $0x70] sm:$0xf]
        %v1135 = vld [vmem:[%s4 + $0x74] sm:$0xf]
        %v1136 = vld [vmem:[%s4 + $0x78] sm:$0xf]
        %v1137 = vld [vmem:[%s4 + $0x7c] sm:$0xf]
        %v1138 = vpack.c.bf16 %v1104, %v1104
        %v1139 = vpack.c.bf16 %v1105, %v1105
        %v1140 = vld [vmem:[#allocation3 + $0x1] ss:$0 sm:$0xff]
        %v1173 = vunpack.c.l.b16 %v1106
        %v1174 = vunpack.c.l.b16 %v1107
        %v1175 = vunpack.c.l.b16 %v1108
        %v1176 = vunpack.c.l.b16 %v1109
        %v1177 = vunpack.c.l.b16 %v1110
        %v1178 = vunpack.c.l.b16 %v1111
        %v1179 = vunpack.c.l.b16 %v1112
        %v1180 = vunpack.c.l.b16 %v1113
        %v1181 = vunpack.c.l.b16 %v1114
        %v1182 = vunpack.c.l.b16 %v1115
        %v1183 = vunpack.c.l.b16 %v1116
        %v1184 = vunpack.c.l.b16 %v1117
        %v1185 = vunpack.c.l.b16 %v1118
        %v1186 = vunpack.c.l.b16 %v1119
        %v1187 = vunpack.c.l.b16 %v1120
        %v1188 = vunpack.c.l.b16 %v1121
        %v1189 = vunpack.c.l.b16 %v1122
        %v1190 = vunpack.c.l.b16 %v1123
        %v1191 = vunpack.c.l.b16 %v1124
        %v1192 = vunpack.c.l.b16 %v1125
        %v1193 = vunpack.c.l.b16 %v1126
        %v1194 = vunpack.c.l.b16 %v1127
        %v1195 = vunpack.c.l.b16 %v1128
        %v1196 = vunpack.c.l.b16 %v1129
        %v1197 = vunpack.c.l.b16 %v1130
        %v1198 = vunpack.c.l.b16 %v1131
        %v1199 = vunpack.c.l.b16 %v1132
        %v1200 = vunpack.c.l.b16 %v1133
        %v1201 = vunpack.c.l.b16 %v1134
        %v1202 = vunpack.c.l.b16 %v1135
        %v1203 = vunpack.c.l.b16 %v1136
        %v1204 = vunpack.c.l.b16 %v1137
        %v1205 = vpack.c.b16 %v1174, %v1173
        %v1206 = vpack.c.b16 %v1176, %v1175
        %v1207 = vpack.c.b16 %v1178, %v1177
        %v1208 = vpack.c.b16 %v1180, %v1179
        %v1209 = vpack.c.b16 %v1182, %v1181
        %v1210 = vpack.c.b16 %v1184, %v1183
        %v1211 = vpack.c.b16 %v1186, %v1185
        %v1212 = vpack.c.b16 %v1188, %v1187
        %v1213 = vpack.c.b16 %v1190, %v1189
        %v1214 = vpack.c.b16 %v1192, %v1191
        %v1215 = vpack.c.b16 %v1194, %v1193
        %v1216 = vpack.c.b16 %v1196, %v1195
        %v1217 = vpack.c.b16 %v1198, %v1197
        %v1218 = vpack.c.b16 %v1200, %v1199
        %v1219 = vpack.c.b16 %v1202, %v1201
        %v1220 = vpack.c.b16 %v1204, %v1203
        %1237 = vmatprep.subr.bf16.mxu0 0
        %1238 = vmatpush1.bf16.msra.mxu0 %v1205
        %1239 = vmatprep.subr.bf16.mxu0 0
        %1240 = vmatpush1.bf16.msra.mxu0 %v1206
        %1241 = vmatprep.subr.bf16.mxu0 0
        %1242 = vmatpush1.bf16.msra.mxu0 %v1207
        %1243 = vmatprep.subr.bf16.mxu0 0
        %1244 = vmatpush1.bf16.msra.mxu0 %v1208
        %1245 = vmatprep.subr.bf16.mxu0 0
        %1246 = vmatpush1.bf16.msra.mxu0 %v1209
        %1247 = vmatprep.subr.bf16.mxu0 0
        %1248 = vmatpush1.bf16.msra.mxu0 %v1210
        %1249 = vmatprep.subr.bf16.mxu0 0
        %1250 = vmatpush1.bf16.msra.mxu0 %v1211
        %1251 = vmatprep.subr.bf16.mxu0 0
        %1252 = vmatpush1.bf16.msra.mxu0 %v1212
        %1253 = vmatprep.subr.bf16.mxu0 0
        %1254 = vmatpush1.bf16.msra.mxu0 %v1213
        %1255 = vmatprep.subr.bf16.mxu0 0
        %1256 = vmatpush1.bf16.msra.mxu0 %v1214
        %1257 = vmatprep.subr.bf16.mxu0 0
        %1258 = vmatpush1.bf16.msra.mxu0 %v1215
        %1259 = vmatprep.subr.bf16.mxu0 0
        %1260 = vmatpush1.bf16.msra.mxu0 %v1216
        %1261 = vmatprep.subr.bf16.mxu0 0
        %1262 = vmatpush1.bf16.msra.mxu0 %v1217
        %1263 = vmatprep.subr.bf16.mxu0 0
        %1264 = vmatpush1.bf16.msra.mxu0 %v1218
        %1265 = vmatprep.subr.bf16.mxu0 0
        %1266 = vmatpush1.bf16.msra.mxu0 %v1219
        %1267 = vmatprep.subr.bf16.mxu0 0
        %1268 = vmatpush1.bf16.msra.mxu0 %v1220
        %1269 = vmatprep.mubr.bf16.mxu0 %v1139
        %1270 = vmatmul.mubr.bf16.gmra.mrb[0].mxu0 %v1138
        %v1271 = vpop.f32.mrb[0].mxu0
        %v1272 = vadd.f32 %v1140, %v1271
        %v1273 = vpop.f32.mrb[0].mxu0
        %v1274 = vpop.f32.mrb[0].mxu0
        %v1275 = vpop.f32.mrb[0].mxu0
        %1276 = vdwg.mxu0
        %v1277 = vadd.f32 %v1272, %v450
        %v1278 = vld [vmem:[#allocation3 + $0x2] ss:$0 sm:$0xff]
        %v1279 = vld [vmem:[#allocation3 + $0x3] ss:$0 sm:$0xff]
        %1280 = vadd.xlane.f32.xlu0 %v1277
        %v1281 = vpop.xlane.xlu0 %1280
        %v1282 = vmul.f32 %v1281, %v439
        %v1283 = vsub.f32 %v1277, %v1282
        %v1284 = vmul.f32 %v1283, %v1283
        %1285 = vadd.xlane.f32.xlu0 %v1284
        %v1286 = vpop.xlane.xlu0 %1285
        %v1287 = vmul.f32 %v1286, %v439
        %v1288 = vadd.f32 %v1287, 1e-12
        %v1289 = vrsqrt.pop %v1288
        %v1290 = vmul.f32 %v1283, %v1289
        %v1291 = vmul.f32 %v1290, %v1278
        %v1292 = vadd.f32 %v1291, %v1279
        %v1293 = vld [vmem:[#allocation7] sm:$0xff]
        %v1294 = vld [vmem:[#allocation7 + $0x8] sm:$0xff]
        %v1295 = vld [vmem:[#allocation7 + $0x10] sm:$0xff]
        %v1296 = vld [vmem:[#allocation7 + $0x18] sm:$0xff]
        %v1297 = vld [vmem:[#allocation7 + $0x20] sm:$0xff]
        %v1298 = vld [vmem:[#allocation7 + $0x28] sm:$0xff]
        %v1299 = vld [vmem:[#allocation7 + $0x30] sm:$0xff]
        %v1300 = vld [vmem:[#allocation7 + $0x38] sm:$0xff]
        %v1301 = vld [vmem:[#allocation7 + $0x40] sm:$0xff]
        %v1302 = vld [vmem:[#allocation7 + $0x48] sm:$0xff]
        %v1303 = vld [vmem:[#allocation7 + $0x50] sm:$0xff]
        %v1304 = vld [vmem:[#allocation7 + $0x58] sm:$0xff]
        %v1305 = vld [vmem:[#allocation7 + $0x60] sm:$0xff]
        %v1306 = vld [vmem:[#allocation7 + $0x68] sm:$0xff]
        %v1307 = vld [vmem:[#allocation7 + $0x70] sm:$0xff]
        %v1308 = vld [vmem:[#allocation7 + $0x78] sm:$0xff]
        %v1309 = vld [vmem:[#allocation7 + $0x80] sm:$0xff]
        %v1310 = vld [vmem:[#allocation7 + $0x88] sm:$0xff]
        %v1311 = vld [vmem:[#allocation7 + $0x90] sm:$0xff]
        %v1312 = vld [vmem:[#allocation7 + $0x98] sm:$0xff]
        %v1313 = vld [vmem:[#allocation7 + $0xa0] sm:$0xff]
        %v1314 = vld [vmem:[#allocation7 + $0xa8] sm:$0xff]
        %v1315 = vld [vmem:[#allocation7 + $0xb0] sm:$0xff]
        %v1316 = vld [vmem:[#allocation7 + $0xb8] sm:$0xff]
        %v1317 = vld [vmem:[#allocation7 + $0xc0] sm:$0xff]
        %v1318 = vld [vmem:[#allocation7 + $0xc8] sm:$0xff]
        %v1319 = vld [vmem:[#allocation7 + $0xd0] sm:$0xff]
        %v1320 = vld [vmem:[#allocation7 + $0xd8] sm:$0xff]
        %v1321 = vld [vmem:[#allocation7 + $0xe0] sm:$0xff]
        %v1322 = vld [vmem:[#allocation7 + $0xe8] sm:$0xff]
        %v1323 = vld [vmem:[#allocation7 + $0xf0] sm:$0xff]
        %v1324 = vld [vmem:[#allocation7 + $0xf8] sm:$0xff]
        %v1325 = vpack.c.bf16 %v1292, %v1292
        %s1326 = scalar_lea.vmem [#allocation3], 4
        %v1327 = vld [vmem:[%s1326] ss:$8 sm:$0xf]
        %v1329 = vlaneseq
        %v1330 = vshrl.u32 %v1329, 7
        %v1331 = vsub.s32 0, %v1330
        %v1332 = vrot.slane %v1327, %v1331
        %v1333 = vlaneseq
        %v1334 = vshrl.u32 %v1333, 7
        %v1335 = vsub.s32 1, %v1334
        %v1336 = vrot.slane %v1327, %v1335
        %v1337 = vlaneseq
        %v1338 = vshrl.u32 %v1337, 7
        %v1339 = vsub.s32 2, %v1338
        %v1340 = vrot.slane %v1327, %v1339
        %v1341 = vlaneseq
        %v1342 = vshrl.u32 %v1341, 7
        %v1343 = vsub.s32 3, %v1342
        %v1344 = vrot.slane %v1327, %v1343
        %v1381 = vunpack.c.l.b16 %v1293
        %v1382 = vunpack.c.h.b16 %v1293
        %v1383 = vunpack.c.l.b16 %v1294
        %v1384 = vunpack.c.h.b16 %v1294
        %v1385 = vunpack.c.l.b16 %v1295
        %v1386 = vunpack.c.h.b16 %v1295
        %v1387 = vunpack.c.l.b16 %v1296
        %v1388 = vunpack.c.h.b16 %v1296
        %v1389 = vunpack.c.l.b16 %v1297
        %v1390 = vunpack.c.h.b16 %v1297
        %v1391 = vunpack.c.l.b16 %v1298
        %v1392 = vunpack.c.h.b16 %v1298
        %v1393 = vunpack.c.l.b16 %v1299
        %v1394 = vunpack.c.h.b16 %v1299
        %v1395 = vunpack.c.l.b16 %v1300
        %v1396 = vunpack.c.h.b16 %v1300
        %v1397 = vunpack.c.l.b16 %v1301
        %v1398 = vunpack.c.h.b16 %v1301
        %v1399 = vunpack.c.l.b16 %v1302
        %v1400 = vunpack.c.h.b16 %v1302
        %v1401 = vunpack.c.l.b16 %v1303
        %v1402 = vunpack.c.h.b16 %v1303
        %v1403 = vunpack.c.l.b16 %v1304
        %v1404 = vunpack.c.h.b16 %v1304
        %v1405 = vunpack.c.l.b16 %v1305
        %v1406 = vunpack.c.h.b16 %v1305
        %v1407 = vunpack.c.l.b16 %v1306
        %v1408 = vunpack.c.h.b16 %v1306
        %v1409 = vunpack.c.l.b16 %v1307
        %v1410 = vunpack.c.h.b16 %v1307
        %v1411 = vunpack.c.l.b16 %v1308
        %v1412 = vunpack.c.h.b16 %v1308
        %v1413 = vunpack.c.l.b16 %v1309
        %v1414 = vunpack.c.h.b16 %v1309
        %v1415 = vunpack.c.l.b16 %v1310
        %v1416 = vunpack.c.h.b16 %v1310
        %v1417 = vunpack.c.l.b16 %v1311
        %v1418 = vunpack.c.h.b16 %v1311
        %v1419 = vunpack.c.l.b16 %v1312
        %v1420 = vunpack.c.h.b16 %v1312
        %v1421 = vunpack.c.l.b16 %v1313
        %v1422 = vunpack.c.h.b16 %v1313
        %v1423 = vunpack.c.l.b16 %v1314
        %v1424 = vunpack.c.h.b16 %v1314
        %v1425 = vunpack.c.l.b16 %v1315
        %v1426 = vunpack.c.h.b16 %v1315
        %v1427 = vunpack.c.l.b16 %v1316
        %v1428 = vunpack.c.h.b16 %v1316
        %v1429 = vunpack.c.l.b16 %v1317
        %v1430 = vunpack.c.h.b16 %v1317
        %v1431 = vunpack.c.l.b16 %v1318
        %v1432 = vunpack.c.h.b16 %v1318
        %v1433 = vunpack.c.l.b16 %v1319
        %v1434 = vunpack.c.h.b16 %v1319
        %v1435 = vunpack.c.l.b16 %v1320
        %v1436 = vunpack.c.h.b16 %v1320
        %v1437 = vunpack.c.l.b16 %v1321
        %v1438 = vunpack.c.h.b16 %v1321
        %v1439 = vunpack.c.l.b16 %v1322
        %v1440 = vunpack.c.h.b16 %v1322
        %v1441 = vunpack.c.l.b16 %v1323
        %v1442 = vunpack.c.h.b16 %v1323
        %v1443 = vunpack.c.l.b16 %v1324
        %v1444 = vunpack.c.h.b16 %v1324
        %v1445 = vpack.c.b16 %v1385, %v1381
        %v1446 = vpack.c.b16 %v1386, %v1382
        %v1447 = vpack.c.b16 %v1387, %v1383
        %v1448 = vpack.c.b16 %v1388, %v1384
        %v1449 = vpack.c.b16 %v1393, %v1389
        %v1450 = vpack.c.b16 %v1394, %v1390
        %v1451 = vpack.c.b16 %v1395, %v1391
        %v1452 = vpack.c.b16 %v1396, %v1392
        %v1453 = vpack.c.b16 %v1401, %v1397
        %v1454 = vpack.c.b16 %v1402, %v1398
        %v1455 = vpack.c.b16 %v1403, %v1399
        %v1456 = vpack.c.b16 %v1404, %v1400
        %v1457 = vpack.c.b16 %v1409, %v1405
        %v1458 = vpack.c.b16 %v1410, %v1406
        %v1459 = vpack.c.b16 %v1411, %v1407
        %v1460 = vpack.c.b16 %v1412, %v1408
        %v1461 = vpack.c.b16 %v1417, %v1413
        %v1462 = vpack.c.b16 %v1418, %v1414
        %v1463 = vpack.c.b16 %v1419, %v1415
        %v1464 = vpack.c.b16 %v1420, %v1416
        %v1465 = vpack.c.b16 %v1425, %v1421
        %v1466 = vpack.c.b16 %v1426, %v1422
        %v1467 = vpack.c.b16 %v1427, %v1423
        %v1468 = vpack.c.b16 %v1428, %v1424
        %v1469 = vpack.c.b16 %v1433, %v1429
        %v1470 = vpack.c.b16 %v1434, %v1430
        %v1471 = vpack.c.b16 %v1435, %v1431
        %v1472 = vpack.c.b16 %v1436, %v1432
        %v1473 = vpack.c.b16 %v1441, %v1437
        %v1474 = vpack.c.b16 %v1442, %v1438
        %v1475 = vpack.c.b16 %v1443, %v1439
        %v1476 = vpack.c.b16 %v1444, %v1440
        %1509 = vmatprep.subr.bf16.mxu0 %v1446
        %1510 = vmatpush1.bf16.msra.mxu0 %v1445
        %1511 = vmatprep.subr.bf16.mxu0 %v1450
        %1512 = vmatpush1.bf16.msra.mxu0 %v1449
        %1513 = vmatprep.subr.bf16.mxu0 %v1454
        %1514 = vmatpush1.bf16.msra.mxu0 %v1453
        %1515 = vmatprep.subr.bf16.mxu0 %v1458
        %1516 = vmatpush1.bf16.msra.mxu0 %v1457
        %1517 = vmatprep.subr.bf16.mxu0 %v1462
        %1518 = vmatpush1.bf16.msra.mxu0 %v1461
        %1519 = vmatprep.subr.bf16.mxu0 %v1466
        %1520 = vmatpush1.bf16.msra.mxu0 %v1465
        %1521 = vmatprep.subr.bf16.mxu0 %v1470
        %1522 = vmatpush1.bf16.msra.mxu0 %v1469
        %1523 = vmatprep.subr.bf16.mxu0 %v1474
        %1524 = vmatpush1.bf16.msra.mxu0 %v1473
        %1525 = vmatprep.subr.bf16.mxu0 0
        %1526 = vmatpush1.bf16.msra.mxu0 0
        %1527 = vmatprep.subr.bf16.mxu0 0
        %1528 = vmatpush1.bf16.msra.mxu0 0
        %1529 = vmatprep.subr.bf16.mxu0 0
        %1530 = vmatpush1.bf16.msra.mxu0 0
        %1531 = vmatprep.subr.bf16.mxu0 0
        %1532 = vmatpush1.bf16.msra.mxu0 0
        %1533 = vmatprep.subr.bf16.mxu0 0
        %1534 = vmatpush1.bf16.msra.mxu0 0
        %1535 = vmatprep.subr.bf16.mxu0 0
        %1536 = vmatpush1.bf16.msra.mxu0 0
        %1537 = vmatprep.subr.bf16.mxu0 0
        %1538 = vmatpush1.bf16.msra.mxu0 0
        %1539 = vmatprep.subr.bf16.mxu0 0
        %1540 = vmatpush1.bf16.msra.mxu0 0
        %1541 = vmatprep.mubr.bf16.mxu0 0
        %1542 = vmatmul.mubr.bf16.gmra.mrb[0].mxu0 %v1325
        %v1543 = vpop.f32.mrb[0].mxu0
        %v1544 = vadd.f32 %v1332, %v1543
        %v1545 = vpop.f32.mrb[0].mxu0
        %v1546 = vadd.f32 %v1336, %v1545
        %v1547 = vpop.f32.mrb[0].mxu0
        %v1548 = vpop.f32.mrb[0].mxu0
        %1549 = vdwg.mxu0
        %1550 = vmatprep.subr.bf16.mxu0 %v1448
        %1551 = vmatpush1.bf16.msra.mxu0 %v1447
        %1552 = vmatprep.subr.bf16.mxu0 %v1452
        %1553 = vmatpush1.bf16.msra.mxu0 %v1451
        %1554 = vmatprep.subr.bf16.mxu0 %v1456
        %1555 = vmatpush1.bf16.msra.mxu0 %v1455
        %1556 = vmatprep.subr.bf16.mxu0 %v1460
        %1557 = vmatpush1.bf16.msra.mxu0 %v1459
        %1558 = vmatprep.subr.bf16.mxu0 %v1464
        %1559 = vmatpush1.bf16.msra.mxu0 %v1463
        %1560 = vmatprep.subr.bf16.mxu0 %v1468
        %1561 = vmatpush1.bf16.msra.mxu0 %v1467
        %1562 = vmatprep.subr.bf16.mxu0 %v1472
        %1563 = vmatpush1.bf16.msra.mxu0 %v1471
        %1564 = vmatprep.subr.bf16.mxu0 %v1476
        %1565 = vmatpush1.bf16.msra.mxu0 %v1475
        %1566 = vmatprep.subr.bf16.mxu0 0
        %1567 = vmatpush1.bf16.msra.mxu0 0
        %1568 = vmatprep.subr.bf16.mxu0 0
        %1569 = vmatpush1.bf16.msra.mxu0 0
        %1570 = vmatprep.subr.bf16.mxu0 0
        %1571 = vmatpush1.bf16.msra.mxu0 0
        %1572 = vmatprep.subr.bf16.mxu0 0
        %1573 = vmatpush1.bf16.msra.mxu0 0
        %1574 = vmatprep.subr.bf16.mxu0 0
        %1575 = vmatpush1.bf16.msra.mxu0 0
        %1576 = vmatprep.subr.bf16.mxu0 0
        %1577 = vmatpush1.bf16.msra.mxu0 0
        %1578 = vmatprep.subr.bf16.mxu0 0
        %1579 = vmatpush1.bf16.msra.mxu0 0
        %1580 = vmatprep.subr.bf16.mxu0 0
        %1581 = vmatpush1.bf16.msra.mxu0 0
        %1582 = vmatprep.mubr.bf16.mxu0 0
        %1583 = vmatmul.mubr.bf16.gmra.mrb[0].mxu0 %v1325
        %v1584 = vpop.f32.mrb[0].mxu0
        %v1585 = vadd.f32 %v1340, %v1584
        %v1586 = vpop.f32.mrb[0].mxu0
        %v1587 = vadd.f32 %v1344, %v1586
        %v1588 = vpop.f32.mrb[0].mxu0
        %v1589 = vpop.f32.mrb[0].mxu0
        %1590 = vdwg.mxu0
        %v1591 = vmul.f32 %v1544, %v1544
        %v1592 = vmul.f32 %v1546, %v1546
        %v1593 = vmul.f32 %v1585, %v1585
        %v1594 = vmul.f32 %v1587, %v1587
        %v1595 = vmul.f32 %v1544, %v1591
        %v1596 = vmul.f32 %v1546, %v1592
        %v1597 = vmul.f32 %v1585, %v1593
        %v1598 = vmul.f32 %v1587, %v1594
        %v1599 = vmul.f32 %v1595, 0.044715
        %v1600 = vmul.f32 %v1596, 0.044715
        %v1601 = vmul.f32 %v1597, 0.044715
        %v1602 = vmul.f32 %v1598, 0.044715
        %v1603 = vadd.f32 %v1544, %v1599
        %v1604 = vadd.f32 %v1546, %v1600
        %v1605 = vadd.f32 %v1585, %v1601
        %v1606 = vadd.f32 %v1587, %v1602
        %v1607 = vmul.f32 %v1603, 0.7978846
        %v1608 = vmul.f32 %v1604, 0.7978846
        %v1609 = vmul.f32 %v1605, 0.7978846
        %v1610 = vmul.f32 %v1606, 0.7978846
        %v1611 = vtanh.pop %v1607
        %v1612 = vtanh.pop %v1608
        %v1613 = vtanh.pop %v1609
        %v1614 = vtanh.pop %v1610
        %v1615 = vadd.f32 %v1611, 1.0
        %v1616 = vadd.f32 %v1612, 1.0
        %v1617 = vadd.f32 %v1613, 1.0
        %v1618 = vadd.f32 %v1614, 1.0
        %v1619 = vmul.f32 %v1615, 0.5
        %v1620 = vmul.f32 %v1616, 0.5
        %v1621 = vmul.f32 %v1617, 0.5
        %v1622 = vmul.f32 %v1618, 0.5
        %v1623 = vmul.f32 %v1544, %v1619
        %v1624 = vmul.f32 %v1546, %v1620
        %v1625 = vmul.f32 %v1585, %v1621
        %v1626 = vmul.f32 %v1587, %v1622
        %v1627 = vld [vmem:[#allocation8] sm:$0xf]
        %v1628 = vld [vmem:[#allocation8 + $0x4] sm:$0xf]
        %v1629 = vld [vmem:[#allocation8 + $0x8] sm:$0xf]
        %v1630 = vld [vmem:[#allocation8 + $0xc] sm:$0xf]
        %v1631 = vld [vmem:[#allocation8 + $0x10] sm:$0xf]
        %v1632 = vld [vmem:[#allocation8 + $0x14] sm:$0xf]
        %v1633 = vld [vmem:[#allocation8 + $0x18] sm:$0xf]
        %v1634 = vld [vmem:[#allocation8 + $0x1c] sm:$0xf]
        %v1635 = vld [vmem:[#allocation8 + $0x20] sm:$0xf]
        %v1636 = vld [vmem:[#allocation8 + $0x24] sm:$0xf]
        %v1637 = vld [vmem:[#allocation8 + $0x28] sm:$0xf]
        %v1638 = vld [vmem:[#allocation8 + $0x2c] sm:$0xf]
        %v1639 = vld [vmem:[#allocation8 + $0x30] sm:$0xf]
        %v1640 = vld [vmem:[#allocation8 + $0x34] sm:$0xf]
        %v1641 = vld [vmem:[#allocation8 + $0x38] sm:$0xf]
        %v1642 = vld [vmem:[#allocation8 + $0x3c] sm:$0xf]
        %v1643 = vld [vmem:[#allocation8 + $0x40] sm:$0xf]
        %v1644 = vld [vmem:[#allocation8 + $0x44] sm:$0xf]
        %v1645 = vld [vmem:[#allocation8 + $0x48] sm:$0xf]
        %v1646 = vld [vmem:[#allocation8 + $0x4c] sm:$0xf]
        %v1647 = vld [vmem:[#allocation8 + $0x50] sm:$0xf]
        %v1648 = vld [vmem:[#allocation8 + $0x54] sm:$0xf]
        %v1649 = vld [vmem:[#allocation8 + $0x58] sm:$0xf]
        %v1650 = vld [vmem:[#allocation8 + $0x5c] sm:$0xf]
        %v1651 = vld [vmem:[#allocation8 + $0x60] sm:$0xf]
        %v1652 = vld [vmem:[#allocation8 + $0x64] sm:$0xf]
        %v1653 = vld [vmem:[#allocation8 + $0x68] sm:$0xf]
        %v1654 = vld [vmem:[#allocation8 + $0x6c] sm:$0xf]
        %v1655 = vld [vmem:[#allocation8 + $0x70] sm:$0xf]
        %v1656 = vld [vmem:[#allocation8 + $0x74] sm:$0xf]
        %v1657 = vld [vmem:[#allocation8 + $0x78] sm:$0xf]
        %v1658 = vld [vmem:[#allocation8 + $0x7c] sm:$0xf]
        %v1659 = vld [vmem:[#allocation8 + $0x80] sm:$0xf]
        %v1660 = vld [vmem:[#allocation8 + $0x84] sm:$0xf]
        %v1661 = vld [vmem:[#allocation8 + $0x88] sm:$0xf]
        %v1662 = vld [vmem:[#allocation8 + $0x8c] sm:$0xf]
        %v1663 = vld [vmem:[#allocation8 + $0x90] sm:$0xf]
        %v1664 = vld [vmem:[#allocation8 + $0x94] sm:$0xf]
        %v1665 = vld [vmem:[#allocation8 + $0x98] sm:$0xf]
        %v1666 = vld [vmem:[#allocation8 + $0x9c] sm:$0xf]
        %v1667 = vld [vmem:[#allocation8 + $0xa0] sm:$0xf]
        %v1668 = vld [vmem:[#allocation8 + $0xa4] sm:$0xf]
        %v1669 = vld [vmem:[#allocation8 + $0xa8] sm:$0xf]
        %v1670 = vld [vmem:[#allocation8 + $0xac] sm:$0xf]
        %v1671 = vld [vmem:[#allocation8 + $0xb0] sm:$0xf]
        %v1672 = vld [vmem:[#allocation8 + $0xb4] sm:$0xf]
        %v1673 = vld [vmem:[#allocation8 + $0xb8] sm:$0xf]
        %v1674 = vld [vmem:[#allocation8 + $0xbc] sm:$0xf]
        %v1675 = vld [vmem:[#allocation8 + $0xc0] sm:$0xf]
        %v1676 = vld [vmem:[#allocation8 + $0xc4] sm:$0xf]
        %v1677 = vld [vmem:[#allocation8 + $0xc8] sm:$0xf]
        %v1678 = vld [vmem:[#allocation8 + $0xcc] sm:$0xf]
        %v1679 = vld [vmem:[#allocation8 + $0xd0] sm:$0xf]
        %v1680 = vld [vmem:[#allocation8 + $0xd4] sm:$0xf]
        %v1681 = vld [vmem:[#allocation8 + $0xd8] sm:$0xf]
        %v1682 = vld [vmem:[#allocation8 + $0xdc] sm:$0xf]
        %v1683 = vld [vmem:[#allocation8 + $0xe0] sm:$0xf]
        %v1684 = vld [vmem:[#allocation8 + $0xe4] sm:$0xf]
        %v1685 = vld [vmem:[#allocation8 + $0xe8] sm:$0xf]
        %v1686 = vld [vmem:[#allocation8 + $0xec] sm:$0xf]
        %v1687 = vld [vmem:[#allocation8 + $0xf0] sm:$0xf]
        %v1688 = vld [vmem:[#allocation8 + $0xf4] sm:$0xf]
        %v1689 = vld [vmem:[#allocation8 + $0xf8] sm:$0xf]
        %v1690 = vld [vmem:[#allocation8 + $0xfc] sm:$0xf]
        %v1691 = vpack.c.bf16 %v1623, %v1623
        %v1692 = vpack.c.bf16 %v1624, %v1624
        %v1693 = vpack.c.bf16 %v1625, %v1625
        %v1694 = vpack.c.bf16 %v1626, %v1626
        %v1695 = vld [vmem:[#allocation3 + $0x5] ss:$0 sm:$0xff]
        %v1760 = vunpack.c.l.b16 %v1627
        %v1761 = vunpack.c.l.b16 %v1628
        %v1762 = vunpack.c.l.b16 %v1629
        %v1763 = vunpack.c.l.b16 %v1630
        %v1764 = vunpack.c.l.b16 %v1631
        %v1765 = vunpack.c.l.b16 %v1632
        %v1766 = vunpack.c.l.b16 %v1633
        %v1767 = vunpack.c.l.b16 %v1634
        %v1768 = vunpack.c.l.b16 %v1635
        %v1769 = vunpack.c.l.b16 %v1636
        %v1770 = vunpack.c.l.b16 %v1637
        %v1771 = vunpack.c.l.b16 %v1638
        %v1772 = vunpack.c.l.b16 %v1639
        %v1773 = vunpack.c.l.b16 %v1640
        %v1774 = vunpack.c.l.b16 %v1641
        %v1775 = vunpack.c.l.b16 %v1642
        %v1776 = vunpack.c.l.b16 %v1643
        %v1777 = vunpack.c.l.b16 %v1644
        %v1778 = vunpack.c.l.b16 %v1645
        %v1779 = vunpack.c.l.b16 %v1646
        %v1780 = vunpack.c.l.b16 %v1647
        %v1781 = vunpack.c.l.b16 %v1648
        %v1782 = vunpack.c.l.b16 %v1649
        %v1783 = vunpack.c.l.b16 %v1650
        %v1784 = vunpack.c.l.b16 %v1651
        %v1785 = vunpack.c.l.b16 %v1652
        %v1786 = vunpack.c.l.b16 %v1653
        %v1787 = vunpack.c.l.b16 %v1654
        %v1788 = vunpack.c.l.b16 %v1655
        %v1789 = vunpack.c.l.b16 %v1656
        %v1790 = vunpack.c.l.b16 %v1657
        %v1791 = vunpack.c.l.b16 %v1658
        %v1792 = vunpack.c.l.b16 %v1659
        %v1793 = vunpack.c.l.b16 %v1660
        %v1794 = vunpack.c.l.b16 %v1661
        %v1795 = vunpack.c.l.b16 %v1662
        %v1796 = vunpack.c.l.b16 %v1663
        %v1797 = vunpack.c.l.b16 %v1664
        %v1798 = vunpack.c.l.b16 %v1665
        %v1799 = vunpack.c.l.b16 %v1666
        %v1800 = vunpack.c.l.b16 %v1667
        %v1801 = vunpack.c.l.b16 %v1668
        %v1802 = vunpack.c.l.b16 %v1669
        %v1803 = vunpack.c.l.b16 %v1670
        %v1804 = vunpack.c.l.b16 %v1671
        %v1805 = vunpack.c.l.b16 %v1672
        %v1806 = vunpack.c.l.b16 %v1673
        %v1807 = vunpack.c.l.b16 %v1674
        %v1808 = vunpack.c.l.b16 %v1675
        %v1809 = vunpack.c.l.b16 %v1676
        %v1810 = vunpack.c.l.b16 %v1677
        %v1811 = vunpack.c.l.b16 %v1678
        %v1812 = vunpack.c.l.b16 %v1679
        %v1813 = vunpack.c.l.b16 %v1680
        %v1814 = vunpack.c.l.b16 %v1681
        %v1815 = vunpack.c.l.b16 %v1682
        %v1816 = vunpack.c.l.b16 %v1683
        %v1817 = vunpack.c.l.b16 %v1684
        %v1818 = vunpack.c.l.b16 %v1685
        %v1819 = vunpack.c.l.b16 %v1686
        %v1820 = vunpack.c.l.b16 %v1687
        %v1821 = vunpack.c.l.b16 %v1688
        %v1822 = vunpack.c.l.b16 %v1689
        %v1823 = vunpack.c.l.b16 %v1690
        %v1824 = vpack.c.b16 %v1761, %v1760
        %v1825 = vpack.c.b16 %v1763, %v1762
        %v1826 = vpack.c.b16 %v1765, %v1764
        %v1827 = vpack.c.b16 %v1767, %v1766
        %v1828 = vpack.c.b16 %v1769, %v1768
        %v1829 = vpack.c.b16 %v1771, %v1770
        %v1830 = vpack.c.b16 %v1773, %v1772
        %v1831 = vpack.c.b16 %v1775, %v1774
        %v1832 = vpack.c.b16 %v1777, %v1776
        %v1833 = vpack.c.b16 %v1779, %v1778
        %v1834 = vpack.c.b16 %v1781, %v1780
        %v1835 = vpack.c.b16 %v1783, %v1782
        %v1836 = vpack.c.b16 %v1785, %v1784
        %v1837 = vpack.c.b16 %v1787, %v1786
        %v1838 = vpack.c.b16 %v1789, %v1788
        %v1839 = vpack.c.b16 %v1791, %v1790
        %v1840 = vpack.c.b16 %v1793, %v1792
        %v1841 = vpack.c.b16 %v1795, %v1794
        %v1842 = vpack.c.b16 %v1797, %v1796
        %v1843 = vpack.c.b16 %v1799, %v1798
        %v1844 = vpack.c.b16 %v1801, %v1800
        %v1845 = vpack.c.b16 %v1803, %v1802
        %v1846 = vpack.c.b16 %v1805, %v1804
        %v1847 = vpack.c.b16 %v1807, %v1806
        %v1848 = vpack.c.b16 %v1809, %v1808
        %v1849 = vpack.c.b16 %v1811, %v1810
        %v1850 = vpack.c.b16 %v1813, %v1812
        %v1851 = vpack.c.b16 %v1815, %v1814
        %v1852 = vpack.c.b16 %v1817, %v1816
        %v1853 = vpack.c.b16 %v1819, %v1818
        %v1854 = vpack.c.b16 %v1821, %v1820
        %v1855 = vpack.c.b16 %v1823, %v1822
        %1888 = vmatprep.subr.bf16.mxu0 0
        %1889 = vmatpush1.bf16.msra.mxu0 %v1824
        %1890 = vmatprep.subr.bf16.mxu0 0
        %1891 = vmatpush1.bf16.msra.mxu0 %v1825
        %1892 = vmatprep.subr.bf16.mxu0 0
        %1893 = vmatpush1.bf16.msra.mxu0 %v1826
        %1894 = vmatprep.subr.bf16.mxu0 0
        %1895 = vmatpush1.bf16.msra.mxu0 %v1827
        %1896 = vmatprep.subr.bf16.mxu0 0
        %1897 = vmatpush1.bf16.msra.mxu0 %v1828
        %1898 = vmatprep.subr.bf16.mxu0 0
        %1899 = vmatpush1.bf16.msra.mxu0 %v1829
        %1900 = vmatprep.subr.bf16.mxu0 0
        %1901 = vmatpush1.bf16.msra.mxu0 %v1830
        %1902 = vmatprep.subr.bf16.mxu0 0
        %1903 = vmatpush1.bf16.msra.mxu0 %v1831
        %1904 = vmatprep.subr.bf16.mxu0 0
        %1905 = vmatpush1.bf16.msra.mxu0 %v1832
        %1906 = vmatprep.subr.bf16.mxu0 0
        %1907 = vmatpush1.bf16.msra.mxu0 %v1833
        %1908 = vmatprep.subr.bf16.mxu0 0
        %1909 = vmatpush1.bf16.msra.mxu0 %v1834
        %1910 = vmatprep.subr.bf16.mxu0 0
        %1911 = vmatpush1.bf16.msra.mxu0 %v1835
        %1912 = vmatprep.subr.bf16.mxu0 0
        %1913 = vmatpush1.bf16.msra.mxu0 %v1836
        %1914 = vmatprep.subr.bf16.mxu0 0
        %1915 = vmatpush1.bf16.msra.mxu0 %v1837
        %1916 = vmatprep.subr.bf16.mxu0 0
        %1917 = vmatpush1.bf16.msra.mxu0 %v1838
        %1918 = vmatprep.subr.bf16.mxu0 0
        %1919 = vmatpush1.bf16.msra.mxu0 %v1839
        %1920 = vmatprep.mubr.bf16.mxu0 %v1692
        %1921 = vmatmul.mubr.bf16.gmra.mrb[0].mxu0 %v1691
        %v1922 = vpop.f32.mrb[0].mxu0
        %v1923 = vadd.f32 %v1695, %v1922
        %v1924 = vpop.f32.mrb[0].mxu0
        %v1925 = vpop.f32.mrb[0].mxu0
        %v1926 = vpop.f32.mrb[0].mxu0
        %1927 = vdwg.mxu0
        %1928 = vmatprep.subr.bf16.mxu0 0
        %1929 = vmatpush1.bf16.msra.mxu0 %v1840
        %1930 = vmatprep.subr.bf16.mxu0 0
        %1931 = vmatpush1.bf16.msra.mxu0 %v1841
        %1932 = vmatprep.subr.bf16.mxu0 0
        %1933 = vmatpush1.bf16.msra.mxu0 %v1842
        %1934 = vmatprep.subr.bf16.mxu0 0
        %1935 = vmatpush1.bf16.msra.mxu0 %v1843
        %1936 = vmatprep.subr.bf16.mxu0 0
        %1937 = vmatpush1.bf16.msra.mxu0 %v1844
        %1938 = vmatprep.subr.bf16.mxu0 0
        %1939 = vmatpush1.bf16.msra.mxu0 %v1845
        %1940 = vmatprep.subr.bf16.mxu0 0
        %1941 = vmatpush1.bf16.msra.mxu0 %v1846
        %1942 = vmatprep.subr.bf16.mxu0 0
        %1943 = vmatpush1.bf16.msra.mxu0 %v1847
        %1944 = vmatprep.subr.bf16.mxu0 0
        %1945 = vmatpush1.bf16.msra.mxu0 %v1848
        %1946 = vmatprep.subr.bf16.mxu0 0
        %1947 = vmatpush1.bf16.msra.mxu0 %v1849
        %1948 = vmatprep.subr.bf16.mxu0 0
        %1949 = vmatpush1.bf16.msra.mxu0 %v1850
        %1950 = vmatprep.subr.bf16.mxu0 0
        %1951 = vmatpush1.bf16.msra.mxu0 %v1851
        %1952 = vmatprep.subr.bf16.mxu0 0
        %1953 = vmatpush1.bf16.msra.mxu0 %v1852
        %1954 = vmatprep.subr.bf16.mxu0 0
        %1955 = vmatpush1.bf16.msra.mxu0 %v1853
        %1956 = vmatprep.subr.bf16.mxu0 0
        %1957 = vmatpush1.bf16.msra.mxu0 %v1854
        %1958 = vmatprep.subr.bf16.mxu0 0
        %1959 = vmatpush1.bf16.msra.mxu0 %v1855
        %1960 = vmatprep.mubr.bf16.mxu0 %v1694
        %1961 = vmatmul.mubr.bf16.gmra.mrb[0].mxu0 %v1693
        %v1962 = vpop.f32.mrb[0].mxu0
        %v1963 = vadd.f32 %v1923, %v1962
        %v1964 = vpop.f32.mrb[0].mxu0
        %v1965 = vpop.f32.mrb[0].mxu0
        %v1966 = vpop.f32.mrb[0].mxu0
        %1967 = vdwg.mxu0
        %v1968 = vadd.f32 %v1963, %v1292
        %v1969 = vld [vmem:[#allocation3 + $0x6] ss:$0 sm:$0xff]
        %v1970 = vld [vmem:[#allocation3 + $0x7] ss:$0 sm:$0xff]
        %1971 = vadd.xlane.f32.xlu0 %v1968
        %v1972 = vpop.xlane.xlu0 %1971
        %v1973 = vmul.f32 %v1972, %v439
        %v1974 = vsub.f32 %v1968, %v1973
        %v1975 = vmul.f32 %v1974, %v1974
        %1976 = vadd.xlane.f32.xlu0 %v1975
        %v1977 = vpop.xlane.xlu0 %1976
        %v1978 = vmul.f32 %v1977, %v439
        %v1979 = vadd.f32 %v1978, 1e-12
        %v1980 = vrsqrt.pop %v1979
        %v1981 = vmul.f32 %v1974, %v1980
        %v1982 = vmul.f32 %v1981, %v1969
        %v1983 = vadd.f32 %v1982, %v1970
        %s1984 = scalar_lea.vmem [#allocation5], 384
        %v1985 = vld [vmem:[%s1984] sm:$0xff]
        %v1986 = vld [vmem:[%s1984 + $0x8] sm:$0xff]
        %v1987 = vld [vmem:[%s1984 + $0x10] sm:$0xff]
        %v1988 = vld [vmem:[%s1984 + $0x18] sm:$0xff]
        %v1989 = vld [vmem:[%s1984 + $0x20] sm:$0xff]
        %v1990 = vld [vmem:[%s1984 + $0x28] sm:$0xff]
        %v1991 = vld [vmem:[%s1984 + $0x30] sm:$0xff]
        %v1992 = vld [vmem:[%s1984 + $0x38] sm:$0xff]
        %v1993 = vld [vmem:[%s1984 + $0x40] sm:$0xff]
        %v1994 = vld [vmem:[%s1984 + $0x48] sm:$0xff]
        %v1995 = vld [vmem:[%s1984 + $0x50] sm:$0xff]
        %v1996 = vld [vmem:[%s1984 + $0x58] sm:$0xff]
        %v1997 = vld [vmem:[%s1984 + $0x60] sm:$0xff]
        %v1998 = vld [vmem:[%s1984 + $0x68] sm:$0xff]
        %v1999 = vld [vmem:[%s1984 + $0x70] sm:$0xff]
        %v2000 = vld [vmem:[%s1984 + $0x78] sm:$0xff]
        %v2001 = vld [vmem:[%s1984 + $0x80] sm:$0xff]
        %v2002 = vld [vmem:[%s1984 + $0x88] sm:$0xff]
        %v2003 = vld [vmem:[%s1984 + $0x90] sm:$0xff]
        %v2004 = vld [vmem:[%s1984 + $0x98] sm:$0xff]
        %v2005 = vld [vmem:[%s1984 + $0xa0] sm:$0xff]
        %v2006 = vld [vmem:[%s1984 + $0xa8] sm:$0xff]
        %v2007 = vld [vmem:[%s1984 + $0xb0] sm:$0xff]
        %v2008 = vld [vmem:[%s1984 + $0xb8] sm:$0xff]
        %v2009 = vld [vmem:[%s1984 + $0xc0] sm:$0xff]
        %v2010 = vld [vmem:[%s1984 + $0xc8] sm:$0xff]
        %v2011 = vld [vmem:[%s1984 + $0xd0] sm:$0xff]
        %v2012 = vld [vmem:[%s1984 + $0xd8] sm:$0xff]
        %v2013 = vld [vmem:[%s1984 + $0xe0] sm:$0xff]
        %v2014 = vld [vmem:[%s1984 + $0xe8] sm:$0xff]
        %v2015 = vld [vmem:[%s1984 + $0xf0] sm:$0xff]
        %v2016 = vld [vmem:[%s1984 + $0xf8] sm:$0xff]
        %v2017 = vld [vmem:[%s1984 + $0x100] sm:$0xff]
        %v2018 = vld [vmem:[%s1984 + $0x108] sm:$0xff]
        %v2019 = vld [vmem:[%s1984 + $0x110] sm:$0xff]
        %v2020 = vld [vmem:[%s1984 + $0x118] sm:$0xff]
        %v2021 = vld [vmem:[%s1984 + $0x120] sm:$0xff]
        %v2022 = vld [vmem:[%s1984 + $0x128] sm:$0xff]
        %v2023 = vld [vmem:[%s1984 + $0x130] sm:$0xff]
        %v2024 = vld [vmem:[%s1984 + $0x138] sm:$0xff]
        %v2025 = vld [vmem:[%s1984 + $0x140] sm:$0xff]
        %v2026 = vld [vmem:[%s1984 + $0x148] sm:$0xff]
        %v2027 = vld [vmem:[%s1984 + $0x150] sm:$0xff]
        %v2028 = vld [vmem:[%s1984 + $0x158] sm:$0xff]
        %v2029 = vld [vmem:[%s1984 + $0x160] sm:$0xff]
        %v2030 = vld [vmem:[%s1984 + $0x168] sm:$0xff]
        %v2031 = vld [vmem:[%s1984 + $0x170] sm:$0xff]
        %v2032 = vld [vmem:[%s1984 + $0x178] sm:$0xff]
        %v2033 = vpack.c.bf16 %v1983, %v1983
        %s2034 = scalar_lea.vmem [#allocation3], 48
        %v2035 = vld [vmem:[%s2034] ss:$8 sm:$0xf]
        %v2036 = vld [vmem:[%s2034] ss:$8 sm:$0x30]
        %v2037 = vor.u32 %v2035, %v2036
        %v2039 = vlaneseq
        %v2040 = vshrl.u32 %v2039, 7
        %v2041 = vsub.s32 0, %v2040
        %v2042 = vrot.slane %v2037, %v2041
        %v2043 = vlaneseq
        %v2044 = vshrl.u32 %v2043, 7
        %v2045 = vsub.s32 1, %v2044
        %v2046 = vrot.slane %v2037, %v2045
        %v2047 = vlaneseq
        %v2048 = vshrl.u32 %v2047, 7
        %v2049 = vsub.s32 2, %v2048
        %v2050 = vrot.slane %v2037, %v2049
        %v2051 = vlaneseq
        %v2052 = vshrl.u32 %v2051, 7
        %v2053 = vsub.s32 3, %v2052
        %v2054 = vrot.slane %v2037, %v2053
        %v2055 = vlaneseq
        %v2056 = vshrl.u32 %v2055, 7
        %v2057 = vsub.s32 4, %v2056
        %v2058 = vrot.slane %v2037, %v2057
        %v2059 = vlaneseq
        %v2060 = vshrl.u32 %v2059, 7
        %v2061 = vsub.s32 5, %v2060
        %v2062 = vrot.slane %v2037, %v2061
        %v2117 = vunpack.c.l.b16 %v1985
        %v2118 = vunpack.c.h.b16 %v1985
        %v2119 = vunpack.c.l.b16 %v1986
        %v2120 = vunpack.c.h.b16 %v1986
        %v2121 = vunpack.c.l.b16 %v1987
        %v2122 = vunpack.c.h.b16 %v1987
        %v2123 = vunpack.c.l.b16 %v1988
        %v2124 = vunpack.c.h.b16 %v1988
        %v2125 = vunpack.c.l.b16 %v1989
        %v2126 = vunpack.c.h.b16 %v1989
        %v2127 = vunpack.c.l.b16 %v1990
        %v2128 = vunpack.c.h.b16 %v1990
        %v2129 = vunpack.c.l.b16 %v1991
        %v2130 = vunpack.c.h.b16 %v1991
        %v2131 = vunpack.c.l.b16 %v1992
        %v2132 = vunpack.c.h.b16 %v1992
        %v2133 = vunpack.c.l.b16 %v1993
        %v2134 = vunpack.c.h.b16 %v1993
        %v2135 = vunpack.c.l.b16 %v1994
        %v2136 = vunpack.c.h.b16 %v1994
        %v2137 = vunpack.c.l.b16 %v1995
        %v2138 = vunpack.c.h.b16 %v1995
        %v2139 = vunpack.c.l.b16 %v1996
        %v2140 = vunpack.c.h.b16 %v1996
        %v2141 = vunpack.c.l.b16 %v1997
        %v2142 = vunpack.c.h.b16 %v1997
        %v2143 = vunpack.c.l.b16 %v1998
        %v2144 = vunpack.c.h.b16 %v1998
        %v2145 = vunpack.c.l.b16 %v1999
        %v2146 = vunpack.c.h.b16 %v1999
        %v2147 = vunpack.c.l.b16 %v2000
        %v2148 = vunpack.c.h.b16 %v2000
        %v2149 = vunpack.c.l.b16 %v2001
        %v2150 = vunpack.c.h.b16 %v2001
        %v2151 = vunpack.c.l.b16 %v2002
        %v2152 = vunpack.c.h.b16 %v2002
        %v2153 = vunpack.c.l.b16 %v2003
        %v2154 = vunpack.c.h.b16 %v2003
        %v2155 = vunpack.c.l.b16 %v2004
        %v2156 = vunpack.c.h.b16 %v2004
        %v2157 = vunpack.c.l.b16 %v2005
        %v2158 = vunpack.c.h.b16 %v2005
        %v2159 = vunpack.c.l.b16 %v2006
        %v2160 = vunpack.c.h.b16 %v2006
        %v2161 = vunpack.c.l.b16 %v2007
        %v2162 = vunpack.c.h.b16 %v2007
        %v2163 = vunpack.c.l.b16 %v2008
        %v2164 = vunpack.c.h.b16 %v2008
        %v2165 = vunpack.c.l.b16 %v2009
        %v2166 = vunpack.c.h.b16 %v2009
        %v2167 = vunpack.c.l.b16 %v2010
        %v2168 = vunpack.c.h.b16 %v2010
        %v2169 = vunpack.c.l.b16 %v2011
        %v2170 = vunpack.c.h.b16 %v2011
        %v2171 = vunpack.c.l.b16 %v2012
        %v2172 = vunpack.c.h.b16 %v2012
        %v2173 = vunpack.c.l.b16 %v2013
        %v2174 = vunpack.c.h.b16 %v2013
        %v2175 = vunpack.c.l.b16 %v2014
        %v2176 = vunpack.c.h.b16 %v2014
        %v2177 = vunpack.c.l.b16 %v2015
        %v2178 = vunpack.c.h.b16 %v2015
        %v2179 = vunpack.c.l.b16 %v2016
        %v2180 = vunpack.c.h.b16 %v2016
        %v2181 = vunpack.c.l.b16 %v2017
        %v2182 = vunpack.c.h.b16 %v2017
        %v2183 = vunpack.c.l.b16 %v2018
        %v2184 = vunpack.c.h.b16 %v2018
        %v2185 = vunpack.c.l.b16 %v2019
        %v2186 = vunpack.c.h.b16 %v2019
        %v2187 = vunpack.c.l.b16 %v2020
        %v2188 = vunpack.c.h.b16 %v2020
        %v2189 = vunpack.c.l.b16 %v2021
        %v2190 = vunpack.c.h.b16 %v2021
        %v2191 = vunpack.c.l.b16 %v2022
        %v2192 = vunpack.c.h.b16 %v2022
        %v2193 = vunpack.c.l.b16 %v2023
        %v2194 = vunpack.c.h.b16 %v2023
        %v2195 = vunpack.c.l.b16 %v2024
        %v2196 = vunpack.c.h.b16 %v2024
        %v2197 = vunpack.c.l.b16 %v2025
        %v2198 = vunpack.c.h.b16 %v2025
        %v2199 = vunpack.c.l.b16 %v2026
        %v2200 = vunpack.c.h.b16 %v2026
        %v2201 = vunpack.c.l.b16 %v2027
        %v2202 = vunpack.c.h.b16 %v2027
        %v2203 = vunpack.c.l.b16 %v2028
        %v2204 = vunpack.c.h.b16 %v2028
        %v2205 = vunpack.c.l.b16 %v2029
        %v2206 = vunpack.c.h.b16 %v2029
        %v2207 = vunpack.c.l.b16 %v2030
        %v2208 = vunpack.c.h.b16 %v2030
        %v2209 = vunpack.c.l.b16 %v2031
        %v2210 = vunpack.c.h.b16 %v2031
        %v2211 = vunpack.c.l.b16 %v2032
        %v2212 = vunpack.c.h.b16 %v2032
        %v2213 = vpack.c.b16 %v2123, %v2117
        %v2214 = vpack.c.b16 %v2124, %v2118
        %v2215 = vpack.c.b16 %v2125, %v2119
        %v2216 = vpack.c.b16 %v2126, %v2120
        %v2217 = vpack.c.b16 %v2127, %v2121
        %v2218 = vpack.c.b16 %v2128, %v2122
        %v2219 = vpack.c.b16 %v2135, %v2129
        %v2220 = vpack.c.b16 %v2136, %v2130
        %v2221 = vpack.c.b16 %v2137, %v2131
        %v2222 = vpack.c.b16 %v2138, %v2132
        %v2223 = vpack.c.b16 %v2139, %v2133
        %v2224 = vpack.c.b16 %v2140, %v2134
        %v2225 = vpack.c.b16 %v2147, %v2141
        %v2226 = vpack.c.b16 %v2148, %v2142
        %v2227 = vpack.c.b16 %v2149, %v2143
        %v2228 = vpack.c.b16 %v2150, %v2144
        %v2229 = vpack.c.b16 %v2151, %v2145
        %v2230 = vpack.c.b16 %v2152, %v2146
        %v2231 = vpack.c.b16 %v2159, %v2153
        %v2232 = vpack.c.b16 %v2160, %v2154
        %v2233 = vpack.c.b16 %v2161, %v2155
        %v2234 = vpack.c.b16 %v2162, %v2156
        %v2235 = vpack.c.b16 %v2163, %v2157
        %v2236 = vpack.c.b16 %v2164, %v2158
        %v2237 = vpack.c.b16 %v2171, %v2165
        %v2238 = vpack.c.b16 %v2172, %v2166
        %v2239 = vpack.c.b16 %v2173, %v2167
        %v2240 = vpack.c.b16 %v2174, %v2168
        %v2241 = vpack.c.b16 %v2175, %v2169
        %v2242 = vpack.c.b16 %v2176, %v2170
        %v2243 = vpack.c.b16 %v2183, %v2177
        %v2244 = vpack.c.b16 %v2184, %v2178
        %v2245 = vpack.c.b16 %v2185, %v2179
        %v2246 = vpack.c.b16 %v2186, %v2180
        %v2247 = vpack.c.b16 %v2187, %v2181
        %v2248 = vpack.c.b16 %v2188, %v2182
        %v2249 = vpack.c.b16 %v2195, %v2189
        %v2250 = vpack.c.b16 %v2196, %v2190
        %v2251 = vpack.c.b16 %v2197, %v2191
        %v2252 = vpack.c.b16 %v2198, %v2192
        %v2253 = vpack.c.b16 %v2199, %v2193
        %v2254 = vpack.c.b16 %v2200, %v2194
        %v2255 = vpack.c.b16 %v2207, %v2201
        %v2256 = vpack.c.b16 %v2208, %v2202
        %v2257 = vpack.c.b16 %v2209, %v2203
        %v2258 = vpack.c.b16 %v2210, %v2204
        %v2259 = vpack.c.b16 %v2211, %v2205
        %v2260 = vpack.c.b16 %v2212, %v2206
        %2309 = vmatprep.subr.bf16.mxu0 %v2214
        %2310 = vmatpush1.bf16.msra.mxu0 %v2213
        %2311 = vmatprep.subr.bf16.mxu0 %v2220
        %2312 = vmatpush1.bf16.msra.mxu0 %v2219
        %2313 = vmatprep.subr.bf16.mxu0 %v2226
        %2314 = vmatpush1.bf16.msra.mxu0 %v2225
        %2315 = vmatprep.subr.bf16.mxu0 %v2232
        %2316 = vmatpush1.bf16.msra.mxu0 %v2231
        %2317 = vmatprep.subr.bf16.mxu0 %v2238
        %2318 = vmatpush1.bf16.msra.mxu0 %v2237
        %2319 = vmatprep.subr.bf16.mxu0 %v2244
        %2320 = vmatpush1.bf16.msra.mxu0 %v2243
        %2321 = vmatprep.subr.bf16.mxu0 %v2250
        %2322 = vmatpush1.bf16.msra.mxu0 %v2249
        %2323 = vmatprep.subr.bf16.mxu0 %v2256
        %2324 = vmatpush1.bf16.msra.mxu0 %v2255
        %2325 = vmatprep.subr.bf16.mxu0 0
        %2326 = vmatpush1.bf16.msra.mxu0 0
        %2327 = vmatprep.subr.bf16.mxu0 0
        %2328 = vmatpush1.bf16.msra.mxu0 0
        %2329 = vmatprep.subr.bf16.mxu0 0
        %2330 = vmatpush1.bf16.msra.mxu0 0
        %2331 = vmatprep.subr.bf16.mxu0 0
        %2332 = vmatpush1.bf16.msra.mxu0 0
        %2333 = vmatprep.subr.bf16.mxu0 0
        %2334 = vmatpush1.bf16.msra.mxu0 0
        %2335 = vmatprep.subr.bf16.mxu0 0
        %2336 = vmatpush1.bf16.msra.mxu0 0
        %2337 = vmatprep.subr.bf16.mxu0 0
        %2338 = vmatpush1.bf16.msra.mxu0 0
        %2339 = vmatprep.subr.bf16.mxu0 0
        %2340 = vmatpush1.bf16.msra.mxu0 0
        %2341 = vmatprep.mubr.bf16.mxu0 0
        %2342 = vmatmul.mubr.bf16.gmra.mrb[0].mxu0 %v2033
        %v2343 = vpop.f32.mrb[0].mxu0
        %v2344 = vadd.f32 %v2042, %v2343
        %v2345 = vpop.f32.mrb[0].mxu0
        %v2346 = vadd.f32 %v2046, %v2345
        %v2347 = vpop.f32.mrb[0].mxu0
        %v2348 = vpop.f32.mrb[0].mxu0
        %2349 = vdwg.mxu0
        %2350 = vmatprep.subr.bf16.mxu0 %v2216
        %2351 = vmatpush1.bf16.msra.mxu0 %v2215
        %2352 = vmatprep.subr.bf16.mxu0 %v2222
        %2353 = vmatpush1.bf16.msra.mxu0 %v2221
        %2354 = vmatprep.subr.bf16.mxu0 %v2228
        %2355 = vmatpush1.bf16.msra.mxu0 %v2227
        %2356 = vmatprep.subr.bf16.mxu0 %v2234
        %2357 = vmatpush1.bf16.msra.mxu0 %v2233
        %2358 = vmatprep.subr.bf16.mxu0 %v2240
        %2359 = vmatpush1.bf16.msra.mxu0 %v2239
        %2360 = vmatprep.subr.bf16.mxu0 %v2246
        %2361 = vmatpush1.bf16.msra.mxu0 %v2245
        %2362 = vmatprep.subr.bf16.mxu0 %v2252
        %2363 = vmatpush1.bf16.msra.mxu0 %v2251
        %2364 = vmatprep.subr.bf16.mxu0 %v2258
        %2365 = vmatpush1.bf16.msra.mxu0 %v2257
        %2366 = vmatprep.subr.bf16.mxu0 0
        %2367 = vmatpush1.bf16.msra.mxu0 0
        %2368 = vmatprep.subr.bf16.mxu0 0
        %2369 = vmatpush1.bf16.msra.mxu0 0
        %2370 = vmatprep.subr.bf16.mxu0 0
        %2371 = vmatpush1.bf16.msra.mxu0 0
        %2372 = vmatprep.subr.bf16.mxu0 0
        %2373 = vmatpush1.bf16.msra.mxu0 0
        %2374 = vmatprep.subr.bf16.mxu0 0
        %2375 = vmatpush1.bf16.msra.mxu0 0
        %2376 = vmatprep.subr.bf16.mxu0 0
        %2377 = vmatpush1.bf16.msra.mxu0 0
        %2378 = vmatprep.subr.bf16.mxu0 0
        %2379 = vmatpush1.bf16.msra.mxu0 0
        %2380 = vmatprep.subr.bf16.mxu0 0
        %2381 = vmatpush1.bf16.msra.mxu0 0
        %2382 = vmatprep.mubr.bf16.mxu0 0
        %2383 = vmatmul.mubr.bf16.gmra.mrb[0].mxu0 %v2033
        %v2384 = vpop.f32.mrb[0].mxu0
        %v2385 = vadd.f32 %v2050, %v2384
        %v2386 = vpop.f32.mrb[0].mxu0
        %v2387 = vadd.f32 %v2054, %v2386
        %v2388 = vpop.f32.mrb[0].mxu0
        %v2389 = vpop.f32.mrb[0].mxu0
        %2390 = vdwg.mxu0
        %2391 = vmatprep.subr.bf16.mxu0 %v2218
        %2392 = vmatpush1.bf16.msra.mxu0 %v2217
        %2393 = vmatprep.subr.bf16.mxu0 %v2224
        %2394 = vmatpush1.bf16.msra.mxu0 %v2223
        %2395 = vmatprep.subr.bf16.mxu0 %v2230
        %2396 = vmatpush1.bf16.msra.mxu0 %v2229
        %2397 = vmatprep.subr.bf16.mxu0 %v2236
        %2398 = vmatpush1.bf16.msra.mxu0 %v2235
        %2399 = vmatprep.subr.bf16.mxu0 %v2242
        %2400 = vmatpush1.bf16.msra.mxu0 %v2241
        %2401 = vmatprep.subr.bf16.mxu0 %v2248
        %2402 = vmatpush1.bf16.msra.mxu0 %v2247
        %2403 = vmatprep.subr.bf16.mxu0 %v2254
        %2404 = vmatpush1.bf16.msra.mxu0 %v2253
        %2405 = vmatprep.subr.bf16.mxu0 %v2260
        %2406 = vmatpush1.bf16.msra.mxu0 %v2259
        %2407 = vmatprep.subr.bf16.mxu0 0
        %2408 = vmatpush1.bf16.msra.mxu0 0
        %2409 = vmatprep.subr.bf16.mxu0 0
        %2410 = vmatpush1.bf16.msra.mxu0 0
        %2411 = vmatprep.subr.bf16.mxu0 0
        %2412 = vmatpush1.bf16.msra.mxu0 0
        %2413 = vmatprep.subr.bf16.mxu0 0
        %2414 = vmatpush1.bf16.msra.mxu0 0
        %2415 = vmatprep.subr.bf16.mxu0 0
        %2416 = vmatpush1.bf16.msra.mxu0 0
        %2417 = vmatprep.subr.bf16.mxu0 0
        %2418 = vmatpush1.bf16.msra.mxu0 0
        %2419 = vmatprep.subr.bf16.mxu0 0
        %2420 = vmatpush1.bf16.msra.mxu0 0
        %2421 = vmatprep.subr.bf16.mxu0 0
        %2422 = vmatpush1.bf16.msra.mxu0 0
        %2423 = vmatprep.mubr.bf16.mxu0 0
        %2424 = vmatmul.mubr.bf16.gmra.mrb[0].mxu0 %v2033
        %v2425 = vpop.f32.mrb[0].mxu0
        %v2426 = vadd.f32 %v2058, %v2425
        %v2427 = vpop.f32.mrb[0].mxu0
        %v2428 = vadd.f32 %v2062, %v2427
        %v2429 = vpop.f32.mrb[0].mxu0
        %v2430 = vpop.f32.mrb[0].mxu0
        %2431 = vdwg.mxu0
        %v2432 = vpack.c.bf16 %v2344, %v2344
        %v2433 = vpack.c.bf16 %v2385, %v2385
        %v2434 = vpack.c.bf16 %v2426, %v2426
        %2435 = vmatprep.subr.bf16.mxu0 0
        %2436 = vmatpush1.bf16.xpose.msra.mxu0 %v2433
        %2437 = vmatprep.subr.bf16.mxu0 0
        %2438 = vmatpush1.bf16.xpose.msra.mxu0 0
        %2439 = vmatprep.subr.bf16.mxu0 0
        %2440 = vmatpush1.bf16.xpose.msra.mxu0 0
        %2441 = vmatprep.subr.bf16.mxu0 0
        %2442 = vmatpush1.bf16.xpose.msra.mxu0 0
        %2443 = vmatprep.subr.bf16.mxu0 0
        %2444 = vmatpush1.bf16.xpose.msra.mxu0 0
        %2445 = vmatprep.subr.bf16.mxu0 0
        %2446 = vmatpush1.bf16.xpose.msra.mxu0 0
        %2447 = vmatprep.subr.bf16.mxu0 0
        %2448 = vmatpush1.bf16.xpose.msra.mxu0 0
        %2449 = vmatprep.subr.bf16.mxu0 0
        %2450 = vmatpush1.bf16.xpose.msra.mxu0 0
        %2451 = vmatprep.subr.bf16.mxu0 0
        %2452 = vmatpush1.bf16.xpose.msra.mxu0 0
        %2453 = vmatprep.subr.bf16.mxu0 0
        %2454 = vmatpush1.bf16.xpose.msra.mxu0 0
        %2455 = vmatprep.subr.bf16.mxu0 0
        %2456 = vmatpush1.bf16.xpose.msra.mxu0 0
        %2457 = vmatprep.subr.bf16.mxu0 0
        %2458 = vmatpush1.bf16.xpose.msra.mxu0 0
        %2459 = vmatprep.subr.bf16.mxu0 0
        %2460 = vmatpush1.bf16.xpose.msra.mxu0 0
        %2461 = vmatprep.subr.bf16.mxu0 0
        %2462 = vmatpush1.bf16.xpose.msra.mxu0 0
        %2463 = vmatprep.subr.bf16.mxu0 0
        %2464 = vmatpush1.bf16.xpose.msra.mxu0 0
        %2465 = vmatprep.subr.bf16.mxu0 0
        %2466 = vmatpush1.bf16.xpose.msra.mxu0 0
        %2467 = vmatprep.mubr.bf16.mxu0 0
        %2468 = vmatmul.mubr.bf16.gmra.mrb[0].mxu0 %v2432
        %v2469 = vpop.f32.mrb[0].mxu0
        %v2470 = vadd.f32 %v451, %v2469
        %v2471 = vpop.f32.mrb[0].mxu0
        %v2472 = vpop.f32.mrb[0].mxu0
        %v2473 = vpop.f32.mrb[0].mxu0
        %2474 = vdwg.mxu0
        %v2475 = vsel %vm941, %v2470, -inf
        %2476 = vmax.xlane.f32.xlu0 %v2475
        %v2477 = vpop.xlane.xlu0 %2476
        %v2478 = vsub.f32 %v2470, %v2477
        %v2479 = vmul.f32 %v2478, 1.442695
        %v2480 = vpow.pop %v2479
        %v2481 = vsel %vm941, %v2480, 0.0
        %2482 = vadd.xlane.f32.xlu0 %v2481
        %v2483 = vpop.xlane.xlu0 %2482
        %v2484 = vrcp.pop %v2483
        %v2485 = vmul.f32 %v2480, %v2484
        %v2486 = vpack.c.bf16 %v2485, %v2485
        %v2488 = vsel %vm941, %v2486, 0
        %v2491 = vsel %vm957, %v2434, 0
        %2493 = vmatprep.subr.bf16.mxu0 0
        %2494 = vmatpush1.bf16.msra.mxu0 %v2491
        %2495 = vmatprep.subr.bf16.mxu0 0
        %2496 = vmatpush1.bf16.msra.mxu0 0
        %2497 = vmatprep.subr.bf16.mxu0 0
        %2498 = vmatpush1.bf16.msra.mxu0 0
        %2499 = vmatprep.subr.bf16.mxu0 0
        %2500 = vmatpush1.bf16.msra.mxu0 0
        %2501 = vmatprep.subr.bf16.mxu0 0
        %2502 = vmatpush1.bf16.msra.mxu0 0
        %2503 = vmatprep.subr.bf16.mxu0 0
        %2504 = vmatpush1.bf16.msra.mxu0 0
        %2505 = vmatprep.subr.bf16.mxu0 0
        %2506 = vmatpush1.bf16.msra.mxu0 0
        %2507 = vmatprep.subr.bf16.mxu0 0
        %2508 = vmatpush1.bf16.msra.mxu0 0
        %2509 = vmatprep.subr.bf16.mxu0 0
        %2510 = vmatpush1.bf16.msra.mxu0 0
        %2511 = vmatprep.subr.bf16.mxu0 0
        %2512 = vmatpush1.bf16.msra.mxu0 0
        %2513 = vmatprep.subr.bf16.mxu0 0
        %2514 = vmatpush1.bf16.msra.mxu0 0
        %2515 = vmatprep.subr.bf16.mxu0 0
        %2516 = vmatpush1.bf16.msra.mxu0 0
        %2517 = vmatprep.subr.bf16.mxu0 0
        %2518 = vmatpush1.bf16.msra.mxu0 0
        %2519 = vmatprep.subr.bf16.mxu0 0
        %2520 = vmatpush1.bf16.msra.mxu0 0
        %2521 = vmatprep.subr.bf16.mxu0 0
        %2522 = vmatpush1.bf16.msra.mxu0 0
        %2523 = vmatprep.subr.bf16.mxu0 0
        %2524 = vmatpush1.bf16.msra.mxu0 0
        %2525 = vmatprep.mubr.bf16.mxu0 0
        %2526 = vmatmul.mubr.bf16.gmra.mrb[0].mxu0 %v2488
        %v2527 = vpop.f32.mrb[0].mxu0
        %v2528 = vadd.f32 0.0, %v2527
        %v2529 = vpop.f32.mrb[0].mxu0
        %v2530 = vpop.f32.mrb[0].mxu0
        %v2531 = vpop.f32.mrb[0].mxu0
        %2532 = vdwg.mxu0
        %2533 = vst [vmem:[#allocation2] sm:$0xff] %v2528
        %v2534 = vpack.c.bf16 %v2346, %v2346
        %v2535 = vpack.c.bf16 %v2387, %v2387
        %v2536 = vpack.c.bf16 %v2428, %v2428
        %2537 = vmatprep.subr.bf16.mxu0 0
        %2538 = vmatpush1.bf16.xpose.msra.mxu0 %v2535
        %2539 = vmatprep.subr.bf16.mxu0 0
        %2540 = vmatpush1.bf16.xpose.msra.mxu0 0
        %2541 = vmatprep.subr.bf16.mxu0 0
        %2542 = vmatpush1.bf16.xpose.msra.mxu0 0
        %2543 = vmatprep.subr.bf16.mxu0 0
        %2544 = vmatpush1.bf16.xpose.msra.mxu0 0
        %2545 = vmatprep.subr.bf16.mxu0 0
        %2546 = vmatpush1.bf16.xpose.msra.mxu0 0
        %2547 = vmatprep.subr.bf16.mxu0 0
        %2548 = vmatpush1.bf16.xpose.msra.mxu0 0
        %2549 = vmatprep.subr.bf16.mxu0 0
        %2550 = vmatpush1.bf16.xpose.msra.mxu0 0
        %2551 = vmatprep.subr.bf16.mxu0 0
        %2552 = vmatpush1.bf16.xpose.msra.mxu0 0
        %2553 = vmatprep.subr.bf16.mxu0 0
        %2554 = vmatpush1.bf16.xpose.msra.mxu0 0
        %2555 = vmatprep.subr.bf16.mxu0 0
        %2556 = vmatpush1.bf16.xpose.msra.mxu0 0
        %2557 = vmatprep.subr.bf16.mxu0 0
        %2558 = vmatpush1.bf16.xpose.msra.mxu0 0
        %2559 = vmatprep.subr.bf16.mxu0 0
        %2560 = vmatpush1.bf16.xpose.msra.mxu0 0
        %2561 = vmatprep.subr.bf16.mxu0 0
        %2562 = vmatpush1.bf16.xpose.msra.mxu0 0
        %2563 = vmatprep.subr.bf16.mxu0 0
        %2564 = vmatpush1.bf16.xpose.msra.mxu0 0
        %2565 = vmatprep.subr.bf16.mxu0 0
        %2566 = vmatpush1.bf16.xpose.msra.mxu0 0
        %2567 = vmatprep.subr.bf16.mxu0 0
        %2568 = vmatpush1.bf16.xpose.msra.mxu0 0
        %2569 = vmatprep.mubr.bf16.mxu0 0
        %2570 = vmatmul.mubr.bf16.gmra.mrb[0].mxu0 %v2534
        %v2571 = vpop.f32.mrb[0].mxu0
        %v2572 = vadd.f32 %v451, %v2571
        %v2573 = vpop.f32.mrb[0].mxu0
        %v2574 = vpop.f32.mrb[0].mxu0
        %v2575 = vpop.f32.mrb[0].mxu0
        %2576 = vdwg.mxu0
        %v2577 = vsel %vm941, %v2572, -inf
        %2578 = vmax.xlane.f32.xlu0 %v2577
        %v2579 = vpop.xlane.xlu0 %2578
        %v2580 = vsub.f32 %v2572, %v2579
        %v2581 = vmul.f32 %v2580, 1.442695
        %v2582 = vpow.pop %v2581
        %v2583 = vsel %vm941, %v2582, 0.0
        %2584 = vadd.xlane.f32.xlu0 %v2583
        %v2585 = vpop.xlane.xlu0 %2584
        %v2586 = vrcp.pop %v2585
        %v2587 = vmul.f32 %v2582, %v2586
        %v2588 = vpack.c.bf16 %v2587, %v2587
        %v2590 = vsel %vm941, %v2588, 0
        %v2593 = vsel %vm957, %v2536, 0
        %2595 = vmatprep.subr.bf16.mxu0 0
        %2596 = vmatpush1.bf16.msra.mxu0 %v2593
        %2597 = vmatprep.subr.bf16.mxu0 0
        %2598 = vmatpush1.bf16.msra.mxu0 0
        %2599 = vmatprep.subr.bf16.mxu0 0
        %2600 = vmatpush1.bf16.msra.mxu0 0
        %2601 = vmatprep.subr.bf16.mxu0 0
        %2602 = vmatpush1.bf16.msra.mxu0 0
        %2603 = vmatprep.subr.bf16.mxu0 0
        %2604 = vmatpush1.bf16.msra.mxu0 0
        %2605 = vmatprep.subr.bf16.mxu0 0
        %2606 = vmatpush1.bf16.msra.mxu0 0
        %2607 = vmatprep.subr.bf16.mxu0 0
        %2608 = vmatpush1.bf16.msra.mxu0 0
        %2609 = vmatprep.subr.bf16.mxu0 0
        %2610 = vmatpush1.bf16.msra.mxu0 0
        %2611 = vmatprep.subr.bf16.mxu0 0
        %2612 = vmatpush1.bf16.msra.mxu0 0
        %2613 = vmatprep.subr.bf16.mxu0 0
        %2614 = vmatpush1.bf16.msra.mxu0 0
        %2615 = vmatprep.subr.bf16.mxu0 0
        %2616 = vmatpush1.bf16.msra.mxu0 0
        %2617 = vmatprep.subr.bf16.mxu0 0
        %2618 = vmatpush1.bf16.msra.mxu0 0
        %2619 = vmatprep.subr.bf16.mxu0 0
        %2620 = vmatpush1.bf16.msra.mxu0 0
        %2621 = vmatprep.subr.bf16.mxu0 0
        %2622 = vmatpush1.bf16.msra.mxu0 0
        %2623 = vmatprep.subr.bf16.mxu0 0
        %2624 = vmatpush1.bf16.msra.mxu0 0
        %2625 = vmatprep.subr.bf16.mxu0 0
        %2626 = vmatpush1.bf16.msra.mxu0 0
        %2627 = vmatprep.mubr.bf16.mxu0 0
        %2628 = vmatmul.mubr.bf16.gmra.mrb[0].mxu0 %v2590
        %v2629 = vpop.f32.mrb[0].mxu0
        %v2630 = vadd.f32 0.0, %v2629
        %v2631 = vpop.f32.mrb[0].mxu0
        %v2632 = vpop.f32.mrb[0].mxu0
        %v2633 = vpop.f32.mrb[0].mxu0
        %2634 = vdwg.mxu0
        %2635 = vst [vmem:[#allocation2 + $0x8] sm:$0xff] %v2630
        %v2636 = vld [vmem:[#allocation2] sm:$0xff]
        %v2637 = vld [vmem:[#allocation2 + $0x8] sm:$0xff]
        %s2638 = scalar_lea.vmem %s4, 128
        %v2639 = vld [vmem:[%s2638] sm:$0xf]
        %v2640 = vld [vmem:[%s2638 + $0x4] sm:$0xf]
        %v2641 = vld [vmem:[%s2638 + $0x8] sm:$0xf]
        %v2642 = vld [vmem:[%s2638 + $0xc] sm:$0xf]
        %v2643 = vld [vmem:[%s2638 + $0x10] sm:$0xf]
        %v2644 = vld [vmem:[%s2638 + $0x14] sm:$0xf]
        %v2645 = vld [vmem:[%s2638 + $0x18] sm:$0xf]
        %v2646 = vld [vmem:[%s2638 + $0x1c] sm:$0xf]
        %v2647 = vld [vmem:[%s2638 + $0x20] sm:$0xf]
        %v2648 = vld [vmem:[%s2638 + $0x24] sm:$0xf]
        %v2649 = vld [vmem:[%s2638 + $0x28] sm:$0xf]
        %v2650 = vld [vmem:[%s2638 + $0x2c] sm:$0xf]
        %v2651 = vld [vmem:[%s2638 + $0x30] sm:$0xf]
        %v2652 = vld [vmem:[%s2638 + $0x34] sm:$0xf]
        %v2653 = vld [vmem:[%s2638 + $0x38] sm:$0xf]
        %v2654 = vld [vmem:[%s2638 + $0x3c] sm:$0xf]
        %v2655 = vld [vmem:[%s2638 + $0x40] sm:$0xf]
        %v2656 = vld [vmem:[%s2638 + $0x44] sm:$0xf]
        %v2657 = vld [vmem:[%s2638 + $0x48] sm:$0xf]
        %v2658 = vld [vmem:[%s2638 + $0x4c] sm:$0xf]
        %v2659 = vld [vmem:[%s2638 + $0x50] sm:$0xf]
        %v2660 = vld [vmem:[%s2638 + $0x54] sm:$0xf]
        %v2661 = vld [vmem:[%s2638 + $0x58] sm:$0xf]
        %v2662 = vld [vmem:[%s2638 + $0x5c] sm:$0xf]
        %v2663 = vld [vmem:[%s2638 + $0x60] sm:$0xf]
        %v2664 = vld [vmem:[%s2638 + $0x64] sm:$0xf]
        %v2665 = vld [vmem:[%s2638 + $0x68] sm:$0xf]
        %v2666 = vld [vmem:[%s2638 + $0x6c] sm:$0xf]
        %v2667 = vld [vmem:[%s2638 + $0x70] sm:$0xf]
        %v2668 = vld [vmem:[%s2638 + $0x74] sm:$0xf]
        %v2669 = vld [vmem:[%s2638 + $0x78] sm:$0xf]
        %v2670 = vld [vmem:[%s2638 + $0x7c] sm:$0xf]
        %v2671 = vpack.c.bf16 %v2636, %v2636
        %v2672 = vpack.c.bf16 %v2637, %v2637
        %v2673 = vld [vmem:[#allocation3 + $0x31] ss:$0 sm:$0xff]
        %v2706 = vunpack.c.l.b16 %v2639
        %v2707 = vunpack.c.l.b16 %v2640
        %v2708 = vunpack.c.l.b16 %v2641
        %v2709 = vunpack.c.l.b16 %v2642
        %v2710 = vunpack.c.l.b16 %v2643
        %v2711 = vunpack.c.l.b16 %v2644
        %v2712 = vunpack.c.l.b16 %v2645
        %v2713 = vunpack.c.l.b16 %v2646
        %v2714 = vunpack.c.l.b16 %v2647
        %v2715 = vunpack.c.l.b16 %v2648
        %v2716 = vunpack.c.l.b16 %v2649
        %v2717 = vunpack.c.l.b16 %v2650
        %v2718 = vunpack.c.l.b16 %v2651
        %v2719 = vunpack.c.l.b16 %v2652
        %v2720 = vunpack.c.l.b16 %v2653
        %v2721 = vunpack.c.l.b16 %v2654
        %v2722 = vunpack.c.l.b16 %v2655
        %v2723 = vunpack.c.l.b16 %v2656
        %v2724 = vunpack.c.l.b16 %v2657
        %v2725 = vunpack.c.l.b16 %v2658
        %v2726 = vunpack.c.l.b16 %v2659
        %v2727 = vunpack.c.l.b16 %v2660
        %v2728 = vunpack.c.l.b16 %v2661
        %v2729 = vunpack.c.l.b16 %v2662
        %v2730 = vunpack.c.l.b16 %v2663
        %v2731 = vunpack.c.l.b16 %v2664
        %v2732 = vunpack.c.l.b16 %v2665
        %v2733 = vunpack.c.l.b16 %v2666
        %v2734 = vunpack.c.l.b16 %v2667
        %v2735 = vunpack.c.l.b16 %v2668
        %v2736 = vunpack.c.l.b16 %v2669
        %v2737 = vunpack.c.l.b16 %v2670
        %v2738 = vpack.c.b16 %v2707, %v2706
        %v2739 = vpack.c.b16 %v2709, %v2708
        %v2740 = vpack.c.b16 %v2711, %v2710
        %v2741 = vpack.c.b16 %v2713, %v2712
        %v2742 = vpack.c.b16 %v2715, %v2714
        %v2743 = vpack.c.b16 %v2717, %v2716
        %v2744 = vpack.c.b16 %v2719, %v2718
        %v2745 = vpack.c.b16 %v2721, %v2720
        %v2746 = vpack.c.b16 %v2723, %v2722
        %v2747 = vpack.c.b16 %v2725, %v2724
        %v2748 = vpack.c.b16 %v2727, %v2726
        %v2749 = vpack.c.b16 %v2729, %v2728
        %v2750 = vpack.c.b16 %v2731, %v2730
        %v2751 = vpack.c.b16 %v2733, %v2732
        %v2752 = vpack.c.b16 %v2735, %v2734
        %v2753 = vpack.c.b16 %v2737, %v2736
        %2770 = vmatprep.subr.bf16.mxu0 0
        %2771 = vmatpush1.bf16.msra.mxu0 %v2738
        %2772 = vmatprep.subr.bf16.mxu0 0
        %2773 = vmatpush1.bf16.msra.mxu0 %v2739
        %2774 = vmatprep.subr.bf16.mxu0 0
        %2775 = vmatpush1.bf16.msra.mxu0 %v2740
        %2776 = vmatprep.subr.bf16.mxu0 0
        %2777 = vmatpush1.bf16.msra.mxu0 %v2741
        %2778 = vmatprep.subr.bf16.mxu0 0
        %2779 = vmatpush1.bf16.msra.mxu0 %v2742
        %2780 = vmatprep.subr.bf16.mxu0 0
        %2781 = vmatpush1.bf16.msra.mxu0 %v2743
        %2782 = vmatprep.subr.bf16.mxu0 0
        %2783 = vmatpush1.bf16.msra.mxu0 %v2744
        %2784 = vmatprep.subr.bf16.mxu0 0
        %2785 = vmatpush1.bf16.msra.mxu0 %v2745
        %2786 = vmatprep.subr.bf16.mxu0 0
        %2787 = vmatpush1.bf16.msra.mxu0 %v2746
        %2788 = vmatprep.subr.bf16.mxu0 0
        %2789 = vmatpush1.bf16.msra.mxu0 %v2747
        %2790 = vmatprep.subr.bf16.mxu0 0
        %2791 = vmatpush1.bf16.msra.mxu0 %v2748
        %2792 = vmatprep.subr.bf16.mxu0 0
        %2793 = vmatpush1.bf16.msra.mxu0 %v2749
        %2794 = vmatprep.subr.bf16.mxu0 0
        %2795 = vmatpush1.bf16.msra.mxu0 %v2750
        %2796 = vmatprep.subr.bf16.mxu0 0
        %2797 = vmatpush1.bf16.msra.mxu0 %v2751
        %2798 = vmatprep.subr.bf16.mxu0 0
        %2799 = vmatpush1.bf16.msra.mxu0 %v2752
        %2800 = vmatprep.subr.bf16.mxu0 0
        %2801 = vmatpush1.bf16.msra.mxu0 %v2753
        %2802 = vmatprep.mubr.bf16.mxu0 %v2672
        %2803 = vmatmul.mubr.bf16.gmra.mrb[0].mxu0 %v2671
        %v2804 = vpop.f32.mrb[0].mxu0
        %v2805 = vadd.f32 %v2673, %v2804
        %v2806 = vpop.f32.mrb[0].mxu0
        %v2807 = vpop.f32.mrb[0].mxu0
        %v2808 = vpop.f32.mrb[0].mxu0
        %2809 = vdwg.mxu0
        %v2810 = vadd.f32 %v2805, %v1983
        %v2811 = vld [vmem:[#allocation3 + $0x32] ss:$0 sm:$0xff]
        %v2812 = vld [vmem:[#allocation3 + $0x33] ss:$0 sm:$0xff]
        %2813 = vadd.xlane.f32.xlu0 %v2810
        %v2814 = vpop.xlane.xlu0 %2813
        %v2815 = vmul.f32 %v2814, %v439
        %v2816 = vsub.f32 %v2810, %v2815
        %v2817 = vmul.f32 %v2816, %v2816
        %2818 = vadd.xlane.f32.xlu0 %v2817
        %v2819 = vpop.xlane.xlu0 %2818
        %v2820 = vmul.f32 %v2819, %v439
        %v2821 = vadd.f32 %v2820, 1e-12
        %v2822 = vrsqrt.pop %v2821
        %v2823 = vmul.f32 %v2816, %v2822
        %v2824 = vmul.f32 %v2823, %v2811
        %v2825 = vadd.f32 %v2824, %v2812
        %s2826 = scalar_lea.vmem [#allocation7], 256
        %v2827 = vld [vmem:[%s2826] sm:$0xff]
        %v2828 = vld [vmem:[%s2826 + $0x8] sm:$0xff]
        %v2829 = vld [vmem:[%s2826 + $0x10] sm:$0xff]
        %v2830 = vld [vmem:[%s2826 + $0x18] sm:$0xff]
        %v2831 = vld [vmem:[%s2826 + $0x20] sm:$0xff]
        %v2832 = vld [vmem:[%s2826 + $0x28] sm:$0xff]
        %v2833 = vld [vmem:[%s2826 + $0x30] sm:$0xff]
        %v2834 = vld [vmem:[%s2826 + $0x38] sm:$0xff]
        %v2835 = vld [vmem:[%s2826 + $0x40] sm:$0xff]
        %v2836 = vld [vmem:[%s2826 + $0x48] sm:$0xff]
        %v2837 = vld [vmem:[%s2826 + $0x50] sm:$0xff]
        %v2838 = vld [vmem:[%s2826 + $0x58] sm:$0xff]
        %v2839 = vld [vmem:[%s2826 + $0x60] sm:$0xff]
        %v2840 = vld [vmem:[%s2826 + $0x68] sm:$0xff]
        %v2841 = vld [vmem:[%s2826 + $0x70] sm:$0xff]
        %v2842 = vld [vmem:[%s2826 + $0x78] sm:$0xff]
        %v2843 = vld [vmem:[%s2826 + $0x80] sm:$0xff]
        %v2844 = vld [vmem:[%s2826 + $0x88] sm:$0xff]
        %v2845 = vld [vmem:[%s2826 + $0x90] sm:$0xff]
        %v2846 = vld [vmem:[%s2826 + $0x98] sm:$0xff]
        %v2847 = vld [vmem:[%s2826 + $0xa0] sm:$0xff]
        %v2848 = vld [vmem:[%s2826 + $0xa8] sm:$0xff]
        %v2849 = vld [vmem:[%s2826 + $0xb0] sm:$0xff]
        %v2850 = vld [vmem:[%s2826 + $0xb8] sm:$0xff]
        %v2851 = vld [vmem:[%s2826 + $0xc0] sm:$0xff]
        %v2852 = vld [vmem:[%s2826 + $0xc8] sm:$0xff]
        %v2853 = vld [vmem:[%s2826 + $0xd0] sm:$0xff]
        %v2854 = vld [vmem:[%s2826 + $0xd8] sm:$0xff]
        %v2855 = vld [vmem:[%s2826 + $0xe0] sm:$0xff]
        %v2856 = vld [vmem:[%s2826 + $0xe8] sm:$0xff]
        %v2857 = vld [vmem:[%s2826 + $0xf0] sm:$0xff]
        %v2858 = vld [vmem:[%s2826 + $0xf8] sm:$0xff]
        %v2859 = vpack.c.bf16 %v2825, %v2825
        %s2860 = scalar_lea.vmem [#allocation3], 52
        %v2861 = vld [vmem:[%s2860] ss:$8 sm:$0xf]
        %v2863 = vlaneseq
        %v2864 = vshrl.u32 %v2863, 7
        %v2865 = vsub.s32 0, %v2864
        %v2866 = vrot.slane %v2861, %v2865
        %v2867 = vlaneseq
        %v2868 = vshrl.u32 %v2867, 7
        %v2869 = vsub.s32 1, %v2868
        %v2870 = vrot.slane %v2861, %v2869
        %v2871 = vlaneseq
        %v2872 = vshrl.u32 %v2871, 7
        %v2873 = vsub.s32 2, %v2872
        %v2874 = vrot.slane %v2861, %v2873
        %v2875 = vlaneseq
        %v2876 = vshrl.u32 %v2875, 7
        %v2877 = vsub.s32 3, %v2876
        %v2878 = vrot.slane %v2861, %v2877
        %v2915 = vunpack.c.l.b16 %v2827
        %v2916 = vunpack.c.h.b16 %v2827
        %v2917 = vunpack.c.l.b16 %v2828
        %v2918 = vunpack.c.h.b16 %v2828
        %v2919 = vunpack.c.l.b16 %v2829
        %v2920 = vunpack.c.h.b16 %v2829
        %v2921 = vunpack.c.l.b16 %v2830
        %v2922 = vunpack.c.h.b16 %v2830
        %v2923 = vunpack.c.l.b16 %v2831
        %v2924 = vunpack.c.h.b16 %v2831
        %v2925 = vunpack.c.l.b16 %v2832
        %v2926 = vunpack.c.h.b16 %v2832
        %v2927 = vunpack.c.l.b16 %v2833
        %v2928 = vunpack.c.h.b16 %v2833
        %v2929 = vunpack.c.l.b16 %v2834
        %v2930 = vunpack.c.h.b16 %v2834
        %v2931 = vunpack.c.l.b16 %v2835
        %v2932 = vunpack.c.h.b16 %v2835
        %v2933 = vunpack.c.l.b16 %v2836
        %v2934 = vunpack.c.h.b16 %v2836
        %v2935 = vunpack.c.l.b16 %v2837
        %v2936 = vunpack.c.h.b16 %v2837
        %v2937 = vunpack.c.l.b16 %v2838
        %v2938 = vunpack.c.h.b16 %v2838
        %v2939 = vunpack.c.l.b16 %v2839
        %v2940 = vunpack.c.h.b16 %v2839
        %v2941 = vunpack.c.l.b16 %v2840
        %v2942 = vunpack.c.h.b16 %v2840
        %v2943 = vunpack.c.l.b16 %v2841
        %v2944 = vunpack.c.h.b16 %v2841
        %v2945 = vunpack.c.l.b16 %v2842
        %v2946 = vunpack.c.h.b16 %v2842
        %v2947 = vunpack.c.l.b16 %v2843
        %v2948 = vunpack.c.h.b16 %v2843
        %v2949 = vunpack.c.l.b16 %v2844
        %v2950 = vunpack.c.h.b16 %v2844
        %v2951 = vunpack.c.l.b16 %v2845
        %v2952 = vunpack.c.h.b16 %v2845
        %v2953 = vunpack.c.l.b16 %v2846
        %v2954 = vunpack.c.h.b16 %v2846
        %v2955 = vunpack.c.l.b16 %v2847
        %v2956 = vunpack.c.h.b16 %v2847
        %v2957 = vunpack.c.l.b16 %v2848
        %v2958 = vunpack.c.h.b16 %v2848
        %v2959 = vunpack.c.l.b16 %v2849
        %v2960 = vunpack.c.h.b16 %v2849
        %v2961 = vunpack.c.l.b16 %v2850
        %v2962 = vunpack.c.h.b16 %v2850
        %v2963 = vunpack.c.l.b16 %v2851
        %v2964 = vunpack.c.h.b16 %v2851
        %v2965 = vunpack.c.l.b16 %v2852
        %v2966 = vunpack.c.h.b16 %v2852
        %v2967 = vunpack.c.l.b16 %v2853
        %v2968 = vunpack.c.h.b16 %v2853
        %v2969 = vunpack.c.l.b16 %v2854
        %v2970 = vunpack.c.h.b16 %v2854
        %v2971 = vunpack.c.l.b16 %v2855
        %v2972 = vunpack.c.h.b16 %v2855
        %v2973 = vunpack.c.l.b16 %v2856
        %v2974 = vunpack.c.h.b16 %v2856
        %v2975 = vunpack.c.l.b16 %v2857
        %v2976 = vunpack.c.h.b16 %v2857
        %v2977 = vunpack.c.l.b16 %v2858
        %v2978 = vunpack.c.h.b16 %v2858
        %v2979 = vpack.c.b16 %v2919, %v2915
        %v2980 = vpack.c.b16 %v2920, %v2916
        %v2981 = vpack.c.b16 %v2921, %v2917
        %v2982 = vpack.c.b16 %v2922, %v2918
        %v2983 = vpack.c.b16 %v2927, %v2923
        %v2984 = vpack.c.b16 %v2928, %v2924
        %v2985 = vpack.c.b16 %v2929, %v2925
        %v2986 = vpack.c.b16 %v2930, %v2926
        %v2987 = vpack.c.b16 %v2935, %v2931
        %v2988 = vpack.c.b16 %v2936, %v2932
        %v2989 = vpack.c.b16 %v2937, %v2933
        %v2990 = vpack.c.b16 %v2938, %v2934
        %v2991 = vpack.c.b16 %v2943, %v2939
        %v2992 = vpack.c.b16 %v2944, %v2940
        %v2993 = vpack.c.b16 %v2945, %v2941
        %v2994 = vpack.c.b16 %v2946, %v2942
        %v2995 = vpack.c.b16 %v2951, %v2947
        %v2996 = vpack.c.b16 %v2952, %v2948
        %v2997 = vpack.c.b16 %v2953, %v2949
        %v2998 = vpack.c.b16 %v2954, %v2950
        %v2999 = vpack.c.b16 %v2959, %v2955
        %v3000 = vpack.c.b16 %v2960, %v2956
        %v3001 = vpack.c.b16 %v2961, %v2957
        %v3002 = vpack.c.b16 %v2962, %v2958
        %v3003 = vpack.c.b16 %v2967, %v2963
        %v3004 = vpack.c.b16 %v2968, %v2964
        %v3005 = vpack.c.b16 %v2969, %v2965
        %v3006 = vpack.c.b16 %v2970, %v2966
        %v3007 = vpack.c.b16 %v2975, %v2971
        %v3008 = vpack.c.b16 %v2976, %v2972
        %v3009 = vpack.c.b16 %v2977, %v2973
        %v3010 = vpack.c.b16 %v2978, %v2974
        %3043 = vmatprep.subr.bf16.mxu0 %v2980
        %3044 = vmatpush1.bf16.msra.mxu0 %v2979
        %3045 = vmatprep.subr.bf16.mxu0 %v2984
        %3046 = vmatpush1.bf16.msra.mxu0 %v2983
        %3047 = vmatprep.subr.bf16.mxu0 %v2988
        %3048 = vmatpush1.bf16.msra.mxu0 %v2987
        %3049 = vmatprep.subr.bf16.mxu0 %v2992
        %3050 = vmatpush1.bf16.msra.mxu0 %v2991
        %3051 = vmatprep.subr.bf16.mxu0 %v2996
        %3052 = vmatpush1.bf16.msra.mxu0 %v2995
        %3053 = vmatprep.subr.bf16.mxu0 %v3000
        %3054 = vmatpush1.bf16.msra.mxu0 %v2999
        %3055 = vmatprep.subr.bf16.mxu0 %v3004
        %3056 = vmatpush1.bf16.msra.mxu0 %v3003
        %3057 = vmatprep.subr.bf16.mxu0 %v3008
        %3058 = vmatpush1.bf16.msra.mxu0 %v3007
        %3059 = vmatprep.subr.bf16.mxu0 0
        %3060 = vmatpush1.bf16.msra.mxu0 0
        %3061 = vmatprep.subr.bf16.mxu0 0
        %3062 = vmatpush1.bf16.msra.mxu0 0
        %3063 = vmatprep.subr.bf16.mxu0 0
        %3064 = vmatpush1.bf16.msra.mxu0 0
        %3065 = vmatprep.subr.bf16.mxu0 0
        %3066 = vmatpush1.bf16.msra.mxu0 0
        %3067 = vmatprep.subr.bf16.mxu0 0
        %3068 = vmatpush1.bf16.msra.mxu0 0
        %3069 = vmatprep.subr.bf16.mxu0 0
        %3070 = vmatpush1.bf16.msra.mxu0 0
        %3071 = vmatprep.subr.bf16.mxu0 0
        %3072 = vmatpush1.bf16.msra.mxu0 0
        %3073 = vmatprep.subr.bf16.mxu0 0
        %3074 = vmatpush1.bf16.msra.mxu0 0
        %3075 = vmatprep.mubr.bf16.mxu0 0
        %3076 = vmatmul.mubr.bf16.gmra.mrb[0].mxu0 %v2859
        %v3077 = vpop.f32.mrb[0].mxu0
        %v3078 = vadd.f32 %v2866, %v3077
        %v3079 = vpop.f32.mrb[0].mxu0
        %v3080 = vadd.f32 %v2870, %v3079
        %v3081 = vpop.f32.mrb[0].mxu0
        %v3082 = vpop.f32.mrb[0].mxu0
        %3083 = vdwg.mxu0
        %3084 = vmatprep.subr.bf16.mxu0 %v2982
        %3085 = vmatpush1.bf16.msra.mxu0 %v2981
        %3086 = vmatprep.subr.bf16.mxu0 %v2986
        %3087 = vmatpush1.bf16.msra.mxu0 %v2985
        %3088 = vmatprep.subr.bf16.mxu0 %v2990
        %3089 = vmatpush1.bf16.msra.mxu0 %v2989
        %3090 = vmatprep.subr.bf16.mxu0 %v2994
        %3091 = vmatpush1.bf16.msra.mxu0 %v2993
        %3092 = vmatprep.subr.bf16.mxu0 %v2998
        %3093 = vmatpush1.bf16.msra.mxu0 %v2997
        %3094 = vmatprep.subr.bf16.mxu0 %v3002
        %3095 = vmatpush1.bf16.msra.mxu0 %v3001
        %3096 = vmatprep.subr.bf16.mxu0 %v3006
        %3097 = vmatpush1.bf16.msra.mxu0 %v3005
        %3098 = vmatprep.subr.bf16.mxu0 %v3010
        %3099 = vmatpush1.bf16.msra.mxu0 %v3009
        %3100 = vmatprep.subr.bf16.mxu0 0
        %3101 = vmatpush1.bf16.msra.mxu0 0
        %3102 = vmatprep.subr.bf16.mxu0 0
        %3103 = vmatpush1.bf16.msra.mxu0 0
        %3104 = vmatprep.subr.bf16.mxu0 0
        %3105 = vmatpush1.bf16.msra.mxu0 0
        %3106 = vmatprep.subr.bf16.mxu0 0
        %3107 = vmatpush1.bf16.msra.mxu0 0
        %3108 = vmatprep.subr.bf16.mxu0 0
        %3109 = vmatpush1.bf16.msra.mxu0 0
        %3110 = vmatprep.subr.bf16.mxu0 0
        %3111 = vmatpush1.bf16.msra.mxu0 0
        %3112 = vmatprep.subr.bf16.mxu0 0
        %3113 = vmatpush1.bf16.msra.mxu0 0
        %3114 = vmatprep.subr.bf16.mxu0 0
        %3115 = vmatpush1.bf16.msra.mxu0 0
        %3116 = vmatprep.mubr.bf16.mxu0 0
        %3117 = vmatmul.mubr.bf16.gmra.mrb[0].mxu0 %v2859
        %v3118 = vpop.f32.mrb[0].mxu0
        %v3119 = vadd.f32 %v2874, %v3118
        %v3120 = vpop.f32.mrb[0].mxu0
        %v3121 = vadd.f32 %v2878, %v3120
        %v3122 = vpop.f32.mrb[0].mxu0
        %v3123 = vpop.f32.mrb[0].mxu0
        %3124 = vdwg.mxu0
        %v3125 = vmul.f32 %v3078, %v3078
        %v3126 = vmul.f32 %v3080, %v3080
        %v3127 = vmul.f32 %v3119, %v3119
        %v3128 = vmul.f32 %v3121, %v3121
        %v3129 = vmul.f32 %v3078, %v3125
        %v3130 = vmul.f32 %v3080, %v3126
        %v3131 = vmul.f32 %v3119, %v3127
        %v3132 = vmul.f32 %v3121, %v3128
        %v3133 = vmul.f32 %v3129, 0.044715
        %v3134 = vmul.f32 %v3130, 0.044715
        %v3135 = vmul.f32 %v3131, 0.044715
        %v3136 = vmul.f32 %v3132, 0.044715
        %v3137 = vadd.f32 %v3078, %v3133
        %v3138 = vadd.f32 %v3080, %v3134
        %v3139 = vadd.f32 %v3119, %v3135
        %v3140 = vadd.f32 %v3121, %v3136
        %v3141 = vmul.f32 %v3137, 0.7978846
        %v3142 = vmul.f32 %v3138, 0.7978846
        %v3143 = vmul.f32 %v3139, 0.7978846
        %v3144 = vmul.f32 %v3140, 0.7978846
        %v3145 = vtanh.pop %v3141
        %v3146 = vtanh.pop %v3142
        %v3147 = vtanh.pop %v3143
        %v3148 = vtanh.pop %v3144
        %v3149 = vadd.f32 %v3145, 1.0
        %v3150 = vadd.f32 %v3146, 1.0
        %v3151 = vadd.f32 %v3147, 1.0
        %v3152 = vadd.f32 %v3148, 1.0
        %v3153 = vmul.f32 %v3149, 0.5
        %v3154 = vmul.f32 %v3150, 0.5
        %v3155 = vmul.f32 %v3151, 0.5
        %v3156 = vmul.f32 %v3152, 0.5
        %v3157 = vmul.f32 %v3078, %v3153
        %v3158 = vmul.f32 %v3080, %v3154
        %v3159 = vmul.f32 %v3119, %v3155
        %v3160 = vmul.f32 %v3121, %v3156
        %s3161 = scalar_lea.vmem [#allocation8], 256
        %v3162 = vld [vmem:[%s3161] sm:$0xf]
        %v3163 = vld [vmem:[%s3161 + $0x4] sm:$0xf]
        %v3164 = vld [vmem:[%s3161 + $0x8] sm:$0xf]
        %v3165 = vld [vmem:[%s3161 + $0xc] sm:$0xf]
        %v3166 = vld [vmem:[%s3161 + $0x10] sm:$0xf]
        %v3167 = vld [vmem:[%s3161 + $0x14] sm:$0xf]
        %v3168 = vld [vmem:[%s3161 + $0x18] sm:$0xf]
        %v3169 = vld [vmem:[%s3161 + $0x1c] sm:$0xf]
        %v3170 = vld [vmem:[%s3161 + $0x20] sm:$0xf]
        %v3171 = vld [vmem:[%s3161 + $0x24] sm:$0xf]
        %v3172 = vld [vmem:[%s3161 + $0x28] sm:$0xf]
        %v3173 = vld [vmem:[%s3161 + $0x2c] sm:$0xf]
        %v3174 = vld [vmem:[%s3161 + $0x30] sm:$0xf]
        %v3175 = vld [vmem:[%s3161 + $0x34] sm:$0xf]
        %v3176 = vld [vmem:[%s3161 + $0x38] sm:$0xf]
        %v3177 = vld [vmem:[%s3161 + $0x3c] sm:$0xf]
        %v3178 = vld [vmem:[%s3161 + $0x40] sm:$0xf]
        %v3179 = vld [vmem:[%s3161 + $0x44] sm:$0xf]
        %v3180 = vld [vmem:[%s3161 + $0x48] sm:$0xf]
        %v3181 = vld [vmem:[%s3161 + $0x4c] sm:$0xf]
        %v3182 = vld [vmem:[%s3161 + $0x50] sm:$0xf]
        %v3183 = vld [vmem:[%s3161 + $0x54] sm:$0xf]
        %v3184 = vld [vmem:[%s3161 + $0x58] sm:$0xf]
        %v3185 = vld [vmem:[%s3161 + $0x5c] sm:$0xf]
        %v3186 = vld [vmem:[%s3161 + $0x60] sm:$0xf]
        %v3187 = vld [vmem:[%s3161 + $0x64] sm:$0xf]
        %v3188 = vld [vmem:[%s3161 + $0x68] sm:$0xf]
        %v3189 = vld [vmem:[%s3161 + $0x6c] sm:$0xf]
        %v3190 = vld [vmem:[%s3161 + $0x70] sm:$0xf]
        %v3191 = vld [vmem:[%s3161 + $0x74] sm:$0xf]
        %v3192 = vld [vmem:[%s3161 + $0x78] sm:$0xf]
        %v3193 = vld [vmem:[%s3161 + $0x7c] sm:$0xf]
        %v3194 = vld [vmem:[%s3161 + $0x80] sm:$0xf]
        %v3195 = vld [vmem:[%s3161 + $0x84] sm:$0xf]
        %v3196 = vld [vmem:[%s3161 + $0x88] sm:$0xf]
        %v3197 = vld [vmem:[%s3161 + $0x8c] sm:$0xf]
        %v3198 = vld [vmem:[%s3161 + $0x90] sm:$0xf]
        %v3199 = vld [vmem:[%s3161 + $0x94] sm:$0xf]
        %v3200 = vld [vmem:[%s3161 + $0x98] sm:$0xf]
        %v3201 = vld [vmem:[%s3161 + $0x9c] sm:$0xf]
        %v3202 = vld [vmem:[%s3161 + $0xa0] sm:$0xf]
        %v3203 = vld [vmem:[%s3161 + $0xa4] sm:$0xf]
        %v3204 = vld [vmem:[%s3161 + $0xa8] sm:$0xf]
        %v3205 = vld [vmem:[%s3161 + $0xac] sm:$0xf]
        %v3206 = vld [vmem:[%s3161 + $0xb0] sm:$0xf]
        %v3207 = vld [vmem:[%s3161 + $0xb4] sm:$0xf]
        %v3208 = vld [vmem:[%s3161 + $0xb8] sm:$0xf]
        %v3209 = vld [vmem:[%s3161 + $0xbc] sm:$0xf]
        %v3210 = vld [vmem:[%s3161 + $0xc0] sm:$0xf]
        %v3211 = vld [vmem:[%s3161 + $0xc4] sm:$0xf]
        %v3212 = vld [vmem:[%s3161 + $0xc8] sm:$0xf]
        %v3213 = vld [vmem:[%s3161 + $0xcc] sm:$0xf]
        %v3214 = vld [vmem:[%s3161 + $0xd0] sm:$0xf]
        %v3215 = vld [vmem:[%s3161 + $0xd4] sm:$0xf]
        %v3216 = vld [vmem:[%s3161 + $0xd8] sm:$0xf]
        %v3217 = vld [vmem:[%s3161 + $0xdc] sm:$0xf]
        %v3218 = vld [vmem:[%s3161 + $0xe0] sm:$0xf]
        %v3219 = vld [vmem:[%s3161 + $0xe4] sm:$0xf]
        %v3220 = vld [vmem:[%s3161 + $0xe8] sm:$0xf]
        %v3221 = vld [vmem:[%s3161 + $0xec] sm:$0xf]
        %v3222 = vld [vmem:[%s3161 + $0xf0] sm:$0xf]
        %v3223 = vld [vmem:[%s3161 + $0xf4] sm:$0xf]
        %v3224 = vld [vmem:[%s3161 + $0xf8] sm:$0xf]
        %v3225 = vld [vmem:[%s3161 + $0xfc] sm:$0xf]
        %v3226 = vpack.c.bf16 %v3157, %v3157
        %v3227 = vpack.c.bf16 %v3158, %v3158
        %v3228 = vpack.c.bf16 %v3159, %v3159
        %v3229 = vpack.c.bf16 %v3160, %v3160
        %v3230 = vld [vmem:[#allocation3 + $0x35] ss:$0 sm:$0xff]
        %v3295 = vunpack.c.l.b16 %v3162
        %v3296 = vunpack.c.l.b16 %v3163
        %v3297 = vunpack.c.l.b16 %v3164
        %v3298 = vunpack.c.l.b16 %v3165
        %v3299 = vunpack.c.l.b16 %v3166
        %v3300 = vunpack.c.l.b16 %v3167
        %v3301 = vunpack.c.l.b16 %v3168
        %v3302 = vunpack.c.l.b16 %v3169
        %v3303 = vunpack.c.l.b16 %v3170
        %v3304 = vunpack.c.l.b16 %v3171
        %v3305 = vunpack.c.l.b16 %v3172
        %v3306 = vunpack.c.l.b16 %v3173
        %v3307 = vunpack.c.l.b16 %v3174
        %v3308 = vunpack.c.l.b16 %v3175
        %v3309 = vunpack.c.l.b16 %v3176
        %v3310 = vunpack.c.l.b16 %v3177
        %v3311 = vunpack.c.l.b16 %v3178
        %v3312 = vunpack.c.l.b16 %v3179
        %v3313 = vunpack.c.l.b16 %v3180
        %v3314 = vunpack.c.l.b16 %v3181
        %v3315 = vunpack.c.l.b16 %v3182
        %v3316 = vunpack.c.l.b16 %v3183
        %v3317 = vunpack.c.l.b16 %v3184
        %v3318 = vunpack.c.l.b16 %v3185
        %v3319 = vunpack.c.l.b16 %v3186
        %v3320 = vunpack.c.l.b16 %v3187
        %v3321 = vunpack.c.l.b16 %v3188
        %v3322 = vunpack.c.l.b16 %v3189
        %v3323 = vunpack.c.l.b16 %v3190
        %v3324 = vunpack.c.l.b16 %v3191
        %v3325 = vunpack.c.l.b16 %v3192
        %v3326 = vunpack.c.l.b16 %v3193
        %v3327 = vunpack.c.l.b16 %v3194
        %v3328 = vunpack.c.l.b16 %v3195
        %v3329 = vunpack.c.l.b16 %v3196
        %v3330 = vunpack.c.l.b16 %v3197
        %v3331 = vunpack.c.l.b16 %v3198
        %v3332 = vunpack.c.l.b16 %v3199
        %v3333 = vunpack.c.l.b16 %v3200
        %v3334 = vunpack.c.l.b16 %v3201
        %v3335 = vunpack.c.l.b16 %v3202
        %v3336 = vunpack.c.l.b16 %v3203
        %v3337 = vunpack.c.l.b16 %v3204
        %v3338 = vunpack.c.l.b16 %v3205
        %v3339 = vunpack.c.l.b16 %v3206
        %v3340 = vunpack.c.l.b16 %v3207
        %v3341 = vunpack.c.l.b16 %v3208
        %v3342 = vunpack.c.l.b16 %v3209
        %v3343 = vunpack.c.l.b16 %v3210
        %v3344 = vunpack.c.l.b16 %v3211
        %v3345 = vunpack.c.l.b16 %v3212
        %v3346 = vunpack.c.l.b16 %v3213
        %v3347 = vunpack.c.l.b16 %v3214
        %v3348 = vunpack.c.l.b16 %v3215
        %v3349 = vunpack.c.l.b16 %v3216
        %v3350 = vunpack.c.l.b16 %v3217
        %v3351 = vunpack.c.l.b16 %v3218
        %v3352 = vunpack.c.l.b16 %v3219
        %v3353 = vunpack.c.l.b16 %v3220
        %v3354 = vunpack.c.l.b16 %v3221
        %v3355 = vunpack.c.l.b16 %v3222
        %v3356 = vunpack.c.l.b16 %v3223
        %v3357 = vunpack.c.l.b16 %v3224
        %v3358 = vunpack.c.l.b16 %v3225
        %v3359 = vpack.c.b16 %v3296, %v3295
        %v3360 = vpack.c.b16 %v3298, %v3297
        %v3361 = vpack.c.b16 %v3300, %v3299
        %v3362 = vpack.c.b16 %v3302, %v3301
        %v3363 = vpack.c.b16 %v3304, %v3303
        %v3364 = vpack.c.b16 %v3306, %v3305
        %v3365 = vpack.c.b16 %v3308, %v3307
        %v3366 = vpack.c.b16 %v3310, %v3309
        %v3367 = vpack.c.b16 %v3312, %v3311
        %v3368 = vpack.c.b16 %v3314, %v3313
        %v3369 = vpack.c.b16 %v3316, %v3315
        %v3370 = vpack.c.b16 %v3318, %v3317
        %v3371 = vpack.c.b16 %v3320, %v3319
        %v3372 = vpack.c.b16 %v3322, %v3321
        %v3373 = vpack.c.b16 %v3324, %v3323
        %v3374 = vpack.c.b16 %v3326, %v3325
        %v3375 = vpack.c.b16 %v3328, %v3327
        %v3376 = vpack.c.b16 %v3330, %v3329
        %v3377 = vpack.c.b16 %v3332, %v3331
        %v3378 = vpack.c.b16 %v3334, %v3333
        %v3379 = vpack.c.b16 %v3336, %v3335
        %v3380 = vpack.c.b16 %v3338, %v3337
        %v3381 = vpack.c.b16 %v3340, %v3339
        %v3382 = vpack.c.b16 %v3342, %v3341
        %v3383 = vpack.c.b16 %v3344, %v3343
        %v3384 = vpack.c.b16 %v3346, %v3345
        %v3385 = vpack.c.b16 %v3348, %v3347
        %v3386 = vpack.c.b16 %v3350, %v3349
        %v3387 = vpack.c.b16 %v3352, %v3351
        %v3388 = vpack.c.b16 %v3354, %v3353
        %v3389 = vpack.c.b16 %v3356, %v3355
        %v3390 = vpack.c.b16 %v3358, %v3357
        %3423 = vmatprep.subr.bf16.mxu0 0
        %3424 = vmatpush1.bf16.msra.mxu0 %v3359
        %3425 = vmatprep.subr.bf16.mxu0 0
        %3426 = vmatpush1.bf16.msra.mxu0 %v3360
        %3427 = vmatprep.subr.bf16.mxu0 0
        %3428 = vmatpush1.bf16.msra.mxu0 %v3361
        %3429 = vmatprep.subr.bf16.mxu0 0
        %3430 = vmatpush1.bf16.msra.mxu0 %v3362
        %3431 = vmatprep.subr.bf16.mxu0 0
        %3432 = vmatpush1.bf16.msra.mxu0 %v3363
        %3433 = vmatprep.subr.bf16.mxu0 0
        %3434 = vmatpush1.bf16.msra.mxu0 %v3364
        %3435 = vmatprep.subr.bf16.mxu0 0
        %3436 = vmatpush1.bf16.msra.mxu0 %v3365
        %3437 = vmatprep.subr.bf16.mxu0 0
        %3438 = vmatpush1.bf16.msra.mxu0 %v3366
        %3439 = vmatprep.subr.bf16.mxu0 0
        %3440 = vmatpush1.bf16.msra.mxu0 %v3367
        %3441 = vmatprep.subr.bf16.mxu0 0
        %3442 = vmatpush1.bf16.msra.mxu0 %v3368
        %3443 = vmatprep.subr.bf16.mxu0 0
        %3444 = vmatpush1.bf16.msra.mxu0 %v3369
        %3445 = vmatprep.subr.bf16.mxu0 0
        %3446 = vmatpush1.bf16.msra.mxu0 %v3370
        %3447 = vmatprep.subr.bf16.mxu0 0
        %3448 = vmatpush1.bf16.msra.mxu0 %v3371
        %3449 = vmatprep.subr.bf16.mxu0 0
        %3450 = vmatpush1.bf16.msra.mxu0 %v3372
        %3451 = vmatprep.subr.bf16.mxu0 0
        %3452 = vmatpush1.bf16.msra.mxu0 %v3373
        %3453 = vmatprep.subr.bf16.mxu0 0
        %3454 = vmatpush1.bf16.msra.mxu0 %v3374
        %3455 = vmatprep.mubr.bf16.mxu0 %v3227
        %3456 = vmatmul.mubr.bf16.gmra.mrb[0].mxu0 %v3226
        %v3457 = vpop.f32.mrb[0].mxu0
        %v3458 = vadd.f32 %v3230, %v3457
        %v3459 = vpop.f32.mrb[0].mxu0
        %v3460 = vpop.f32.mrb[0].mxu0
        %v3461 = vpop.f32.mrb[0].mxu0
        %3462 = vdwg.mxu0
        %3463 = vmatprep.subr.bf16.mxu0 0
        %3464 = vmatpush1.bf16.msra.mxu0 %v3375
        %3465 = vmatprep.subr.bf16.mxu0 0
        %3466 = vmatpush1.bf16.msra.mxu0 %v3376
        %3467 = vmatprep.subr.bf16.mxu0 0
        %3468 = vmatpush1.bf16.msra.mxu0 %v3377
        %3469 = vmatprep.subr.bf16.mxu0 0
        %3470 = vmatpush1.bf16.msra.mxu0 %v3378
        %3471 = vmatprep.subr.bf16.mxu0 0
        %3472 = vmatpush1.bf16.msra.mxu0 %v3379
        %3473 = vmatprep.subr.bf16.mxu0 0
        %3474 = vmatpush1.bf16.msra.mxu0 %v3380
        %3475 = vmatprep.subr.bf16.mxu0 0
        %3476 = vmatpush1.bf16.msra.mxu0 %v3381
        %3477 = vmatprep.subr.bf16.mxu0 0
        %3478 = vmatpush1.bf16.msra.mxu0 %v3382
        %3479 = vmatprep.subr.bf16.mxu0 0
        %3480 = vmatpush1.bf16.msra.mxu0 %v3383
        %3481 = vmatprep.subr.bf16.mxu0 0
        %3482 = vmatpush1.bf16.msra.mxu0 %v3384
        %3483 = vmatprep.subr.bf16.mxu0 0
        %3484 = vmatpush1.bf16.msra.mxu0 %v3385
        %3485 = vmatprep.subr.bf16.mxu0 0
        %3486 = vmatpush1.bf16.msra.mxu0 %v3386
        %3487 = vmatprep.subr.bf16.mxu0 0
        %3488 = vmatpush1.bf16.msra.mxu0 %v3387
        %3489 = vmatprep.subr.bf16.mxu0 0
        %3490 = vmatpush1.bf16.msra.mxu0 %v3388
        %3491 = vmatprep.subr.bf16.mxu0 0
        %3492 = vmatpush1.bf16.msra.mxu0 %v3389
        %3493 = vmatprep.subr.bf16.mxu0 0
        %3494 = vmatpush1.bf16.msra.mxu0 %v3390
        %3495 = vmatprep.mubr.bf16.mxu0 %v3229
        %3496 = vmatmul.mubr.bf16.gmra.mrb[0].mxu0 %v3228
        %v3497 = vpop.f32.mrb[0].mxu0
        %v3498 = vadd.f32 %v3458, %v3497
        %v3499 = vpop.f32.mrb[0].mxu0
        %v3500 = vpop.f32.mrb[0].mxu0
        %v3501 = vpop.f32.mrb[0].mxu0
        %3502 = vdwg.mxu0
        %v3503 = vadd.f32 %v3498, %v2825
        %v3504 = vld [vmem:[#allocation3 + $0x36] ss:$0 sm:$0xff]
        %v3505 = vld [vmem:[#allocation3 + $0x37] ss:$0 sm:$0xff]
        %3506 = vadd.xlane.f32.xlu0 %v3503
        %v3507 = vpop.xlane.xlu0 %3506
        %v3508 = vmul.f32 %v3507, %v439
        %v3509 = vsub.f32 %v3503, %v3508
        %v3510 = vmul.f32 %v3509, %v3509
        %3511 = vadd.xlane.f32.xlu0 %v3510
        %v3512 = vpop.xlane.xlu0 %3511
        %v3513 = vmul.f32 %v3512, %v439
        %v3514 = vadd.f32 %v3513, 1e-12
        %v3515 = vrsqrt.pop %v3514
        %v3516 = vmul.f32 %v3509, %v3515
        %v3517 = vmul.f32 %v3516, %v3504
        %v3518 = vadd.f32 %v3517, %v3505
        %v3519 = vld [vmem:[#allocation10] sm:$0xff]
        %v3520 = vld [vmem:[#allocation10 + $0x8] sm:$0xff]
        %v3521 = vld [vmem:[#allocation10 + $0x10] sm:$0xff]
        %v3522 = vld [vmem:[#allocation10 + $0x18] sm:$0xff]
        %v3523 = vld [vmem:[#allocation10 + $0x20] sm:$0xff]
        %v3524 = vld [vmem:[#allocation10 + $0x28] sm:$0xff]
        %v3525 = vld [vmem:[#allocation10 + $0x30] sm:$0xff]
        %v3526 = vld [vmem:[#allocation10 + $0x38] sm:$0xff]
        %v3527 = vld [vmem:[#allocation10 + $0x40] sm:$0xff]
        %v3528 = vld [vmem:[#allocation10 + $0x48] sm:$0xff]
        %v3529 = vld [vmem:[#allocation10 + $0x50] sm:$0xff]
        %v3530 = vld [vmem:[#allocation10 + $0x58] sm:$0xff]
        %v3531 = vld [vmem:[#allocation10 + $0x60] sm:$0xff]
        %v3532 = vld [vmem:[#allocation10 + $0x68] sm:$0xff]
        %v3533 = vld [vmem:[#allocation10 + $0x70] sm:$0xff]
        %v3534 = vld [vmem:[#allocation10 + $0x78] sm:$0xff]
        %v3535 = vld [vmem:[#allocation10 + $0x80] sm:$0xff]
        %v3536 = vld [vmem:[#allocation10 + $0x88] sm:$0xff]
        %v3537 = vld [vmem:[#allocation10 + $0x90] sm:$0xff]
        %v3538 = vld [vmem:[#allocation10 + $0x98] sm:$0xff]
        %v3539 = vld [vmem:[#allocation10 + $0xa0] sm:$0xff]
        %v3540 = vld [vmem:[#allocation10 + $0xa8] sm:$0xff]
        %v3541 = vld [vmem:[#allocation10 + $0xb0] sm:$0xff]
        %v3542 = vld [vmem:[#allocation10 + $0xb8] sm:$0xff]
        %v3543 = vld [vmem:[#allocation10 + $0xc0] sm:$0xff]
        %v3544 = vld [vmem:[#allocation10 + $0xc8] sm:$0xff]
        %v3545 = vld [vmem:[#allocation10 + $0xd0] sm:$0xff]
        %v3546 = vld [vmem:[#allocation10 + $0xd8] sm:$0xff]
        %v3547 = vld [vmem:[#allocation10 + $0xe0] sm:$0xff]
        %v3548 = vld [vmem:[#allocation10 + $0xe8] sm:$0xff]
        %v3549 = vld [vmem:[#allocation10 + $0xf0] sm:$0xff]
        %v3550 = vld [vmem:[#allocation10 + $0xf8] sm:$0xff]
        %v3551 = vpack.c.bf16 %v3518, %v3518
        %s3552 = scalar_lea.vmem [#allocation3], 98
        %v3553 = vld [vmem:[%s3552] ss:$8 sm:$0xf]
        %v3555 = vlaneseq
        %v3556 = vshrl.u32 %v3555, 7
        %v3557 = vsub.s32 0, %v3556
        %v3558 = vrot.slane %v3553, %v3557
        %v3559 = vlaneseq
        %v3560 = vshrl.u32 %v3559, 7
        %v3561 = vsub.s32 1, %v3560
        %v3562 = vrot.slane %v3553, %v3561
        %v3563 = vlaneseq
        %v3564 = vshrl.u32 %v3563, 7
        %v3565 = vsub.s32 2, %v3564
        %v3566 = vrot.slane %v3553, %v3565
        %v3567 = vlaneseq
        %v3568 = vshrl.u32 %v3567, 7
        %v3569 = vsub.s32 3, %v3568
        %v3570 = vrot.slane %v3553, %v3569
        %v3607 = vunpack.c.l.b16 %v3519
        %v3608 = vunpack.c.h.b16 %v3519
        %v3609 = vunpack.c.l.b16 %v3520
        %v3610 = vunpack.c.h.b16 %v3520
        %v3611 = vunpack.c.l.b16 %v3521
        %v3612 = vunpack.c.h.b16 %v3521
        %v3613 = vunpack.c.l.b16 %v3522
        %v3614 = vunpack.c.h.b16 %v3522
        %v3615 = vunpack.c.l.b16 %v3523
        %v3616 = vunpack.c.h.b16 %v3523
        %v3617 = vunpack.c.l.b16 %v3524
        %v3618 = vunpack.c.h.b16 %v3524
        %v3619 = vunpack.c.l.b16 %v3525
        %v3620 = vunpack.c.h.b16 %v3525
        %v3621 = vunpack.c.l.b16 %v3526
        %v3622 = vunpack.c.h.b16 %v3526
        %v3623 = vunpack.c.l.b16 %v3527
        %v3624 = vunpack.c.h.b16 %v3527
        %v3625 = vunpack.c.l.b16 %v3528
        %v3626 = vunpack.c.h.b16 %v3528
        %v3627 = vunpack.c.l.b16 %v3529
        %v3628 = vunpack.c.h.b16 %v3529
        %v3629 = vunpack.c.l.b16 %v3530
        %v3630 = vunpack.c.h.b16 %v3530
        %v3631 = vunpack.c.l.b16 %v3531
        %v3632 = vunpack.c.h.b16 %v3531
        %v3633 = vunpack.c.l.b16 %v3532
        %v3634 = vunpack.c.h.b16 %v3532
        %v3635 = vunpack.c.l.b16 %v3533
        %v3636 = vunpack.c.h.b16 %v3533
        %v3637 = vunpack.c.l.b16 %v3534
        %v3638 = vunpack.c.h.b16 %v3534
        %v3639 = vunpack.c.l.b16 %v3535
        %v3640 = vunpack.c.h.b16 %v3535
        %v3641 = vunpack.c.l.b16 %v3536
        %v3642 = vunpack.c.h.b16 %v3536
        %v3643 = vunpack.c.l.b16 %v3537
        %v3644 = vunpack.c.h.b16 %v3537
        %v3645 = vunpack.c.l.b16 %v3538
        %v3646 = vunpack.c.h.b16 %v3538
        %v3647 = vunpack.c.l.b16 %v3539
        %v3648 = vunpack.c.h.b16 %v3539
        %v3649 = vunpack.c.l.b16 %v3540
        %v3650 = vunpack.c.h.b16 %v3540
        %v3651 = vunpack.c.l.b16 %v3541
        %v3652 = vunpack.c.h.b16 %v3541
        %v3653 = vunpack.c.l.b16 %v3542
        %v3654 = vunpack.c.h.b16 %v3542
        %v3655 = vunpack.c.l.b16 %v3543
        %v3656 = vunpack.c.h.b16 %v3543
        %v3657 = vunpack.c.l.b16 %v3544
        %v3658 = vunpack.c.h.b16 %v3544
        %v3659 = vunpack.c.l.b16 %v3545
        %v3660 = vunpack.c.h.b16 %v3545
        %v3661 = vunpack.c.l.b16 %v3546
        %v3662 = vunpack.c.h.b16 %v3546
        %v3663 = vunpack.c.l.b16 %v3547
        %v3664 = vunpack.c.h.b16 %v3547
        %v3665 = vunpack.c.l.b16 %v3548
        %v3666 = vunpack.c.h.b16 %v3548
        %v3667 = vunpack.c.l.b16 %v3549
        %v3668 = vunpack.c.h.b16 %v3549
        %v3669 = vunpack.c.l.b16 %v3550
        %v3670 = vunpack.c.h.b16 %v3550
        %v3671 = vpack.c.b16 %v3611, %v3607
        %v3672 = vpack.c.b16 %v3612, %v3608
        %v3673 = vpack.c.b16 %v3613, %v3609
        %v3674 = vpack.c.b16 %v3614, %v3610
        %v3675 = vpack.c.b16 %v3619, %v3615
        %v3676 = vpack.c.b16 %v3620, %v3616
        %v3677 = vpack.c.b16 %v3621, %v3617
        %v3678 = vpack.c.b16 %v3622, %v3618
        %v3679 = vpack.c.b16 %v3627, %v3623
        %v3680 = vpack.c.b16 %v3628, %v3624
        %v3681 = vpack.c.b16 %v3629, %v3625
        %v3682 = vpack.c.b16 %v3630, %v3626
        %v3683 = vpack.c.b16 %v3635, %v3631
        %v3684 = vpack.c.b16 %v3636, %v3632
        %v3685 = vpack.c.b16 %v3637, %v3633
        %v3686 = vpack.c.b16 %v3638, %v3634
        %v3687 = vpack.c.b16 %v3643, %v3639
        %v3688 = vpack.c.b16 %v3644, %v3640
        %v3689 = vpack.c.b16 %v3645, %v3641
        %v3690 = vpack.c.b16 %v3646, %v3642
        %v3691 = vpack.c.b16 %v3651, %v3647
        %v3692 = vpack.c.b16 %v3652, %v3648
        %v3693 = vpack.c.b16 %v3653, %v3649
        %v3694 = vpack.c.b16 %v3654, %v3650
        %v3695 = vpack.c.b16 %v3659, %v3655
        %v3696 = vpack.c.b16 %v3660, %v3656
        %v3697 = vpack.c.b16 %v3661, %v3657
        %v3698 = vpack.c.b16 %v3662, %v3658
        %v3699 = vpack.c.b16 %v3667, %v3663
        %v3700 = vpack.c.b16 %v3668, %v3664
        %v3701 = vpack.c.b16 %v3669, %v3665
        %v3702 = vpack.c.b16 %v3670, %v3666
        %3735 = vmatprep.subr.bf16.mxu0 %v3672
        %3736 = vmatpush1.bf16.msra.mxu0 %v3671
        %3737 = vmatprep.subr.bf16.mxu0 %v3676
        %3738 = vmatpush1.bf16.msra.mxu0 %v3675
        %3739 = vmatprep.subr.bf16.mxu0 %v3680
        %3740 = vmatpush1.bf16.msra.mxu0 %v3679
        %3741 = vmatprep.subr.bf16.mxu0 %v3684
        %3742 = vmatpush1.bf16.msra.mxu0 %v3683
        %3743 = vmatprep.subr.bf16.mxu0 %v3688
        %3744 = vmatpush1.bf16.msra.mxu0 %v3687
        %3745 = vmatprep.subr.bf16.mxu0 %v3692
        %3746 = vmatpush1.bf16.msra.mxu0 %v3691
        %3747 = vmatprep.subr.bf16.mxu0 %v3696
        %3748 = vmatpush1.bf16.msra.mxu0 %v3695
        %3749 = vmatprep.subr.bf16.mxu0 %v3700
        %3750 = vmatpush1.bf16.msra.mxu0 %v3699
        %3751 = vmatprep.subr.bf16.mxu0 0
        %3752 = vmatpush1.bf16.msra.mxu0 0
        %3753 = vmatprep.subr.bf16.mxu0 0
        %3754 = vmatpush1.bf16.msra.mxu0 0
        %3755 = vmatprep.subr.bf16.mxu0 0
        %3756 = vmatpush1.bf16.msra.mxu0 0
        %3757 = vmatprep.subr.bf16.mxu0 0
        %3758 = vmatpush1.bf16.msra.mxu0 0
        %3759 = vmatprep.subr.bf16.mxu0 0
        %3760 = vmatpush1.bf16.msra.mxu0 0
        %3761 = vmatprep.subr.bf16.mxu0 0
        %3762 = vmatpush1.bf16.msra.mxu0 0
        %3763 = vmatprep.subr.bf16.mxu0 0
        %3764 = vmatpush1.bf16.msra.mxu0 0
        %3765 = vmatprep.subr.bf16.mxu0 0
        %3766 = vmatpush1.bf16.msra.mxu0 0
        %3767 = vmatprep.mubr.bf16.mxu0 0
        %3768 = vmatmul.mubr.bf16.gmra.mrb[0].mxu0 %v3551
        %v3769 = vpop.f32.mrb[0].mxu0
        %v3770 = vadd.f32 %v3558, %v3769
        %v3771 = vpop.f32.mrb[0].mxu0
        %v3772 = vadd.f32 %v3562, %v3771
        %v3773 = vpop.f32.mrb[0].mxu0
        %v3774 = vpop.f32.mrb[0].mxu0
        %3775 = vdwg.mxu0
        %3776 = vmatprep.subr.bf16.mxu0 %v3674
        %3777 = vmatpush1.bf16.msra.mxu0 %v3673
        %3778 = vmatprep.subr.bf16.mxu0 %v3678
        %3779 = vmatpush1.bf16.msra.mxu0 %v3677
        %3780 = vmatprep.subr.bf16.mxu0 %v3682
        %3781 = vmatpush1.bf16.msra.mxu0 %v3681
        %3782 = vmatprep.subr.bf16.mxu0 %v3686
        %3783 = vmatpush1.bf16.msra.mxu0 %v3685
        %3784 = vmatprep.subr.bf16.mxu0 %v3690
        %3785 = vmatpush1.bf16.msra.mxu0 %v3689
        %3786 = vmatprep.subr.bf16.mxu0 %v3694
        %3787 = vmatpush1.bf16.msra.mxu0 %v3693
        %3788 = vmatprep.subr.bf16.mxu0 %v3698
        %3789 = vmatpush1.bf16.msra.mxu0 %v3697
        %3790 = vmatprep.subr.bf16.mxu0 %v3702
        %3791 = vmatpush1.bf16.msra.mxu0 %v3701
        %3792 = vmatprep.subr.bf16.mxu0 0
        %3793 = vmatpush1.bf16.msra.mxu0 0
        %3794 = vmatprep.subr.bf16.mxu0 0
        %3795 = vmatpush1.bf16.msra.mxu0 0
        %3796 = vmatprep.subr.bf16.mxu0 0
        %3797 = vmatpush1.bf16.msra.mxu0 0
        %3798 = vmatprep.subr.bf16.mxu0 0
        %3799 = vmatpush1.bf16.msra.mxu0 0
        %3800 = vmatprep.subr.bf16.mxu0 0
        %3801 = vmatpush1.bf16.msra.mxu0 0
        %3802 = vmatprep.subr.bf16.mxu0 0
        %3803 = vmatpush1.bf16.msra.mxu0 0
        %3804 = vmatprep.subr.bf16.mxu0 0
        %3805 = vmatpush1.bf16.msra.mxu0 0
        %3806 = vmatprep.subr.bf16.mxu0 0
        %3807 = vmatpush1.bf16.msra.mxu0 0
        %3808 = vmatprep.mubr.bf16.mxu0 0
        %3809 = vmatmul.mubr.bf16.gmra.mrb[0].mxu0 %v3551
        %v3810 = vpop.f32.mrb[0].mxu0
        %v3811 = vadd.f32 %v3566, %v3810
        %v3812 = vpop.f32.mrb[0].mxu0
        %v3813 = vadd.f32 %v3570, %v3812
        %v3814 = vpop.f32.mrb[0].mxu0
        %v3815 = vpop.f32.mrb[0].mxu0
        %3816 = vdwg.mxu0
        %3817 = vst [vmem:[%s427] sm:$0xff] %v3770
        %3818 = vst [vmem:[%s427 + $0x8] sm:$0xff] %v3772
        %3819 = vst [vmem:[%s427 + $0x10] sm:$0xff] %v3811
        %3820 = vst [vmem:[%s427 + $0x18] sm:$0xff] %v3813
        %v3821 = vxor.u32 %v3770, 2147483648
        %v3822 = vxor.u32 %v3772, 2147483648
        %v3823 = vxor.u32 %v3811, 2147483648
        %v3824 = vxor.u32 %v3813, 2147483648
        %v3825 = vmul.f32 %v3821, 1.442695
        %v3826 = vpow.pop %v3825
        %v3827 = vmul.f32 %v3822, 1.442695
        %v3828 = vpow.pop %v3827
        %v3829 = vmul.f32 %v3823, 1.442695
        %v3830 = vpow.pop %v3829
        %v3831 = vmul.f32 %v3824, 1.442695
        %v3832 = vpow.pop %v3831
        %v3833 = vadd.f32 %v3826, 1.0
        %v3834 = vadd.f32 %v3828, 1.0
        %v3835 = vadd.f32 %v3830, 1.0
        %v3836 = vadd.f32 %v3832, 1.0
        %v3837 = vrcp.pop %v3833
        %v3838 = vmul.f32 1.0, %v3837
        %v3839 = vrcp.pop %v3834
        %v3840 = vmul.f32 1.0, %v3839
        %v3841 = vrcp.pop %v3835
        %v3842 = vmul.f32 1.0, %v3841
        %v3843 = vrcp.pop %v3836
        %v3844 = vmul.f32 1.0, %v3843
        %3845 = vst [vmem:[%s432] sm:$0xff] %v3838
        %3846 = vst [vmem:[%s432 + $0x8] sm:$0xff] %v3840
        %3847 = vst [vmem:[%s432 + $0x10] sm:$0xff] %v3842
        %3848 = vst [vmem:[%s432 + $0x18] sm:$0xff] %v3844
        %p3849 = scmp.lt.s32.totalorder %s24, 1
        %s3850 = scalar_select %p3849, %s24, 1
        %s3851 = smul.addr %s3850, 4
        %s3852 = smul.addr %s3851, 8
        %s3853 = scalar_lea.vmem %s8, %s3852
        %p3854 = scmp.lt.s32.totalorder %s24, 1
        %s3855 = scalar_select %p3854, %s24, 1
        %s3856 = smul.addr %s3855, 4
        %s3857 = smul.addr %s3856, 8
        %s3858 = scalar_lea.vmem %s9, %s3857
        // Predicated region
        $region73: #{baseline_classifier_forward.1} parent=51 // pred_check
          %p3859 = pneg %p220
        $region74: #{baseline_classifier_forward.1} parent=51 // pred_check_branch
          %3861 = sbr.rel (%p3859) target = $region76
        $region75: #{baseline_classifier_forward.1} parent=51 // pred_region
          _
        $region76: #{baseline_classifier_forward.1} parent=51 // pred_fallthru
          _
        // Predicated region
        $region77: #{baseline_classifier_forward.1} parent=51 // pred_check
          %p3862 = pneg %p246
        $region78: #{baseline_classifier_forward.1} parent=51 // pred_check_branch
          %3864 = sbr.rel (%p3862) target = $region80
        $region79: #{baseline_classifier_forward.1} parent=51 // pred_region
          _
        $region80: #{baseline_classifier_forward.1} parent=51 // pred_fallthru
          _
      $region52: #{baseline_classifier_forward.1} parent=5 // pred_fallthru
        _
      %p3865 = scmp.le.s32.totalorder 2, %s19
      // Predicated region
      $region81: #{baseline_classifier_forward.1} parent=5 // pred_check
        %p3866 = pneg %p3865
      $region82: #{baseline_classifier_forward.1} parent=5 // pred_check_branch
        %3868 = sbr.rel (%p3866) target = $region84
      $region83: #{baseline_classifier_forward.1} parent=5 // pred_region
        %s3869 = ssub.s32 %s19, 2
        // Predicated region
        $region85: #{baseline_classifier_forward.1} parent=83 // pred_check
          %p3870 = pneg %p226
        $region86: #{baseline_classifier_forward.1} parent=83 // pred_check_branch
          %3872 = sbr.rel (%p3870) target = $region88
        $region87: #{baseline_classifier_forward.1} parent=83 // pred_region
          %p3873 = scmp.lt.s32.totalorder %s25, 1
          %s3874 = scalar_select %p3873, %s25, 1
          %s3875 = smul.addr %s3874, 4
          %s3876 = smul.addr %s3875, 8
          %s3877 = scalar_lea.vmem %s8, %s3876
        $region88: #{baseline_classifier_forward.1} parent=83 // pred_fallthru
          _
        // Predicated region
        $region89: #{baseline_classifier_forward.1} parent=83 // pred_check
          %p3878 = pneg %p252
        $region90: #{baseline_classifier_forward.1} parent=83 // pred_check_branch
          %3880 = sbr.rel (%p3878) target = $region92
        $region91: #{baseline_classifier_forward.1} parent=83 // pred_region
          %p3881 = scmp.lt.s32.totalorder %s25, 1
          %s3882 = scalar_select %p3881, %s25, 1
          %s3883 = smul.addr %s3882, 4
          %s3884 = smul.addr %s3883, 8
          %s3885 = scalar_lea.vmem %s9, %s3884
        $region92: #{baseline_classifier_forward.1} parent=83 // pred_fallthru
          _
      $region84: #{baseline_classifier_forward.1} parent=5 // pred_fallthru
        _
    $region6: #{baseline_classifier_forward.1} parent=1 // loop_footer
      %s23 = sadd.s32 1, %s19
    $region7: #{baseline_classifier_forward.1} parent=1 // loop_footer_branch
      %18 = sbr.rel target = $region3
    $region8: #{baseline_classifier_forward.1} parent=1 // loop_exit
      _
    %3886 = vsyncpa [#allocation4], 1
    %s3887 = scalar_lea.sflag [#allocation4], 1
    %3888 = vsyncpa %s3887, 1
    %3889 = vsyncpa [#allocation6], 1
    %3890 = vsyncpa [#allocation9], 1

</llo_original>
